<compile_context>
chip_gen: v7x
topology: tpu7x:2x2x1
jax: 0.10.0
libtpu: 0.0.40
codegen_flags: <defaults>
</compile_context>

<pallas_src>
import functools
import numpy as np

import jax
import jax.numpy as jnp
from jax.experimental import pallas as pl
from jax.experimental.pallas import tpu as pltpu


# ----------------------------------------------------------------------------
# In-kernel building blocks (batch-folded, lane-dense (B*H, W*C) f32 values)
# ----------------------------------------------------------------------------
def _row_masks(M, Hs):
    """Per-row masks for the folded batch dimension (M = B*Hs rows).

    not_first[i] = 0 where row i is the first row of its image (dy=-1 tap is zero pad),
    not_last[i]  = 0 where row i is the last  row of its image (dy=+1 tap is zero pad).
    """
    r = jax.lax.broadcasted_iota(jnp.int32, (M, 1), 0)
    if Hs & (Hs - 1) == 0:                    # power of two -> cheap bitwise AND
        r = r & (Hs - 1)
    else:
        r = jax.lax.rem(r, Hs)
    not_first = jnp.where(r != 0, 1.0, 0.0).astype(jnp.float32)
    not_last = jnp.where(r != Hs - 1, 1.0, 0.0).astype(jnp.float32)
    return not_first, not_last


def _conv3x3(x, w_ref, not_first, not_last):
    """3x3 same-padding conv (stride 1, no bias) on the folded lane-dense layout.

    x     : (M, W*Cin) value (M = B*H rows).
    w_ref : (3, W*Cin, W*Cout) banded per-dy weight (dx shift + W-direction zero padding
            baked in).  Conv = sum over dy of one MXU matmul on the dy-shifted rows;
            H-direction zero padding (incl. per-image boundaries) = the row masks.
    """
    zrow = jnp.zeros((1, x.shape[1]), jnp.float32)
    x_up = jnp.concatenate([zrow, x[:-1]], axis=0) * not_first   # tap x[h-1]
    x_dn = jnp.concatenate([x[1:], zrow], axis=0) * not_last     # tap x[h+1]
    # Default MXU f32 precision; pass precision=HIGHEST here for closer f32 parity
    # if needed (the MXU has large slack in this kernel).
    acc = jnp.dot(x, w_ref[1], preferred_element_type=jnp.float32)
    acc = acc + jnp.dot(x_up, w_ref[0], preferred_element_type=jnp.float32)
    acc = acc + jnp.dot(x_dn, w_ref[2], preferred_element_type=jnp.float32)
    return acc


def _enc_block(x, wA_ref, wB_ref, not_first, not_last):
    """enc: res = relu(conv(relu(conv(x)))) + x."""
    t = jnp.maximum(_conv3x3(x, wA_ref, not_first, not_last), 0.0)
    t = jnp.maximum(_conv3x3(t, wB_ref, not_first, not_last), 0.0)
    return t + x


def _skip_upsample(x, y, a_ref, m_ref):
    """SkipUpSample: bilinear 2x (align_corners=False) + 1x1 conv + ReLU, then + y.

    x : (B*Hs, Ws*Cin) folded lane-dense;  y : (B*2Hs, 2Ws*Cout).
    a_ref : (B*2Hs, B*Hs) block-diagonal H-direction bilinear matrix (per-image edge
            clamping baked in; no cross-sample mixing).
    m_ref : (Ws*Cin, 2Ws*Cout) W-direction bilinear fused with the 1x1 conv.
    """
    xh = jnp.dot(a_ref[...], x, preferred_element_type=jnp.float32)
    t = jnp.dot(xh, m_ref[...], preferred_element_type=jnp.float32)
    return jnp.maximum(t, 0.0) + y


def _decoder_kernel(e1_ref, e2_ref, e3_ref,
                    d3A, d3B, s2A, s2B, u32A, u32M, d2A, d2B,
                    s1A, s1B, u21A, u21M, d1A, d1B,
                    dec1_ref, dec2_ref, dec3_ref,
                    *, B, H):
    H2, H4 = H // 2, H // 4
    nf1, nl1 = _row_masks(B * H, H)          # hoisted once per level
    nf2, nl2 = _row_masks(B * H2, H2)
    nf3, nl3 = _row_masks(B * H4, H4)

    e1 = e1_ref[...]                         # (B*H,  W  * c1)
    e2 = e2_ref[...]                         # (B*H2, W2 * c2)
    e3 = e3_ref[...]                         # (B*H4, W4 * c3)

    dec3 = _enc_block(e3, d3A, d3B, nf3, nl3)        # decoder_level3
    sa2 = _enc_block(e2, s2A, s2B, nf2, nl2)         # skip_attn2
    x2 = _skip_upsample(dec3, sa2, u32A, u32M)       # up32
    dec2 = _enc_block(x2, d2A, d2B, nf2, nl2)        # decoder_level2
    sa1 = _enc_block(e1, s1A, s1B, nf1, nl1)         # skip_attn1
    x1 = _skip_upsample(dec2, sa1, u21A, u21M)       # up21
    dec1 = _enc_block(x1, d1A, d1B, nf1, nl1)        # decoder_level1

    dec1_ref[...] = dec1                             # lane-dense stores
    dec2_ref[...] = dec2
    dec3_ref[...] = dec3


# ----------------------------------------------------------------------------
# One-time weight expansion (numpy, done once outside the jitted path)
# ----------------------------------------------------------------------------
def _expand_conv3x3_weight(w, W):
    """(3,3,Cin,Cout) HWIO conv weight -> (3, W*Cin, W*Cout) banded per-dy matrices
    with the dx (W-direction) shift and zero padding baked in.

    Scaling guard: this grows as 3*W^2*Cin*Cout*4 bytes per conv (3x smaller than the
    old 9-tap block-diagonal form).  For much larger W, switch to per-dx accumulation
    or spatial tiling and re-derive VMEM budgets for v7x's 64 MiB.
    """
    w = np.asarray(w, np.float32)
    Cin, Cout = w.shape[2], w.shape[3]
    out = np.zeros((3, W * Cin, W * Cout), np.float32)
    for dy in range(3):
        for dx in range(3):
            for wo in range(W):
                wi = wo + dx - 1
                if 0 <= wi < W:
                    out[dy, wi * Cin:(wi + 1) * Cin, wo * Cout:(wo + 1) * Cout] = w[dy, dx]
    return jnp.asarray(out)


def _bilinear_up_matrix(n):
    """(2n, n) 1-D bilinear x2 interpolation weights, align_corners=False (PyTorch)."""
    A = np.zeros((2 * n, n), np.float32)
    for j in range(2 * n):
        src = max(j * 0.5 - 0.25, 0.0)
        i0 = int(np.floor(src))
        i1 = min(i0 + 1, n - 1)
        f = src - i0
        A[j, i0] += 1.0 - f
        A[j, i1] += f
    return A


def _h_up_matrix(B, Hs):
    """Block-diagonal H-direction bilinear x2 matrix for the batch-folded layout."""
    A = _bilinear_up_matrix(Hs)
    out = np.zeros((B * 2 * Hs, B * Hs), np.float32)
    for b in range(B):
        out[b * 2 * Hs:(b + 1) * 2 * Hs, b * Hs:(b + 1) * Hs] = A
    return jnp.asarray(out)


def _expand_up_weight(w1x1, Ws):
    """Fuse the W-direction bilinear x2 with the SkipUpSample 1x1 conv:
    (Cin, Cout) -> (Ws*Cin, 2*Ws*Cout)."""
    w1x1 = np.asarray(w1x1, np.float32)
    A = _bilinear_up_matrix(Ws)                       # (2Ws, Ws)  [out_col, in_col]
    big = np.einsum('yx,io->xiyo', A, w1x1)           # (Ws, Cin, 2Ws, Cout)
    return jnp.asarray(big.reshape(Ws * w1x1.shape[0], 2 * Ws * w1x1.shape[1]))


def prepare_kernel_weights(params, B, H, W):
    H2, H4, W2, W4 = H // 2, H // 4, W // 2, W // 4
    return [
        _expand_conv3x3_weight(params["dec3_wA"], W4),
        _expand_conv3x3_weight(params["dec3_wB"], W4),
        _expand_conv3x3_weight(params["sa2_wA"], W2),
        _expand_conv3x3_weight(params["sa2_wB"], W2),
        _h_up_matrix(B, H4),                           # up32: H-direction bilinear
        _expand_up_weight(params["up32_w"], W4),       # up32: W-direction + 1x1 conv
        _expand_conv3x3_weight(params["dec2_wA"], W2),
        _expand_conv3x3_weight(params["dec2_wB"], W2),
        _expand_conv3x3_weight(params["sa1_wA"], W),
        _expand_conv3x3_weight(params["sa1_wB"], W),
        _h_up_matrix(B, H2),                           # up21: H-direction bilinear
        _expand_up_weight(params["up21_w"], W2),       # up21: W-direction + 1x1 conv
        _expand_conv3x3_weight(params["dec1_wA"], W),
        _expand_conv3x3_weight(params["dec1_wB"], W),
    ]


# ----------------------------------------------------------------------------
# Wrapper: NHWC boundary <-> batch-folded lane-dense layout (pure reshapes)
# ----------------------------------------------------------------------------
def decoder_forward(kernel_weights, enc1, enc2, enc3):
    B, H, W, c1 = enc1.shape
    _, H2, W2, c2 = enc2.shape
    _, H4, W4, c3 = enc3.shape

    e1 = enc1.reshape(B * H, W * c1)          # contiguous reshape, no transpose
    e2 = enc2.reshape(B * H2, W2 * c2)
    e3 = enc3.reshape(B * H4, W4 * c3)

    kernel = functools.partial(_decoder_kernel, B=B, H=H)

    # No grid: one invocation, whole arrays resident in VMEM, every weight DMA'd once.
    # Total VMEM requirement ~2 MiB; 12 MiB leaves generous headroom (v7x: 64 MiB phys).
    d1, d2, d3 = pl.pallas_call(
        kernel,
        out_shape=(jax.ShapeDtypeStruct((B * H, W * c1), jnp.float32),
                   jax.ShapeDtypeStruct((B * H2, W2 * c2), jnp.float32),
                   jax.ShapeDtypeStruct((B * H4, W4 * c3), jnp.float32)),
        compiler_params=pltpu.CompilerParams(vmem_limit_bytes=12 * 1024 * 1024),
    )(e1, e2, e3, *kernel_weights)

    return [d1.reshape(B, H, W, c1),
            d2.reshape(B, H2, W2, c2),
            d3.reshape(B, H4, W4, c3)]


# ----------------------------------------------------------------------------
# Parameters and a pure-JAX reference (numerical self-check, NHWC)
# ----------------------------------------------------------------------------
def init_params(key, n_feat, scale_feat):
    c1, c2, c3 = n_feat, n_feat + scale_feat, n_feat + 2 * scale_feat

    def wgt(k, shape):
        fan_in = float(np.prod(shape[:-1]))
        return jax.random.normal(k, shape, jnp.float32) / np.sqrt(fan_in)

    ks = iter(jax.random.split(key, 16))
    return {
        "dec1_wA": wgt(next(ks), (3, 3, c1, c1)), "dec1_wB": wgt(next(ks), (3, 3, c1, c1)),
        "dec2_wA": wgt(next(ks), (3, 3, c2, c2)), "dec2_wB": wgt(next(ks), (3, 3, c2, c2)),
        "dec3_wA": wgt(next(ks), (3, 3, c3, c3)), "dec3_wB": wgt(next(ks), (3, 3, c3, c3)),
        "sa1_wA": wgt(next(ks), (3, 3, c1, c1)), "sa1_wB": wgt(next(ks), (3, 3, c1, c1)),
        "sa2_wA": wgt(next(ks), (3, 3, c2, c2)), "sa2_wB": wgt(next(ks), (3, 3, c2, c2)),
        "up32_w": wgt(next(ks), (c3, c2)),   # SkipUpSample(c2, s): Conv2d(c3 -> c2, 1x1)
        "up21_w": wgt(next(ks), (c2, c1)),   # SkipUpSample(c1, s): Conv2d(c2 -> c1, 1x1)
    }


def _ref_conv3x3(x, w):
    return jax.lax.conv_general_dilated(
        x, w, window_strides=(1, 1), padding="SAME",
        dimension_numbers=("NHWC", "HWIO", "NHWC"),
        precision=jax.lax.Precision.HIGHEST)


def _ref_enc_block(x, wA, wB):
    t = jax.nn.relu(_ref_conv3x3(x, wA))
    t = jax.nn.relu(_ref_conv3x3(t, wB))
    return t + x


def _ref_upsample2x(x):  # NHWC bilinear x2, align_corners=False (PyTorch semantics)
    _, H, W, _ = x.shape

    def weights(n):
        dst = np.arange(2 * n)
        src = np.maximum(dst * 0.5 - 0.25, 0.0)
        i0 = np.floor(src).astype(np.int32)
        i1 = np.minimum(i0 + 1, n - 1)
        f = (src - i0).astype(np.float32)
        return i0, i1, f

    i0, i1, fh = weights(H)
    x = x[:, i0] * (1.0 - fh)[None, :, None, None] + x[:, i1] * fh[None, :, None, None]
    j0, j1, fw = weights(W)
    x = x[:, :, j0] * (1.0 - fw)[None, None, :, None] + x[:, :, j1] * fw[None, None, :, None]
    return x


def decoder_reference(params, e1, e2, e3):
    def skip_up(x, y, w1):
        up = _ref_upsample2x(x)
        t = jnp.einsum('bhwc,cd->bhwd', up, w1, precision=jax.lax.Precision.HIGHEST)
        return jax.nn.relu(t) + y

    dec3 = _ref_enc_block(e3, params["dec3_wA"], params["dec3_wB"])
    sa2 = _ref_enc_block(e2, params["sa2_wA"], params["sa2_wB"])
    x2 = skip_up(dec3, sa2, params["up32_w"])
    dec2 = _ref_enc_block(x2, params["dec2_wA"], params["dec2_wB"])
    sa1 = _ref_enc_block(e1, params["sa1_wA"], params["sa1_wB"])
    x1 = skip_up(dec2, sa1, params["up21_w"])
    dec1 = _ref_enc_block(x1, params["dec1_wA"], params["dec1_wB"])
    return [dec1, dec2, dec3]


# ----------------------------------------------------------------------------
if __name__ == "__main__":
    n_feat, scale_feat = 8, 4
    B, H, W = 2, 16, 16
    c1, c2, c3 = n_feat, n_feat + scale_feat, n_feat + 2 * scale_feat

    key = jax.random.PRNGKey(0)
    kp, k1, k2, k3 = jax.random.split(key, 4)
    params = init_params(kp, n_feat, scale_feat)

    # Module boundary is NHWC (avoids un-fusable NCHW transposes around the kernel).
    enc1 = jax.random.normal(k1, (B, H, W, c1), jnp.float32)
    enc2 = jax.random.normal(k2, (B, H // 2, W // 2, c2), jnp.float32)
    enc3 = jax.random.normal(k3, (B, H // 4, W // 4, c3), jnp.float32)

    kernel_weights = prepare_kernel_weights(params, B, H, W)   # expanded once, outside jit

    fwd = jax.jit(decoder_forward)
    dec1, dec2, dec3 = fwd(kernel_weights, enc1, enc2, enc3)
    jax.block_until_ready((dec1, dec2, dec3))

    assert dec1.shape == (B, H, W, c1)
    assert dec2.shape == (B, H // 2, W // 2, c2)
    assert dec3.shape == (B, H // 4, W // 4, c3)

    ref1, ref2, ref3 = decoder_reference(params, enc1, enc2, enc3)
    for got, ref in ((dec1, ref1), (dec2, ref2), (dec3, ref3)):
        assert bool(jnp.isfinite(got).all())
        err = float(jnp.max(jnp.abs(got - ref)))
        # loose bound: kernel uses default MXU f32 precision vs HIGHEST in the reference
        assert err < 1e-1, f"max abs error {err}"

    print("KERNEL_OK")
</pallas_src>

<mosaic_0001>
module attributes {stable_mosaic.version = 11 : i64} {
  func.func @_decoder_kernel(%arg0: memref<32x128xf32, #tpu.memory_space<vmem>>, %arg1: memref<16x96xf32, #tpu.memory_space<vmem>>, %arg2: memref<8x64xf32, #tpu.memory_space<vmem>>, %arg3: memref<3x64x64xf32, #tpu.memory_space<vmem>>, %arg4: memref<3x64x64xf32, #tpu.memory_space<vmem>>, %arg5: memref<3x96x96xf32, #tpu.memory_space<vmem>>, %arg6: memref<3x96x96xf32, #tpu.memory_space<vmem>>, %arg7: memref<16x8xf32, #tpu.memory_space<vmem>>, %arg8: memref<64x96xf32, #tpu.memory_space<vmem>>, %arg9: memref<3x96x96xf32, #tpu.memory_space<vmem>>, %arg10: memref<3x96x96xf32, #tpu.memory_space<vmem>>, %arg11: memref<3x128x128xf32, #tpu.memory_space<vmem>>, %arg12: memref<3x128x128xf32, #tpu.memory_space<vmem>>, %arg13: memref<32x16xf32, #tpu.memory_space<vmem>>, %arg14: memref<96x128xf32, #tpu.memory_space<vmem>>, %arg15: memref<3x128x128xf32, #tpu.memory_space<vmem>>, %arg16: memref<3x128x128xf32, #tpu.memory_space<vmem>>, %arg17: memref<32x128xf32, #tpu.memory_space<vmem>>, %arg18: memref<16x96xf32, #tpu.memory_space<vmem>>, %arg19: memref<8x64xf32, #tpu.memory_space<vmem>>) attributes {dimension_semantics = [], scalar_prefetch = 0 : i64, scratch_operands = 0 : i64, tpu.core_type = #tpu.core_type<tc>} {
    %0 = tpu.iota {dimensions = array<i32: 0>} : vector<32x1xi32>
    %c15_i32 = arith.constant 15 : i32
    %1 = vector.broadcast %c15_i32 : i32 to vector<32x1xi32>
    %2 = arith.andi %0, %1 : vector<32x1xi32>
    %c0_i32 = arith.constant 0 : i32
    %3 = vector.broadcast %c0_i32 : i32 to vector<32x1xi32>
    %4 = arith.cmpi ne, %2, %3 : vector<32x1xi32>
    %cst = arith.constant 1.000000e+00 : f32
    %cst_0 = arith.constant 0.000000e+00 : f32
    %5 = vector.broadcast %cst : f32 to vector<32x1xf32>
    %6 = vector.broadcast %cst_0 : f32 to vector<32x1xf32>
    %7 = arith.select %4, %5, %6 : vector<32x1xi1>, vector<32x1xf32>
    %c15_i32_1 = arith.constant 15 : i32
    %8 = vector.broadcast %c15_i32_1 : i32 to vector<32x1xi32>
    %9 = arith.cmpi ne, %2, %8 : vector<32x1xi32>
    %cst_2 = arith.constant 1.000000e+00 : f32
    %cst_3 = arith.constant 0.000000e+00 : f32
    %10 = vector.broadcast %cst_2 : f32 to vector<32x1xf32>
    %11 = vector.broadcast %cst_3 : f32 to vector<32x1xf32>
    %12 = arith.select %9, %10, %11 : vector<32x1xi1>, vector<32x1xf32>
    %13 = tpu.iota {dimensions = array<i32: 0>} : vector<16x1xi32>
    %c7_i32 = arith.constant 7 : i32
    %14 = vector.broadcast %c7_i32 : i32 to vector<16x1xi32>
    %15 = arith.andi %13, %14 : vector<16x1xi32>
    %c0_i32_4 = arith.constant 0 : i32
    %16 = vector.broadcast %c0_i32_4 : i32 to vector<16x1xi32>
    %17 = arith.cmpi ne, %15, %16 : vector<16x1xi32>
    %cst_5 = arith.constant 1.000000e+00 : f32
    %cst_6 = arith.constant 0.000000e+00 : f32
    %18 = vector.broadcast %cst_5 : f32 to vector<16x1xf32>
    %19 = vector.broadcast %cst_6 : f32 to vector<16x1xf32>
    %20 = arith.select %17, %18, %19 : vector<16x1xi1>, vector<16x1xf32>
    %c7_i32_7 = arith.constant 7 : i32
    %21 = vector.broadcast %c7_i32_7 : i32 to vector<16x1xi32>
    %22 = arith.cmpi ne, %15, %21 : vector<16x1xi32>
    %cst_8 = arith.constant 1.000000e+00 : f32
    %cst_9 = arith.constant 0.000000e+00 : f32
    %23 = vector.broadcast %cst_8 : f32 to vector<16x1xf32>
    %24 = vector.broadcast %cst_9 : f32 to vector<16x1xf32>
    %25 = arith.select %22, %23, %24 : vector<16x1xi1>, vector<16x1xf32>
    %26 = tpu.iota {dimensions = array<i32: 0>} : vector<8x1xi32>
    %c3_i32 = arith.constant 3 : i32
    %27 = vector.broadcast %c3_i32 : i32 to vector<8x1xi32>
    %28 = arith.andi %26, %27 : vector<8x1xi32>
    %c0_i32_10 = arith.constant 0 : i32
    %29 = vector.broadcast %c0_i32_10 : i32 to vector<8x1xi32>
    %30 = arith.cmpi ne, %28, %29 : vector<8x1xi32>
    %cst_11 = arith.constant 1.000000e+00 : f32
    %cst_12 = arith.constant 0.000000e+00 : f32
    %31 = vector.broadcast %cst_11 : f32 to vector<8x1xf32>
    %32 = vector.broadcast %cst_12 : f32 to vector<8x1xf32>
    %33 = arith.select %30, %31, %32 : vector<8x1xi1>, vector<8x1xf32>
    %c3_i32_13 = arith.constant 3 : i32
    %34 = vector.broadcast %c3_i32_13 : i32 to vector<8x1xi32>
    %35 = arith.cmpi ne, %28, %34 : vector<8x1xi32>
    %cst_14 = arith.constant 1.000000e+00 : f32
    %cst_15 = arith.constant 0.000000e+00 : f32
    %36 = vector.broadcast %cst_14 : f32 to vector<8x1xf32>
    %37 = vector.broadcast %cst_15 : f32 to vector<8x1xf32>
    %38 = arith.select %35, %36, %37 : vector<8x1xi1>, vector<8x1xf32>
    %c0 = arith.constant 0 : index
    %c0_16 = arith.constant 0 : index
    %39 = vector.load %arg0[%c0, %c0_16] : memref<32x128xf32, #tpu.memory_space<vmem>>, vector<32x128xf32>
    %c0_17 = arith.constant 0 : index
    %c0_18 = arith.constant 0 : index
    %40 = vector.load %arg1[%c0_17, %c0_18] : memref<16x96xf32, #tpu.memory_space<vmem>>, vector<16x96xf32>
    %c0_19 = arith.constant 0 : index
    %c0_20 = arith.constant 0 : index
    %41 = vector.load %arg2[%c0_19, %c0_20] : memref<8x64xf32, #tpu.memory_space<vmem>>, vector<8x64xf32>
    %cst_21 = arith.constant 0.000000e+00 : f32
    %42 = vector.broadcast %cst_21 : f32 to vector<1x64xf32>
    %43 = vector.extract_strided_slice %41 {offsets = [0, 0], sizes = [7, 64], strides = [1, 1]} : vector<8x64xf32> to vector<7x64xf32>
    %44 = tpu.concatenate %42, %43 in 0 : vector<1x64xf32>, vector<7x64xf32> -> vector<8x64xf32>
    %45 = vector.broadcast %33 : vector<8x1xf32> to vector<8x64xf32>
    %46 = arith.mulf %44, %45 : vector<8x64xf32>
    %47 = vector.extract_strided_slice %41 {offsets = [1, 0], sizes = [7, 64], strides = [1, 1]} : vector<8x64xf32> to vector<7x64xf32>
    %48 = tpu.concatenate %47, %42 in 0 : vector<7x64xf32>, vector<1x64xf32> -> vector<8x64xf32>
    %49 = vector.broadcast %38 : vector<8x1xf32> to vector<8x64xf32>
    %50 = arith.mulf %48, %49 : vector<8x64xf32>
    %c1 = arith.constant 1 : index
    %c0_22 = arith.constant 0 : index
    %c0_23 = arith.constant 0 : index
    %51 = vector.load %arg3[%c1, %c0_22, %c0_23] : memref<3x64x64xf32, #tpu.memory_space<vmem>>, vector<1x64x64xf32>
    %52 = vector.shape_cast %51 : vector<1x64x64xf32> to vector<64x64xf32>
    %cst_24 = arith.constant dense<0.000000e+00> : vector<8x64xf32>
    %53 = tpu.matmul %41, %52, %cst_24 {dimension_numbers = #tpu.dot_dimension_numbers<[1], [0], [0], [1], [0, 0, 1, 1], [], []>} : vector<8x64xf32>, vector<64x64xf32>, vector<8x64xf32> -> vector<8x64xf32>
    %c0_25 = arith.constant 0 : index
    %c0_26 = arith.constant 0 : index
    %c0_27 = arith.constant 0 : index
    %54 = vector.load %arg3[%c0_25, %c0_26, %c0_27] : memref<3x64x64xf32, #tpu.memory_space<vmem>>, vector<1x64x64xf32>
    %55 = vector.shape_cast %54 : vector<1x64x64xf32> to vector<64x64xf32>
    %cst_28 = arith.constant dense<0.000000e+00> : vector<8x64xf32>
    %56 = tpu.matmul %46, %55, %cst_28 {dimension_numbers = #tpu.dot_dimension_numbers<[1], [0], [0], [1], [0, 0, 1, 1], [], []>} : vector<8x64xf32>, vector<64x64xf32>, vector<8x64xf32> -> vector<8x64xf32>
    %57 = arith.addf %53, %56 : vector<8x64xf32>
    %c2 = arith.constant 2 : index
    %c0_29 = arith.constant 0 : index
    %c0_30 = arith.constant 0 : index
    %58 = vector.load %arg3[%c2, %c0_29, %c0_30] : memref<3x64x64xf32, #tpu.memory_space<vmem>>, vector<1x64x64xf32>
    %59 = vector.shape_cast %58 : vector<1x64x64xf32> to vector<64x64xf32>
    %cst_31 = arith.constant dense<0.000000e+00> : vector<8x64xf32>
    %60 = tpu.matmul %50, %59, %cst_31 {dimension_numbers = #tpu.dot_dimension_numbers<[1], [0], [0], [1], [0, 0, 1, 1], [], []>} : vector<8x64xf32>, vector<64x64xf32>, vector<8x64xf32> -> vector<8x64xf32>
    %61 = arith.addf %57, %60 : vector<8x64xf32>
    %cst_32 = arith.constant 0.000000e+00 : f32
    %62 = vector.broadcast %cst_32 : f32 to vector<8x64xf32>
    %63 = arith.maximumf %61, %62 : vector<8x64xf32>
    %cst_33 = arith.constant 0.000000e+00 : f32
    %64 = vector.broadcast %cst_33 : f32 to vector<1x64xf32>
    %65 = vector.extract_strided_slice %63 {offsets = [0, 0], sizes = [7, 64], strides = [1, 1]} : vector<8x64xf32> to vector<7x64xf32>
    %66 = tpu.concatenate %64, %65 in 0 : vector<1x64xf32>, vector<7x64xf32> -> vector<8x64xf32>
    %67 = vector.broadcast %33 : vector<8x1xf32> to vector<8x64xf32>
    %68 = arith.mulf %66, %67 : vector<8x64xf32>
    %69 = vector.extract_strided_slice %63 {offsets = [1, 0], sizes = [7, 64], strides = [1, 1]} : vector<8x64xf32> to vector<7x64xf32>
    %70 = tpu.concatenate %69, %64 in 0 : vector<7x64xf32>, vector<1x64xf32> -> vector<8x64xf32>
    %71 = vector.broadcast %38 : vector<8x1xf32> to vector<8x64xf32>
    %72 = arith.mulf %70, %71 : vector<8x64xf32>
    %c1_34 = arith.constant 1 : index
    %c0_35 = arith.constant 0 : index
    %c0_36 = arith.constant 0 : index
    %73 = vector.load %arg4[%c1_34, %c0_35, %c0_36] : memref<3x64x64xf32, #tpu.memory_space<vmem>>, vector<1x64x64xf32>
    %74 = vector.shape_cast %73 : vector<1x64x64xf32> to vector<64x64xf32>
    %cst_37 = arith.constant dense<0.000000e+00> : vector<8x64xf32>
    %75 = tpu.matmul %63, %74, %cst_37 {dimension_numbers = #tpu.dot_dimension_numbers<[1], [0], [0], [1], [0, 0, 1, 1], [], []>} : vector<8x64xf32>, vector<64x64xf32>, vector<8x64xf32> -> vector<8x64xf32>
    %c0_38 = arith.constant 0 : index
    %c0_39 = arith.constant 0 : index
    %c0_40 = arith.constant 0 : index
    %76 = vector.load %arg4[%c0_38, %c0_39, %c0_40] : memref<3x64x64xf32, #tpu.memory_space<vmem>>, vector<1x64x64xf32>
    %77 = vector.shape_cast %76 : vector<1x64x64xf32> to vector<64x64xf32>
    %cst_41 = arith.constant dense<0.000000e+00> : vector<8x64xf32>
    %78 = tpu.matmul %68, %77, %cst_41 {dimension_numbers = #tpu.dot_dimension_numbers<[1], [0], [0], [1], [0, 0, 1, 1], [], []>} : vector<8x64xf32>, vector<64x64xf32>, vector<8x64xf32> -> vector<8x64xf32>
    %79 = arith.addf %75, %78 : vector<8x64xf32>
    %c2_42 = arith.constant 2 : index
    %c0_43 = arith.constant 0 : index
    %c0_44 = arith.constant 0 : index
    %80 = vector.load %arg4[%c2_42, %c0_43, %c0_44] : memref<3x64x64xf32, #tpu.memory_space<vmem>>, vector<1x64x64xf32>
    %81 = vector.shape_cast %80 : vector<1x64x64xf32> to vector<64x64xf32>
    %cst_45 = arith.constant dense<0.000000e+00> : vector<8x64xf32>
    %82 = tpu.matmul %72, %81, %cst_45 {dimension_numbers = #tpu.dot_dimension_numbers<[1], [0], [0], [1], [0, 0, 1, 1], [], []>} : vector<8x64xf32>, vector<64x64xf32>, vector<8x64xf32> -> vector<8x64xf32>
    %83 = arith.addf %79, %82 : vector<8x64xf32>
    %cst_46 = arith.constant 0.000000e+00 : f32
    %84 = vector.broadcast %cst_46 : f32 to vector<8x64xf32>
    %85 = arith.maximumf %83, %84 : vector<8x64xf32>
    %86 = arith.addf %85, %41 : vector<8x64xf32>
    %cst_47 = arith.constant 0.000000e+00 : f32
    %87 = vector.broadcast %cst_47 : f32 to vector<1x96xf32>
    %88 = vector.extract_strided_slice %40 {offsets = [0, 0], sizes = [15, 96], strides = [1, 1]} : vector<16x96xf32> to vector<15x96xf32>
    %89 = tpu.concatenate %87, %88 in 0 : vector<1x96xf32>, vector<15x96xf32> -> vector<16x96xf32>
    %90 = vector.broadcast %20 : vector<16x1xf32> to vector<16x96xf32>
    %91 = arith.mulf %89, %90 : vector<16x96xf32>
    %92 = vector.extract_strided_slice %40 {offsets = [1, 0], sizes = [15, 96], strides = [1, 1]} : vector<16x96xf32> to vector<15x96xf32>
    %93 = tpu.concatenate %92, %87 in 0 : vector<15x96xf32>, vector<1x96xf32> -> vector<16x96xf32>
    %94 = vector.broadcast %25 : vector<16x1xf32> to vector<16x96xf32>
    %95 = arith.mulf %93, %94 : vector<16x96xf32>
    %c1_48 = arith.constant 1 : index
    %c0_49 = arith.constant 0 : index
    %c0_50 = arith.constant 0 : index
    %96 = vector.load %arg5[%c1_48, %c0_49, %c0_50] : memref<3x96x96xf32, #tpu.memory_space<vmem>>, vector<1x96x96xf32>
    %97 = vector.shape_cast %96 : vector<1x96x96xf32> to vector<96x96xf32>
    %cst_51 = arith.constant dense<0.000000e+00> : vector<16x96xf32>
    %98 = tpu.matmul %40, %97, %cst_51 {dimension_numbers = #tpu.dot_dimension_numbers<[1], [0], [0], [1], [0, 0, 1, 1], [], []>} : vector<16x96xf32>, vector<96x96xf32>, vector<16x96xf32> -> vector<16x96xf32>
    %c0_52 = arith.constant 0 : index
    %c0_53 = arith.constant 0 : index
    %c0_54 = arith.constant 0 : index
    %99 = vector.load %arg5[%c0_52, %c0_53, %c0_54] : memref<3x96x96xf32, #tpu.memory_space<vmem>>, vector<1x96x96xf32>
    %100 = vector.shape_cast %99 : vector<1x96x96xf32> to vector<96x96xf32>
    %cst_55 = arith.constant dense<0.000000e+00> : vector<16x96xf32>
    %101 = tpu.matmul %91, %100, %cst_55 {dimension_numbers = #tpu.dot_dimension_numbers<[1], [0], [0], [1], [0, 0, 1, 1], [], []>} : vector<16x96xf32>, vector<96x96xf32>, vector<16x96xf32> -> vector<16x96xf32>
    %102 = arith.addf %98, %101 : vector<16x96xf32>
    %c2_56 = arith.constant 2 : index
    %c0_57 = arith.constant 0 : index
    %c0_58 = arith.constant 0 : index
    %103 = vector.load %arg5[%c2_56, %c0_57, %c0_58] : memref<3x96x96xf32, #tpu.memory_space<vmem>>, vector<1x96x96xf32>
    %104 = vector.shape_cast %103 : vector<1x96x96xf32> to vector<96x96xf32>
    %cst_59 = arith.constant dense<0.000000e+00> : vector<16x96xf32>
    %105 = tpu.matmul %95, %104, %cst_59 {dimension_numbers = #tpu.dot_dimension_numbers<[1], [0], [0], [1], [0, 0, 1, 1], [], []>} : vector<16x96xf32>, vector<96x96xf32>, vector<16x96xf32> -> vector<16x96xf32>
    %106 = arith.addf %102, %105 : vector<16x96xf32>
    %cst_60 = arith.constant 0.000000e+00 : f32
    %107 = vector.broadcast %cst_60 : f32 to vector<16x96xf32>
    %108 = arith.maximumf %106, %107 : vector<16x96xf32>
    %cst_61 = arith.constant 0.000000e+00 : f32
    %109 = vector.broadcast %cst_61 : f32 to vector<1x96xf32>
    %110 = vector.extract_strided_slice %108 {offsets = [0, 0], sizes = [15, 96], strides = [1, 1]} : vector<16x96xf32> to vector<15x96xf32>
    %111 = tpu.concatenate %109, %110 in 0 : vector<1x96xf32>, vector<15x96xf32> -> vector<16x96xf32>
    %112 = vector.broadcast %20 : vector<16x1xf32> to vector<16x96xf32>
    %113 = arith.mulf %111, %112 : vector<16x96xf32>
    %114 = vector.extract_strided_slice %108 {offsets = [1, 0], sizes = [15, 96], strides = [1, 1]} : vector<16x96xf32> to vector<15x96xf32>
    %115 = tpu.concatenate %114, %109 in 0 : vector<15x96xf32>, vector<1x96xf32> -> vector<16x96xf32>
    %116 = vector.broadcast %25 : vector<16x1xf32> to vector<16x96xf32>
    %117 = arith.mulf %115, %116 : vector<16x96xf32>
    %c1_62 = arith.constant 1 : index
    %c0_63 = arith.constant 0 : index
    %c0_64 = arith.constant 0 : index
    %118 = vector.load %arg6[%c1_62, %c0_63, %c0_64] : memref<3x96x96xf32, #tpu.memory_space<vmem>>, vector<1x96x96xf32>
    %119 = vector.shape_cast %118 : vector<1x96x96xf32> to vector<96x96xf32>
    %cst_65 = arith.constant dense<0.000000e+00> : vector<16x96xf32>
    %120 = tpu.matmul %108, %119, %cst_65 {dimension_numbers = #tpu.dot_dimension_numbers<[1], [0], [0], [1], [0, 0, 1, 1], [], []>} : vector<16x96xf32>, vector<96x96xf32>, vector<16x96xf32> -> vector<16x96xf32>
    %c0_66 = arith.constant 0 : index
    %c0_67 = arith.constant 0 : index
    %c0_68 = arith.constant 0 : index
    %121 = vector.load %arg6[%c0_66, %c0_67, %c0_68] : memref<3x96x96xf32, #tpu.memory_space<vmem>>, vector<1x96x96xf32>
    %122 = vector.shape_cast %121 : vector<1x96x96xf32> to vector<96x96xf32>
    %cst_69 = arith.constant dense<0.000000e+00> : vector<16x96xf32>
    %123 = tpu.matmul %113, %122, %cst_69 {dimension_numbers = #tpu.dot_dimension_numbers<[1], [0], [0], [1], [0, 0, 1, 1], [], []>} : vector<16x96xf32>, vector<96x96xf32>, vector<16x96xf32> -> vector<16x96xf32>
    %124 = arith.addf %120, %123 : vector<16x96xf32>
    %c2_70 = arith.constant 2 : index
    %c0_71 = arith.constant 0 : index
    %c0_72 = arith.constant 0 : index
    %125 = vector.load %arg6[%c2_70, %c0_71, %c0_72] : memref<3x96x96xf32, #tpu.memory_space<vmem>>, vector<1x96x96xf32>
    %126 = vector.shape_cast %125 : vector<1x96x96xf32> to vector<96x96xf32>
    %cst_73 = arith.constant dense<0.000000e+00> : vector<16x96xf32>
    %127 = tpu.matmul %117, %126, %cst_73 {dimension_numbers = #tpu.dot_dimension_numbers<[1], [0], [0], [1], [0, 0, 1, 1], [], []>} : vector<16x96xf32>, vector<96x96xf32>, vector<16x96xf32> -> vector<16x96xf32>
    %128 = arith.addf %124, %127 : vector<16x96xf32>
    %cst_74 = arith.constant 0.000000e+00 : f32
    %129 = vector.broadcast %cst_74 : f32 to vector<16x96xf32>
    %130 = arith.maximumf %128, %129 : vector<16x96xf32>
    %131 = arith.addf %130, %40 : vector<16x96xf32>
    %c0_75 = arith.constant 0 : index
    %c0_76 = arith.constant 0 : index
    %132 = vector.load %arg7[%c0_75, %c0_76] : memref<16x8xf32, #tpu.memory_space<vmem>>, vector<16x8xf32>
    %cst_77 = arith.constant dense<0.000000e+00> : vector<16x64xf32>
    %133 = tpu.matmul %132, %86, %cst_77 {dimension_numbers = #tpu.dot_dimension_numbers<[1], [0], [0], [1], [0, 0, 1, 1], [], []>} : vector<16x8xf32>, vector<8x64xf32>, vector<16x64xf32> -> vector<16x64xf32>
    %c0_78 = arith.constant 0 : index
    %c0_79 = arith.constant 0 : index
    %134 = vector.load %arg8[%c0_78, %c0_79] : memref<64x96xf32, #tpu.memory_space<vmem>>, vector<64x96xf32>
    %cst_80 = arith.constant dense<0.000000e+00> : vector<16x96xf32>
    %135 = tpu.matmul %133, %134, %cst_80 {dimension_numbers = #tpu.dot_dimension_numbers<[1], [0], [0], [1], [0, 0, 1, 1], [], []>} : vector<16x64xf32>, vector<64x96xf32>, vector<16x96xf32> -> vector<16x96xf32>
    %cst_81 = arith.constant 0.000000e+00 : f32
    %136 = vector.broadcast %cst_81 : f32 to vector<16x96xf32>
    %137 = arith.maximumf %135, %136 : vector<16x96xf32>
    %138 = arith.addf %137, %131 : vector<16x96xf32>
    %cst_82 = arith.constant 0.000000e+00 : f32
    %139 = vector.broadcast %cst_82 : f32 to vector<1x96xf32>
    %140 = vector.extract_strided_slice %138 {offsets = [0, 0], sizes = [15, 96], strides = [1, 1]} : vector<16x96xf32> to vector<15x96xf32>
    %141 = tpu.concatenate %139, %140 in 0 : vector<1x96xf32>, vector<15x96xf32> -> vector<16x96xf32>
    %142 = vector.broadcast %20 : vector<16x1xf32> to vector<16x96xf32>
    %143 = arith.mulf %141, %142 : vector<16x96xf32>
    %144 = vector.extract_strided_slice %138 {offsets = [1, 0], sizes = [15, 96], strides = [1, 1]} : vector<16x96xf32> to vector<15x96xf32>
    %145 = tpu.concatenate %144, %139 in 0 : vector<15x96xf32>, vector<1x96xf32> -> vector<16x96xf32>
    %146 = vector.broadcast %25 : vector<16x1xf32> to vector<16x96xf32>
    %147 = arith.mulf %145, %146 : vector<16x96xf32>
    %c1_83 = arith.constant 1 : index
    %c0_84 = arith.constant 0 : index
    %c0_85 = arith.constant 0 : index
    %148 = vector.load %arg9[%c1_83, %c0_84, %c0_85] : memref<3x96x96xf32, #tpu.memory_space<vmem>>, vector<1x96x96xf32>
    %149 = vector.shape_cast %148 : vector<1x96x96xf32> to vector<96x96xf32>
    %cst_86 = arith.constant dense<0.000000e+00> : vector<16x96xf32>
    %150 = tpu.matmul %138, %149, %cst_86 {dimension_numbers = #tpu.dot_dimension_numbers<[1], [0], [0], [1], [0, 0, 1, 1], [], []>} : vector<16x96xf32>, vector<96x96xf32>, vector<16x96xf32> -> vector<16x96xf32>
    %c0_87 = arith.constant 0 : index
    %c0_88 = arith.constant 0 : index
    %c0_89 = arith.constant 0 : index
    %151 = vector.load %arg9[%c0_87, %c0_88, %c0_89] : memref<3x96x96xf32, #tpu.memory_space<vmem>>, vector<1x96x96xf32>
    %152 = vector.shape_cast %151 : vector<1x96x96xf32> to vector<96x96xf32>
    %cst_90 = arith.constant dense<0.000000e+00> : vector<16x96xf32>
    %153 = tpu.matmul %143, %152, %cst_90 {dimension_numbers = #tpu.dot_dimension_numbers<[1], [0], [0], [1], [0, 0, 1, 1], [], []>} : vector<16x96xf32>, vector<96x96xf32>, vector<16x96xf32> -> vector<16x96xf32>
    %154 = arith.addf %150, %153 : vector<16x96xf32>
    %c2_91 = arith.constant 2 : index
    %c0_92 = arith.constant 0 : index
    %c0_93 = arith.constant 0 : index
    %155 = vector.load %arg9[%c2_91, %c0_92, %c0_93] : memref<3x96x96xf32, #tpu.memory_space<vmem>>, vector<1x96x96xf32>
    %156 = vector.shape_cast %155 : vector<1x96x96xf32> to vector<96x96xf32>
    %cst_94 = arith.constant dense<0.000000e+00> : vector<16x96xf32>
    %157 = tpu.matmul %147, %156, %cst_94 {dimension_numbers = #tpu.dot_dimension_numbers<[1], [0], [0], [1], [0, 0, 1, 1], [], []>} : vector<16x96xf32>, vector<96x96xf32>, vector<16x96xf32> -> vector<16x96xf32>
    %158 = arith.addf %154, %157 : vector<16x96xf32>
    %cst_95 = arith.constant 0.000000e+00 : f32
    %159 = vector.broadcast %cst_95 : f32 to vector<16x96xf32>
    %160 = arith.maximumf %158, %159 : vector<16x96xf32>
    %cst_96 = arith.constant 0.000000e+00 : f32
    %161 = vector.broadcast %cst_96 : f32 to vector<1x96xf32>
    %162 = vector.extract_strided_slice %160 {offsets = [0, 0], sizes = [15, 96], strides = [1, 1]} : vector<16x96xf32> to vector<15x96xf32>
    %163 = tpu.concatenate %161, %162 in 0 : vector<1x96xf32>, vector<15x96xf32> -> vector<16x96xf32>
    %164 = vector.broadcast %20 : vector<16x1xf32> to vector<16x96xf32>
    %165 = arith.mulf %163, %164 : vector<16x96xf32>
    %166 = vector.extract_strided_slice %160 {offsets = [1, 0], sizes = [15, 96], strides = [1, 1]} : vector<16x96xf32> to vector<15x96xf32>
    %167 = tpu.concatenate %166, %161 in 0 : vector<15x96xf32>, vector<1x96xf32> -> vector<16x96xf32>
    %168 = vector.broadcast %25 : vector<16x1xf32> to vector<16x96xf32>
    %169 = arith.mulf %167, %168 : vector<16x96xf32>
    %c1_97 = arith.constant 1 : index
    %c0_98 = arith.constant 0 : index
    %c0_99 = arith.constant 0 : index
    %170 = vector.load %arg10[%c1_97, %c0_98, %c0_99] : memref<3x96x96xf32, #tpu.memory_space<vmem>>, vector<1x96x96xf32>
    %171 = vector.shape_cast %170 : vector<1x96x96xf32> to vector<96x96xf32>
    %cst_100 = arith.constant dense<0.000000e+00> : vector<16x96xf32>
    %172 = tpu.matmul %160, %171, %cst_100 {dimension_numbers = #tpu.dot_dimension_numbers<[1], [0], [0], [1], [0, 0, 1, 1], [], []>} : vector<16x96xf32>, vector<96x96xf32>, vector<16x96xf32> -> vector<16x96xf32>
    %c0_101 = arith.constant 0 : index
    %c0_102 = arith.constant 0 : index
    %c0_103 = arith.constant 0 : index
    %173 = vector.load %arg10[%c0_101, %c0_102, %c0_103] : memref<3x96x96xf32, #tpu.memory_space<vmem>>, vector<1x96x96xf32>
    %174 = vector.shape_cast %173 : vector<1x96x96xf32> to vector<96x96xf32>
    %cst_104 = arith.constant dense<0.000000e+00> : vector<16x96xf32>
    %175 = tpu.matmul %165, %174, %cst_104 {dimension_numbers = #tpu.dot_dimension_numbers<[1], [0], [0], [1], [0, 0, 1, 1], [], []>} : vector<16x96xf32>, vector<96x96xf32>, vector<16x96xf32> -> vector<16x96xf32>
    %176 = arith.addf %172, %175 : vector<16x96xf32>
    %c2_105 = arith.constant 2 : index
    %c0_106 = arith.constant 0 : index
    %c0_107 = arith.constant 0 : index
    %177 = vector.load %arg10[%c2_105, %c0_106, %c0_107] : memref<3x96x96xf32, #tpu.memory_space<vmem>>, vector<1x96x96xf32>
    %178 = vector.shape_cast %177 : vector<1x96x96xf32> to vector<96x96xf32>
    %cst_108 = arith.constant dense<0.000000e+00> : vector<16x96xf32>
    %179 = tpu.matmul %169, %178, %cst_108 {dimension_numbers = #tpu.dot_dimension_numbers<[1], [0], [0], [1], [0, 0, 1, 1], [], []>} : vector<16x96xf32>, vector<96x96xf32>, vector<16x96xf32> -> vector<16x96xf32>
    %180 = arith.addf %176, %179 : vector<16x96xf32>
    %cst_109 = arith.constant 0.000000e+00 : f32
    %181 = vector.broadcast %cst_109 : f32 to vector<16x96xf32>
    %182 = arith.maximumf %180, %181 : vector<16x96xf32>
    %183 = arith.addf %182, %138 : vector<16x96xf32>
    %cst_110 = arith.constant 0.000000e+00 : f32
    %184 = vector.broadcast %cst_110 : f32 to vector<1x128xf32>
    %185 = vector.extract_strided_slice %39 {offsets = [0, 0], sizes = [31, 128], strides = [1, 1]} : vector<32x128xf32> to vector<31x128xf32>
    %186 = tpu.concatenate %184, %185 in 0 : vector<1x128xf32>, vector<31x128xf32> -> vector<32x128xf32>
    %187 = vector.broadcast %7 : vector<32x1xf32> to vector<32x128xf32>
    %188 = arith.mulf %186, %187 : vector<32x128xf32>
    %189 = vector.extract_strided_slice %39 {offsets = [1, 0], sizes = [31, 128], strides = [1, 1]} : vector<32x128xf32> to vector<31x128xf32>
    %190 = tpu.concatenate %189, %184 in 0 : vector<31x128xf32>, vector<1x128xf32> -> vector<32x128xf32>
    %191 = vector.broadcast %12 : vector<32x1xf32> to vector<32x128xf32>
    %192 = arith.mulf %190, %191 : vector<32x128xf32>
    %c1_111 = arith.constant 1 : index
    %c0_112 = arith.constant 0 : index
    %c0_113 = arith.constant 0 : index
    %193 = vector.load %arg11[%c1_111, %c0_112, %c0_113] : memref<3x128x128xf32, #tpu.memory_space<vmem>>, vector<1x128x128xf32>
    %194 = vector.shape_cast %193 : vector<1x128x128xf32> to vector<128x128xf32>
    %cst_114 = arith.constant dense<0.000000e+00> : vector<32x128xf32>
    %195 = tpu.matmul %39, %194, %cst_114 {dimension_numbers = #tpu.dot_dimension_numbers<[1], [0], [0], [1], [0, 0, 1, 1], [], []>} : vector<32x128xf32>, vector<128x128xf32>, vector<32x128xf32> -> vector<32x128xf32>
    %c0_115 = arith.constant 0 : index
    %c0_116 = arith.constant 0 : index
    %c0_117 = arith.constant 0 : index
    %196 = vector.load %arg11[%c0_115, %c0_116, %c0_117] : memref<3x128x128xf32, #tpu.memory_space<vmem>>, vector<1x128x128xf32>
    %197 = vector.shape_cast %196 : vector<1x128x128xf32> to vector<128x128xf32>
    %cst_118 = arith.constant dense<0.000000e+00> : vector<32x128xf32>
    %198 = tpu.matmul %188, %197, %cst_118 {dimension_numbers = #tpu.dot_dimension_numbers<[1], [0], [0], [1], [0, 0, 1, 1], [], []>} : vector<32x128xf32>, vector<128x128xf32>, vector<32x128xf32> -> vector<32x128xf32>
    %199 = arith.addf %195, %198 : vector<32x128xf32>
    %c2_119 = arith.constant 2 : index
    %c0_120 = arith.constant 0 : index
    %c0_121 = arith.constant 0 : index
    %200 = vector.load %arg11[%c2_119, %c0_120, %c0_121] : memref<3x128x128xf32, #tpu.memory_space<vmem>>, vector<1x128x128xf32>
    %201 = vector.shape_cast %200 : vector<1x128x128xf32> to vector<128x128xf32>
    %cst_122 = arith.constant dense<0.000000e+00> : vector<32x128xf32>
    %202 = tpu.matmul %192, %201, %cst_122 {dimension_numbers = #tpu.dot_dimension_numbers<[1], [0], [0], [1], [0, 0, 1, 1], [], []>} : vector<32x128xf32>, vector<128x128xf32>, vector<32x128xf32> -> vector<32x128xf32>
    %203 = arith.addf %199, %202 : vector<32x128xf32>
    %cst_123 = arith.constant 0.000000e+00 : f32
    %204 = vector.broadcast %cst_123 : f32 to vector<32x128xf32>
    %205 = arith.maximumf %203, %204 : vector<32x128xf32>
    %cst_124 = arith.constant 0.000000e+00 : f32
    %206 = vector.broadcast %cst_124 : f32 to vector<1x128xf32>
    %207 = vector.extract_strided_slice %205 {offsets = [0, 0], sizes = [31, 128], strides = [1, 1]} : vector<32x128xf32> to vector<31x128xf32>
    %208 = tpu.concatenate %206, %207 in 0 : vector<1x128xf32>, vector<31x128xf32> -> vector<32x128xf32>
    %209 = vector.broadcast %7 : vector<32x1xf32> to vector<32x128xf32>
    %210 = arith.mulf %208, %209 : vector<32x128xf32>
    %211 = vector.extract_strided_slice %205 {offsets = [1, 0], sizes = [31, 128], strides = [1, 1]} : vector<32x128xf32> to vector<31x128xf32>
    %212 = tpu.concatenate %211, %206 in 0 : vector<31x128xf32>, vector<1x128xf32> -> vector<32x128xf32>
    %213 = vector.broadcast %12 : vector<32x1xf32> to vector<32x128xf32>
    %214 = arith.mulf %212, %213 : vector<32x128xf32>
    %c1_125 = arith.constant 1 : index
    %c0_126 = arith.constant 0 : index
    %c0_127 = arith.constant 0 : index
    %215 = vector.load %arg12[%c1_125, %c0_126, %c0_127] : memref<3x128x128xf32, #tpu.memory_space<vmem>>, vector<1x128x128xf32>
    %216 = vector.shape_cast %215 : vector<1x128x128xf32> to vector<128x128xf32>
    %cst_128 = arith.constant dense<0.000000e+00> : vector<32x128xf32>
    %217 = tpu.matmul %205, %216, %cst_128 {dimension_numbers = #tpu.dot_dimension_numbers<[1], [0], [0], [1], [0, 0, 1, 1], [], []>} : vector<32x128xf32>, vector<128x128xf32>, vector<32x128xf32> -> vector<32x128xf32>
    %c0_129 = arith.constant 0 : index
    %c0_130 = arith.constant 0 : index
    %c0_131 = arith.constant 0 : index
    %218 = vector.load %arg12[%c0_129, %c0_130, %c0_131] : memref<3x128x128xf32, #tpu.memory_space<vmem>>, vector<1x128x128xf32>
    %219 = vector.shape_cast %218 : vector<1x128x128xf32> to vector<128x128xf32>
    %cst_132 = arith.constant dense<0.000000e+00> : vector<32x128xf32>
    %220 = tpu.matmul %210, %219, %cst_132 {dimension_numbers = #tpu.dot_dimension_numbers<[1], [0], [0], [1], [0, 0, 1, 1], [], []>} : vector<32x128xf32>, vector<128x128xf32>, vector<32x128xf32> -> vector<32x128xf32>
    %221 = arith.addf %217, %220 : vector<32x128xf32>
    %c2_133 = arith.constant 2 : index
    %c0_134 = arith.constant 0 : index
    %c0_135 = arith.constant 0 : index
    %222 = vector.load %arg12[%c2_133, %c0_134, %c0_135] : memref<3x128x128xf32, #tpu.memory_space<vmem>>, vector<1x128x128xf32>
    %223 = vector.shape_cast %222 : vector<1x128x128xf32> to vector<128x128xf32>
    %cst_136 = arith.constant dense<0.000000e+00> : vector<32x128xf32>
    %224 = tpu.matmul %214, %223, %cst_136 {dimension_numbers = #tpu.dot_dimension_numbers<[1], [0], [0], [1], [0, 0, 1, 1], [], []>} : vector<32x128xf32>, vector<128x128xf32>, vector<32x128xf32> -> vector<32x128xf32>
    %225 = arith.addf %221, %224 : vector<32x128xf32>
    %cst_137 = arith.constant 0.000000e+00 : f32
    %226 = vector.broadcast %cst_137 : f32 to vector<32x128xf32>
    %227 = arith.maximumf %225, %226 : vector<32x128xf32>
    %228 = arith.addf %227, %39 : vector<32x128xf32>
    %c0_138 = arith.constant 0 : index
    %c0_139 = arith.constant 0 : index
    %229 = vector.load %arg13[%c0_138, %c0_139] : memref<32x16xf32, #tpu.memory_space<vmem>>, vector<32x16xf32>
    %cst_140 = arith.constant dense<0.000000e+00> : vector<32x96xf32>
    %230 = tpu.matmul %229, %183, %cst_140 {dimension_numbers = #tpu.dot_dimension_numbers<[1], [0], [0], [1], [0, 0, 1, 1], [], []>} : vector<32x16xf32>, vector<16x96xf32>, vector<32x96xf32> -> vector<32x96xf32>
    %c0_141 = arith.constant 0 : index
    %c0_142 = arith.constant 0 : index
    %231 = vector.load %arg14[%c0_141, %c0_142] : memref<96x128xf32, #tpu.memory_space<vmem>>, vector<96x128xf32>
    %cst_143 = arith.constant dense<0.000000e+00> : vector<32x128xf32>
    %232 = tpu.matmul %230, %231, %cst_143 {dimension_numbers = #tpu.dot_dimension_numbers<[1], [0], [0], [1], [0, 0, 1, 1], [], []>} : vector<32x96xf32>, vector<96x128xf32>, vector<32x128xf32> -> vector<32x128xf32>
    %cst_144 = arith.constant 0.000000e+00 : f32
    %233 = vector.broadcast %cst_144 : f32 to vector<32x128xf32>
    %234 = arith.maximumf %232, %233 : vector<32x128xf32>
    %235 = arith.addf %234, %228 : vector<32x128xf32>
    %cst_145 = arith.constant 0.000000e+00 : f32
    %236 = vector.broadcast %cst_145 : f32 to vector<1x128xf32>
    %237 = vector.extract_strided_slice %235 {offsets = [0, 0], sizes = [31, 128], strides = [1, 1]} : vector<32x128xf32> to vector<31x128xf32>
    %238 = tpu.concatenate %236, %237 in 0 : vector<1x128xf32>, vector<31x128xf32> -> vector<32x128xf32>
    %239 = vector.broadcast %7 : vector<32x1xf32> to vector<32x128xf32>
    %240 = arith.mulf %238, %239 : vector<32x128xf32>
    %241 = vector.extract_strided_slice %235 {offsets = [1, 0], sizes = [31, 128], strides = [1, 1]} : vector<32x128xf32> to vector<31x128xf32>
    %242 = tpu.concatenate %241, %236 in 0 : vector<31x128xf32>, vector<1x128xf32> -> vector<32x128xf32>
    %243 = vector.broadcast %12 : vector<32x1xf32> to vector<32x128xf32>
    %244 = arith.mulf %242, %243 : vector<32x128xf32>
    %c1_146 = arith.constant 1 : index
    %c0_147 = arith.constant 0 : index
    %c0_148 = arith.constant 0 : index
    %245 = vector.load %arg15[%c1_146, %c0_147, %c0_148] : memref<3x128x128xf32, #tpu.memory_space<vmem>>, vector<1x128x128xf32>
    %246 = vector.shape_cast %245 : vector<1x128x128xf32> to vector<128x128xf32>
    %cst_149 = arith.constant dense<0.000000e+00> : vector<32x128xf32>
    %247 = tpu.matmul %235, %246, %cst_149 {dimension_numbers = #tpu.dot_dimension_numbers<[1], [0], [0], [1], [0, 0, 1, 1], [], []>} : vector<32x128xf32>, vector<128x128xf32>, vector<32x128xf32> -> vector<32x128xf32>
    %c0_150 = arith.constant 0 : index
    %c0_151 = arith.constant 0 : index
    %c0_152 = arith.constant 0 : index
    %248 = vector.load %arg15[%c0_150, %c0_151, %c0_152] : memref<3x128x128xf32, #tpu.memory_space<vmem>>, vector<1x128x128xf32>
    %249 = vector.shape_cast %248 : vector<1x128x128xf32> to vector<128x128xf32>
    %cst_153 = arith.constant dense<0.000000e+00> : vector<32x128xf32>
    %250 = tpu.matmul %240, %249, %cst_153 {dimension_numbers = #tpu.dot_dimension_numbers<[1], [0], [0], [1], [0, 0, 1, 1], [], []>} : vector<32x128xf32>, vector<128x128xf32>, vector<32x128xf32> -> vector<32x128xf32>
    %251 = arith.addf %247, %250 : vector<32x128xf32>
    %c2_154 = arith.constant 2 : index
    %c0_155 = arith.constant 0 : index
    %c0_156 = arith.constant 0 : index
    %252 = vector.load %arg15[%c2_154, %c0_155, %c0_156] : memref<3x128x128xf32, #tpu.memory_space<vmem>>, vector<1x128x128xf32>
    %253 = vector.shape_cast %252 : vector<1x128x128xf32> to vector<128x128xf32>
    %cst_157 = arith.constant dense<0.000000e+00> : vector<32x128xf32>
    %254 = tpu.matmul %244, %253, %cst_157 {dimension_numbers = #tpu.dot_dimension_numbers<[1], [0], [0], [1], [0, 0, 1, 1], [], []>} : vector<32x128xf32>, vector<128x128xf32>, vector<32x128xf32> -> vector<32x128xf32>
    %255 = arith.addf %251, %254 : vector<32x128xf32>
    %cst_158 = arith.constant 0.000000e+00 : f32
    %256 = vector.broadcast %cst_158 : f32 to vector<32x128xf32>
    %257 = arith.maximumf %255, %256 : vector<32x128xf32>
    %cst_159 = arith.constant 0.000000e+00 : f32
    %258 = vector.broadcast %cst_159 : f32 to vector<1x128xf32>
    %259 = vector.extract_strided_slice %257 {offsets = [0, 0], sizes = [31, 128], strides = [1, 1]} : vector<32x128xf32> to vector<31x128xf32>
    %260 = tpu.concatenate %258, %259 in 0 : vector<1x128xf32>, vector<31x128xf32> -> vector<32x128xf32>
    %261 = vector.broadcast %7 : vector<32x1xf32> to vector<32x128xf32>
    %262 = arith.mulf %260, %261 : vector<32x128xf32>
    %263 = vector.extract_strided_slice %257 {offsets = [1, 0], sizes = [31, 128], strides = [1, 1]} : vector<32x128xf32> to vector<31x128xf32>
    %264 = tpu.concatenate %263, %258 in 0 : vector<31x128xf32>, vector<1x128xf32> -> vector<32x128xf32>
    %265 = vector.broadcast %12 : vector<32x1xf32> to vector<32x128xf32>
    %266 = arith.mulf %264, %265 : vector<32x128xf32>
    %c1_160 = arith.constant 1 : index
    %c0_161 = arith.constant 0 : index
    %c0_162 = arith.constant 0 : index
    %267 = vector.load %arg16[%c1_160, %c0_161, %c0_162] : memref<3x128x128xf32, #tpu.memory_space<vmem>>, vector<1x128x128xf32>
    %268 = vector.shape_cast %267 : vector<1x128x128xf32> to vector<128x128xf32>
    %cst_163 = arith.constant dense<0.000000e+00> : vector<32x128xf32>
    %269 = tpu.matmul %257, %268, %cst_163 {dimension_numbers = #tpu.dot_dimension_numbers<[1], [0], [0], [1], [0, 0, 1, 1], [], []>} : vector<32x128xf32>, vector<128x128xf32>, vector<32x128xf32> -> vector<32x128xf32>
    %c0_164 = arith.constant 0 : index
    %c0_165 = arith.constant 0 : index
    %c0_166 = arith.constant 0 : index
    %270 = vector.load %arg16[%c0_164, %c0_165, %c0_166] : memref<3x128x128xf32, #tpu.memory_space<vmem>>, vector<1x128x128xf32>
    %271 = vector.shape_cast %270 : vector<1x128x128xf32> to vector<128x128xf32>
    %cst_167 = arith.constant dense<0.000000e+00> : vector<32x128xf32>
    %272 = tpu.matmul %262, %271, %cst_167 {dimension_numbers = #tpu.dot_dimension_numbers<[1], [0], [0], [1], [0, 0, 1, 1], [], []>} : vector<32x128xf32>, vector<128x128xf32>, vector<32x128xf32> -> vector<32x128xf32>
    %273 = arith.addf %269, %272 : vector<32x128xf32>
    %c2_168 = arith.constant 2 : index
    %c0_169 = arith.constant 0 : index
    %c0_170 = arith.constant 0 : index
    %274 = vector.load %arg16[%c2_168, %c0_169, %c0_170] : memref<3x128x128xf32, #tpu.memory_space<vmem>>, vector<1x128x128xf32>
    %275 = vector.shape_cast %274 : vector<1x128x128xf32> to vector<128x128xf32>
    %cst_171 = arith.constant dense<0.000000e+00> : vector<32x128xf32>
    %276 = tpu.matmul %266, %275, %cst_171 {dimension_numbers = #tpu.dot_dimension_numbers<[1], [0], [0], [1], [0, 0, 1, 1], [], []>} : vector<32x128xf32>, vector<128x128xf32>, vector<32x128xf32> -> vector<32x128xf32>
    %277 = arith.addf %273, %276 : vector<32x128xf32>
    %cst_172 = arith.constant 0.000000e+00 : f32
    %278 = vector.broadcast %cst_172 : f32 to vector<32x128xf32>
    %279 = arith.maximumf %277, %278 : vector<32x128xf32>
    %280 = arith.addf %279, %235 : vector<32x128xf32>
    %c0_173 = arith.constant 0 : index
    %c0_174 = arith.constant 0 : index
    %281 = vector.load %arg17[%c0_173, %c0_174] : memref<32x128xf32, #tpu.memory_space<vmem>>, vector<32x128xf32>
    tpu.vector_store %arg17[%c0_173, %c0_174], %280 {strides = array<i32>} : memref<32x128xf32, #tpu.memory_space<vmem>>, vector<32x128xf32>,
    %c0_175 = arith.constant 0 : index
    %c0_176 = arith.constant 0 : index
    %282 = vector.load %arg18[%c0_175, %c0_176] : memref<16x96xf32, #tpu.memory_space<vmem>>, vector<16x96xf32>
    tpu.vector_store %arg18[%c0_175, %c0_176], %183 {strides = array<i32>} : memref<16x96xf32, #tpu.memory_space<vmem>>, vector<16x96xf32>,
    %c0_177 = arith.constant 0 : index
    %c0_178 = arith.constant 0 : index
    %283 = vector.load %arg19[%c0_177, %c0_178] : memref<8x64xf32, #tpu.memory_space<vmem>>, vector<8x64xf32>
    tpu.vector_store %arg19[%c0_177, %c0_178], %86 {strides = array<i32>} : memref<8x64xf32, #tpu.memory_space<vmem>>, vector<8x64xf32>,
    return
  }
}

</mosaic_0001>

<llo_original>
// kernel: decoder_forward.1
$region0: #{decoder_forward.1}
  #allocation0 [shape = 'u32[]', space=smem, size = 0x4, offset = 0x4, fixed_abs, tag = 'smem constant byte address 0x4 - core index']
  #allocation1 [shape = 'u32[144,128]{1,0:T(1,128)}', space=vmem, size = 0x12000, scoped, tag = 'internal scratch']
  %s0 = inlined_call_operand.vmem [shape: f32[32,128], index: 0, kind: input, shape index: {}]
  %s1 = inlined_call_operand.vmem [shape: f32[16,96], index: 1, kind: input, shape index: {}]
  %s2 = inlined_call_operand.vmem [shape: f32[8,64], index: 2, kind: input, shape index: {}]
  %s3 = inlined_call_operand.vmem [shape: f32[3,64,64], index: 3, kind: input, shape index: {}]
  %s4 = inlined_call_operand.hbm [shape: f32[3,64,64], index: 4, kind: input, shape index: {}]
  %s5 = inlined_call_operand.hbm [shape: f32[3,96,96], index: 5, kind: input, shape index: {}]
  %s6 = inlined_call_operand.hbm [shape: f32[3,96,96], index: 6, kind: input, shape index: {}]
  %s7 = inlined_call_operand.vmem [shape: f32[16,8], index: 7, kind: input, shape index: {}]
  %s8 = inlined_call_operand.hbm [shape: f32[64,96], index: 8, kind: input, shape index: {}]
  %s9 = inlined_call_operand.hbm [shape: f32[3,96,96], index: 9, kind: input, shape index: {}]
  %s10 = inlined_call_operand.hbm [shape: f32[3,96,96], index: 10, kind: input, shape index: {}]
  %s11 = inlined_call_operand.vmem [shape: f32[3,128,128], index: 11, kind: input, shape index: {}]
  %s12 = inlined_call_operand.vmem [shape: f32[3,128,128], index: 12, kind: input, shape index: {}]
  %s13 = inlined_call_operand.vmem [shape: f32[32,16], index: 13, kind: input, shape index: {}]
  %s14 = inlined_call_operand.hbm [shape: f32[96,128], index: 14, kind: input, shape index: {}]
  %s15 = inlined_call_operand.vmem [shape: f32[3,128,128], index: 15, kind: input, shape index: {}]
  %s16 = inlined_call_operand.hbm [shape: f32[3,128,128], index: 16, kind: input, shape index: {}]
  %s17 = inlined_call_operand.vmem [shape: f32[32,128], index: 17, kind: output, shape index: {0}]
  %s18 = inlined_call_operand.vmem [shape: f32[16,96], index: 18, kind: output, shape index: {1}]
  %s19 = inlined_call_operand.vmem [shape: f32[8,64], index: 19, kind: output, shape index: {2}]
  %20 = xla_tuple %s17, %s18, %s19
  %s21 = sld [smem:[#allocation0]]
  $region126: #{decoder_forward.1} parent=0
    _
  %s23 = ssub.s32 1, %s21
  %s24 = scalar_select 0, %s23, %s21
  $region1: #{decoder_forward.1} parent=0
    #allocation2 [shape = 'u8[98304]{0}', space=vmem, size = 0x18000, scoped, tag = 'input window, operand 4, single buffered']
    #allocation3 [shape = 's32[1]{0}', space=sflag, size = 0x4, scoped, tag = 'scoped memory for decoder_forward.1']
    #allocation4 [shape = 'u8[147456]{0}', space=vmem, size = 0x24000, scoped, tag = 'input window, operand 5, single buffered']
    #allocation5 [shape = 's32[1]{0}', space=sflag, size = 0x4, scoped, tag = 'scoped memory for decoder_forward.1']
    #allocation6 [shape = 'u8[147456]{0}', space=vmem, size = 0x24000, scoped, tag = 'input window, operand 6, single buffered']
    #allocation7 [shape = 'u8[32768]{0}', space=vmem, size = 0x8000, scoped, tag = 'input window, operand 8, single buffered']
    #allocation8 [shape = 's32[1]{0}', space=sflag, size = 0x4, scoped, tag = 'scoped memory for decoder_forward.1']
    #allocation9 [shape = 'u8[147456]{0}', space=vmem, size = 0x24000, scoped, tag = 'input window, operand 9, single buffered']
    #allocation10 [shape = 'u8[147456]{0}', space=vmem, size = 0x24000, scoped, tag = 'input window, operand 10, single buffered']
    #allocation11 [shape = 's32[1]{0}', space=sflag, size = 0x4, scoped, tag = 'scoped memory for decoder_forward.1']
    #allocation12 [shape = 'u8[49152]{0}', space=vmem, size = 0xc000, scoped, tag = 'input window, operand 14, single buffered']
    #allocation13 [shape = 'u8[196608]{0}', space=vmem, size = 0x30000, scoped, tag = 'input window, operand 16, single buffered']
    #allocation14 [shape = 's32[1]{0}', space=sflag, size = 0x4, scoped, tag = 'scoped memory for decoder_forward.1']
    %25 = vsyncpa [#allocation3], 0
    %26 = vsyncpa [#allocation5], 0
    %27 = vsyncpa [#allocation8], 0
    %28 = vsyncpa [#allocation11], 0
    %29 = vsyncpa [#allocation14], 0
    // Predicated region
    $region2: #{decoder_forward.1} parent=1 // pred_check
      _
    $region3: #{decoder_forward.1} parent=1 // pred_check_branch
      %31 = sbr.rel (0) target = $region5
    $region4: #{decoder_forward.1} parent=1 // pred_region
      _
    $region5: #{decoder_forward.1} parent=1 // pred_fallthru
      _
    // Predicated region
    $region6: #{decoder_forward.1} parent=1 // pred_check
      _
    $region7: #{decoder_forward.1} parent=1 // pred_check_branch
      %33 = sbr.rel (0) target = $region9
    $region8: #{decoder_forward.1} parent=1 // pred_region
      _
    $region9: #{decoder_forward.1} parent=1 // pred_fallthru
      _
    // Predicated region
    $region10: #{decoder_forward.1} parent=1 // pred_check
      _
    $region11: #{decoder_forward.1} parent=1 // pred_check_branch
      %35 = sbr.rel (0) target = $region13
    $region12: #{decoder_forward.1} parent=1 // pred_region
      _
    $region13: #{decoder_forward.1} parent=1 // pred_fallthru
      _
    // Predicated region
    $region14: #{decoder_forward.1} parent=1 // pred_check
      _
    $region15: #{decoder_forward.1} parent=1 // pred_check_branch
      %37 = sbr.rel (0) target = $region17
    $region16: #{decoder_forward.1} parent=1 // pred_region
      _
    $region17: #{decoder_forward.1} parent=1 // pred_fallthru
      _
    // Predicated region
    $region18: #{decoder_forward.1} parent=1 // pred_check
      _
    $region19: #{decoder_forward.1} parent=1 // pred_check_branch
      %39 = sbr.rel (0) target = $region21
    $region20: #{decoder_forward.1} parent=1 // pred_region
      %s41 = ssub.s32 3072, 3072
      %42 = vsyncadd [#allocation3], %s41
      %s43 = sshll.u32 [#allocation2], 4
      %s44 = int_to_ptr.vmem [resolvable:$true] %s43
      %49 = dma.hbm_to_vmem [thread:$0]  %s4, 3072, %s44, [#allocation3], 128, 128, 8
    $region21: #{decoder_forward.1} parent=1 // pred_fallthru
      _
    // Predicated region
    $region22: #{decoder_forward.1} parent=1 // pred_check
      _
    $region23: #{decoder_forward.1} parent=1 // pred_check_branch
      %51 = sbr.rel (0) target = $region25
    $region24: #{decoder_forward.1} parent=1 // pred_region
      %s53 = ssub.s32 4608, 4608
      %54 = vsyncadd [#allocation5], %s53
      %s55 = sshll.u32 [#allocation4], 4
      %s56 = int_to_ptr.vmem [resolvable:$true] %s55
      %61 = dma.hbm_to_vmem [thread:$0]  %s5, 4608, %s56, [#allocation5], 128, 128, 8
    $region25: #{decoder_forward.1} parent=1 // pred_fallthru
      _
    // Predicated region
    $region26: #{decoder_forward.1} parent=1 // pred_check
      _
    $region27: #{decoder_forward.1} parent=1 // pred_check_branch
      %63 = sbr.rel (0) target = $region29
    $region28: #{decoder_forward.1} parent=1 // pred_region
      %s65 = ssub.s32 4608, 4608
      %66 = vsyncadd [#allocation5], %s65
      %s67 = sshll.u32 [#allocation6], 4
      %s68 = int_to_ptr.vmem [resolvable:$true] %s67
      %73 = dma.hbm_to_vmem [thread:$0]  %s6, 4608, %s68, [#allocation5], 128, 128, 8
    $region29: #{decoder_forward.1} parent=1 // pred_fallthru
      _
    // Predicated region
    $region30: #{decoder_forward.1} parent=1 // pred_check
      _
    $region31: #{decoder_forward.1} parent=1 // pred_check_branch
      %75 = sbr.rel (0) target = $region33
    $region32: #{decoder_forward.1} parent=1 // pred_region
      _
    $region33: #{decoder_forward.1} parent=1 // pred_fallthru
      _
    // Predicated region
    $region34: #{decoder_forward.1} parent=1 // pred_check
      _
    $region35: #{decoder_forward.1} parent=1 // pred_check_branch
      %77 = sbr.rel (0) target = $region37
    $region36: #{decoder_forward.1} parent=1 // pred_region
      %s79 = ssub.s32 1024, 1024
      %80 = vsyncadd [#allocation8], %s79
      %s81 = sshll.u32 [#allocation7], 4
      %s82 = int_to_ptr.vmem [resolvable:$true] %s81
      %87 = dma.hbm_to_vmem [thread:$0]  %s8, 1024, %s82, [#allocation8], 128, 128, 8
    $region37: #{decoder_forward.1} parent=1 // pred_fallthru
      _
    // Predicated region
    $region38: #{decoder_forward.1} parent=1 // pred_check
      _
    $region39: #{decoder_forward.1} parent=1 // pred_check_branch
      %89 = sbr.rel (0) target = $region41
    $region40: #{decoder_forward.1} parent=1 // pred_region
      %s91 = ssub.s32 4608, 4608
      %92 = vsyncadd [#allocation8], %s91
      %s93 = sshll.u32 [#allocation9], 4
      %s94 = int_to_ptr.vmem [resolvable:$true] %s93
      %99 = dma.hbm_to_vmem [thread:$0]  %s9, 4608, %s94, [#allocation8], 128, 128, 8
    $region41: #{decoder_forward.1} parent=1 // pred_fallthru
      _
    // Predicated region
    $region42: #{decoder_forward.1} parent=1 // pred_check
      _
    $region43: #{decoder_forward.1} parent=1 // pred_check_branch
      %101 = sbr.rel (0) target = $region45
    $region44: #{decoder_forward.1} parent=1 // pred_region
      %s103 = ssub.s32 4608, 4608
      %104 = vsyncadd [#allocation11], %s103
      %s105 = sshll.u32 [#allocation10], 4
      %s106 = int_to_ptr.vmem [resolvable:$true] %s105
      %111 = dma.hbm_to_vmem [thread:$0]  %s10, 4608, %s106, [#allocation11], 128, 128, 8
    $region45: #{decoder_forward.1} parent=1 // pred_fallthru
      _
    // Predicated region
    $region46: #{decoder_forward.1} parent=1 // pred_check
      _
    $region47: #{decoder_forward.1} parent=1 // pred_check_branch
      %113 = sbr.rel (0) target = $region49
    $region48: #{decoder_forward.1} parent=1 // pred_region
      _
    $region49: #{decoder_forward.1} parent=1 // pred_fallthru
      _
    // Predicated region
    $region50: #{decoder_forward.1} parent=1 // pred_check
      _
    $region51: #{decoder_forward.1} parent=1 // pred_check_branch
      %115 = sbr.rel (0) target = $region53
    $region52: #{decoder_forward.1} parent=1 // pred_region
      _
    $region53: #{decoder_forward.1} parent=1 // pred_fallthru
      _
    // Predicated region
    $region54: #{decoder_forward.1} parent=1 // pred_check
      _
    $region55: #{decoder_forward.1} parent=1 // pred_check_branch
      %117 = sbr.rel (0) target = $region57
    $region56: #{decoder_forward.1} parent=1 // pred_region
      _
    $region57: #{decoder_forward.1} parent=1 // pred_fallthru
      _
    // Predicated region
    $region58: #{decoder_forward.1} parent=1 // pred_check
      _
    $region59: #{decoder_forward.1} parent=1 // pred_check_branch
      %119 = sbr.rel (0) target = $region61
    $region60: #{decoder_forward.1} parent=1 // pred_region
      %s121 = ssub.s32 1536, 1536
      %122 = vsyncadd [#allocation11], %s121
      %s123 = sshll.u32 [#allocation12], 4
      %s124 = int_to_ptr.vmem [resolvable:$true] %s123
      %129 = dma.hbm_to_vmem [thread:$0]  %s14, 1536, %s124, [#allocation11], 128, 128, 8
    $region61: #{decoder_forward.1} parent=1 // pred_fallthru
      _
    // Predicated region
    $region62: #{decoder_forward.1} parent=1 // pred_check
      _
    $region63: #{decoder_forward.1} parent=1 // pred_check_branch
      %131 = sbr.rel (0) target = $region65
    $region64: #{decoder_forward.1} parent=1 // pred_region
      _
    $region65: #{decoder_forward.1} parent=1 // pred_fallthru
      _
    // Predicated region
    $region66: #{decoder_forward.1} parent=1 // pred_check
      _
    $region67: #{decoder_forward.1} parent=1 // pred_check_branch
      %133 = sbr.rel (0) target = $region69
    $region68: #{decoder_forward.1} parent=1 // pred_region
      %s135 = ssub.s32 6144, 6144
      %136 = vsyncadd [#allocation14], %s135
      %s137 = sshll.u32 [#allocation13], 4
      %s138 = int_to_ptr.vmem [resolvable:$true] %s137
      %143 = dma.hbm_to_vmem [thread:$0]  %s16, 6144, %s138, [#allocation14], 128, 128, 8
    $region69: #{decoder_forward.1} parent=1 // pred_fallthru
      _
    // Predicated region
    $region70: #{decoder_forward.1} parent=1 // pred_check
      _
    $region71: #{decoder_forward.1} parent=1 // pred_check_branch
      %145 = sbr.rel (0) target = $region73
    $region72: #{decoder_forward.1} parent=1 // pred_region
      %146 = dma.done [#allocation3], 3072
    $region73: #{decoder_forward.1} parent=1 // pred_fallthru
      _
    // Predicated region
    $region74: #{decoder_forward.1} parent=1 // pred_check
      _
    $region75: #{decoder_forward.1} parent=1 // pred_check_branch
      %148 = sbr.rel (0) target = $region77
    $region76: #{decoder_forward.1} parent=1 // pred_region
      %149 = dma.done [#allocation5], 4608
    $region77: #{decoder_forward.1} parent=1 // pred_fallthru
      _
    // Predicated region
    $region78: #{decoder_forward.1} parent=1 // pred_check
      _
    $region79: #{decoder_forward.1} parent=1 // pred_check_branch
      %151 = sbr.rel (0) target = $region81
    $region80: #{decoder_forward.1} parent=1 // pred_region
      %152 = dma.done [#allocation5], 4608
    $region81: #{decoder_forward.1} parent=1 // pred_fallthru
      _
    // Predicated region
    $region82: #{decoder_forward.1} parent=1 // pred_check
      _
    $region83: #{decoder_forward.1} parent=1 // pred_check_branch
      %154 = sbr.rel (0) target = $region85
    $region84: #{decoder_forward.1} parent=1 // pred_region
      %155 = dma.done [#allocation8], 1024
    $region85: #{decoder_forward.1} parent=1 // pred_fallthru
      _
    // Predicated region
    $region86: #{decoder_forward.1} parent=1 // pred_check
      _
    $region87: #{decoder_forward.1} parent=1 // pred_check_branch
      %157 = sbr.rel (0) target = $region89
    $region88: #{decoder_forward.1} parent=1 // pred_region
      %158 = dma.done [#allocation8], 4608
    $region89: #{decoder_forward.1} parent=1 // pred_fallthru
      _
    // Predicated region
    $region90: #{decoder_forward.1} parent=1 // pred_check
      _
    $region91: #{decoder_forward.1} parent=1 // pred_check_branch
      %160 = sbr.rel (0) target = $region93
    $region92: #{decoder_forward.1} parent=1 // pred_region
      %161 = dma.done [#allocation11], 4608
    $region93: #{decoder_forward.1} parent=1 // pred_fallthru
      _
    // Predicated region
    $region94: #{decoder_forward.1} parent=1 // pred_check
      _
    $region95: #{decoder_forward.1} parent=1 // pred_check_branch
      %163 = sbr.rel (0) target = $region97
    $region96: #{decoder_forward.1} parent=1 // pred_region
      %164 = dma.done [#allocation11], 1536
    $region97: #{decoder_forward.1} parent=1 // pred_fallthru
      _
    // Predicated region
    $region98: #{decoder_forward.1} parent=1 // pred_check
      _
    $region99: #{decoder_forward.1} parent=1 // pred_check_branch
      %166 = sbr.rel (0) target = $region101
    $region100: #{decoder_forward.1} parent=1 // pred_region
      %167 = dma.done [#allocation14], 6144
    $region101: #{decoder_forward.1} parent=1 // pred_fallthru
      _
    %v168 = vlaneseq
    %v169 = vshrl.u32 %v168, 7
    %v170 = vadd.s32 %v169, 8
    %v171 = vadd.s32 %v169, 16
    %v172 = vadd.s32 %v169, 24
    %v173 = vand.u32 %v169, 15
    %v174 = vand.u32 %v170, 15
    %v175 = vand.u32 %v171, 15
    %v176 = vand.u32 %v172, 15
    %vm177 = vcmp.ne.s32.totalorder %v173, 0
    %vm178 = vcmp.ne.s32.totalorder %v174, 0
    %vm179 = vcmp.ne.s32.totalorder %v175, 0
    %vm180 = vcmp.ne.s32.totalorder %v176, 0
    %v181 = vsel %vm177, 1.0, 0.0
    %v182 = vsel %vm178, 1.0, 0.0
    %v183 = vsel %vm179, 1.0, 0.0
    %v184 = vsel %vm180, 1.0, 0.0
    %vm185 = vcmp.ne.s32.totalorder %v173, 15
    %vm186 = vcmp.ne.s32.totalorder %v174, 15
    %vm187 = vcmp.ne.s32.totalorder %v175, 15
    %vm188 = vcmp.ne.s32.totalorder %v176, 15
    %v189 = vsel %vm185, 1.0, 0.0
    %v190 = vsel %vm186, 1.0, 0.0
    %v191 = vsel %vm187, 1.0, 0.0
    %v192 = vsel %vm188, 1.0, 0.0
    %v193 = vand.u32 %v169, 7
    %v194 = vand.u32 %v170, 7
    %vm195 = vcmp.ne.s32.totalorder %v193, 0
    %vm196 = vcmp.ne.s32.totalorder %v194, 0
    %v197 = vsel %vm195, 1.0, 0.0
    %v198 = vsel %vm196, 1.0, 0.0
    %vm199 = vcmp.ne.s32.totalorder %v193, 7
    %vm200 = vcmp.ne.s32.totalorder %v194, 7
    %v201 = vsel %vm199, 1.0, 0.0
    %v202 = vsel %vm200, 1.0, 0.0
    %v203 = vand.u32 %v169, 3
    %vm204 = vcmp.ne.s32.totalorder %v203, 0
    %v205 = vsel %vm204, 1.0, 0.0
    %vm206 = vcmp.ne.s32.totalorder %v203, 3
    %v207 = vsel %vm206, 1.0, 0.0
    %v208 = vld [vmem:[%s0] sm:$0xff]
    %v209 = vld [vmem:[%s0 + $0x8] sm:$0xff]
    %v210 = vld [vmem:[%s0 + $0x10] sm:$0xff]
    %v211 = vld [vmem:[%s0 + $0x18] sm:$0xff]
    %v212 = vld [vmem:[%s1] sm:$0xff]
    %v213 = vld [vmem:[%s1 + $0x8] sm:$0xff]
    %v214 = vld [vmem:[%s2] sm:$0xff]
    %v216 = vrot.slane %v214, 7
    %vm218 = vcmask 1040384
    %v219 = vsel %vm218, 0.0, %v216
    %v220 = vmul.f32 %v219, %v205
    %v221 = vrot.slane %v214, 1
    %vm223 = vcmask 1046528
    %v224 = vsel %vm223, %v221, 0.0
    %v225 = vmul.f32 %v224, %v207
    %s226 = scalar_lea.vmem %s3, 64
    %v227 = vld [vmem:[%s226] sm:$0xff]
    %v228 = vld [vmem:[%s226 + $0x8] sm:$0xff]
    %v229 = vld [vmem:[%s226 + $0x10] sm:$0xff]
    %v230 = vld [vmem:[%s226 + $0x18] sm:$0xff]
    %v231 = vld [vmem:[%s226 + $0x20] sm:$0xff]
    %v232 = vld [vmem:[%s226 + $0x28] sm:$0xff]
    %v233 = vld [vmem:[%s226 + $0x30] sm:$0xff]
    %v234 = vld [vmem:[%s226 + $0x38] sm:$0xff]
    %v235 = vld [vmem:[%s3] sm:$0xff]
    %v236 = vld [vmem:[%s3 + $0x8] sm:$0xff]
    %v237 = vld [vmem:[%s3 + $0x10] sm:$0xff]
    %v238 = vld [vmem:[%s3 + $0x18] sm:$0xff]
    %v239 = vld [vmem:[%s3 + $0x20] sm:$0xff]
    %v240 = vld [vmem:[%s3 + $0x28] sm:$0xff]
    %v241 = vld [vmem:[%s3 + $0x30] sm:$0xff]
    %v242 = vld [vmem:[%s3 + $0x38] sm:$0xff]
    %vm243 = vcmask 523264
    %v245 = vsel %vm243, %v220, 0
    %247 = vmatprep.subr.mxu0 0.0
    %248 = vmatpush1.msra.mxu0 %v235
    %249 = vmatprep.subr.mxu0 0.0
    %250 = vmatpush1.msra.mxu0 %v236
    %251 = vmatprep.subr.mxu0 0.0
    %252 = vmatpush1.msra.mxu0 %v237
    %253 = vmatprep.subr.mxu0 0.0
    %254 = vmatpush1.msra.mxu0 %v238
    %255 = vmatprep.subr.mxu0 0.0
    %256 = vmatpush1.msra.mxu0 %v239
    %257 = vmatprep.subr.mxu0 0.0
    %258 = vmatpush1.msra.mxu0 %v240
    %259 = vmatprep.subr.mxu0 0.0
    %260 = vmatpush1.msra.mxu0 %v241
    %261 = vmatprep.subr.mxu0 0.0
    %262 = vmatpush1.msra.mxu0 %v242
    %263 = vmatprep.subr.mxu0 0.0
    %264 = vmatpush1.msra.mxu0 0.0
    %265 = vmatprep.subr.mxu0 0.0
    %266 = vmatpush1.msra.mxu0 0.0
    %267 = vmatprep.subr.mxu0 0.0
    %268 = vmatpush1.msra.mxu0 0.0
    %269 = vmatprep.subr.mxu0 0.0
    %270 = vmatpush1.msra.mxu0 0.0
    %271 = vmatprep.subr.mxu0 0.0
    %272 = vmatpush1.msra.mxu0 0.0
    %273 = vmatprep.subr.mxu0 0.0
    %274 = vmatpush1.msra.mxu0 0.0
    %275 = vmatprep.subr.mxu0 0.0
    %276 = vmatpush1.msra.mxu0 0.0
    %277 = vmatprep.subr.mxu0 0.0
    %278 = vmatpush1.msra.mxu0 0.0
    %279 = vmatprep.subr.mxu0 0.0
    %280 = vmatpush1.msra.mxu0 0.0
    %281 = vmatprep.subr.mxu0 0.0
    %282 = vmatpush1.msra.mxu0 0.0
    %283 = vmatprep.subr.mxu0 0.0
    %284 = vmatpush1.msra.mxu0 0.0
    %285 = vmatprep.subr.mxu0 0.0
    %286 = vmatpush1.msra.mxu0 0.0
    %287 = vmatprep.subr.mxu0 0.0
    %288 = vmatpush1.msra.mxu0 0.0
    %289 = vmatprep.subr.mxu0 0.0
    %290 = vmatpush1.msra.mxu0 0.0
    %291 = vmatprep.subr.mxu0 0.0
    %292 = vmatpush1.msra.mxu0 0.0
    %293 = vmatprep.subr.mxu0 0.0
    %294 = vmatpush1.msra.mxu0 0.0
    %295 = vmatprep.subr.mxu0 0.0
    %296 = vmatpush1.msra.mxu0 0.0
    %297 = vmatprep.subr.mxu0 0.0
    %298 = vmatpush1.msra.mxu0 0.0
    %299 = vmatprep.subr.mxu0 0.0
    %300 = vmatpush1.msra.mxu0 0.0
    %301 = vmatprep.subr.mxu0 0.0
    %302 = vmatpush1.msra.mxu0 0.0
    %303 = vmatprep.subr.mxu0 0.0
    %304 = vmatpush1.msra.mxu0 0.0
    %305 = vmatprep.subr.mxu0 0.0
    %306 = vmatpush1.msra.mxu0 0.0
    %307 = vmatprep.subr.mxu0 0.0
    %308 = vmatpush1.msra.mxu0 0.0
    %309 = vmatprep.subr.mxu0 0.0
    %310 = vmatpush1.msra.mxu0 0.0
    %311 = vmatprep.mubr.f32.mxu0 0.0
    %312 = vmatmul.mubr.f32.gmra.mrb[0].mxu0 %v245
    %v313 = vpop.f32.mrb[0].mxu0
    %v314 = vadd.f32 0.0, %v313
    %v315 = vpop.f32.mrb[0].mxu0
    %316 = vdwg.mxu0
    %v317 = vsel %vm243, %v214, 0
    %319 = vmatprep.subr.mxu0 0.0
    %320 = vmatpush1.msra.mxu0 %v227
    %321 = vmatprep.subr.mxu0 0.0
    %322 = vmatpush1.msra.mxu0 %v228
    %323 = vmatprep.subr.mxu0 0.0
    %324 = vmatpush1.msra.mxu0 %v229
    %325 = vmatprep.subr.mxu0 0.0
    %326 = vmatpush1.msra.mxu0 %v230
    %327 = vmatprep.subr.mxu0 0.0
    %328 = vmatpush1.msra.mxu0 %v231
    %329 = vmatprep.subr.mxu0 0.0
    %330 = vmatpush1.msra.mxu0 %v232
    %331 = vmatprep.subr.mxu0 0.0
    %332 = vmatpush1.msra.mxu0 %v233
    %333 = vmatprep.subr.mxu0 0.0
    %334 = vmatpush1.msra.mxu0 %v234
    %335 = vmatprep.subr.mxu0 0.0
    %336 = vmatpush1.msra.mxu0 0.0
    %337 = vmatprep.subr.mxu0 0.0
    %338 = vmatpush1.msra.mxu0 0.0
    %339 = vmatprep.subr.mxu0 0.0
    %340 = vmatpush1.msra.mxu0 0.0
    %341 = vmatprep.subr.mxu0 0.0
    %342 = vmatpush1.msra.mxu0 0.0
    %343 = vmatprep.subr.mxu0 0.0
    %344 = vmatpush1.msra.mxu0 0.0
    %345 = vmatprep.subr.mxu0 0.0
    %346 = vmatpush1.msra.mxu0 0.0
    %347 = vmatprep.subr.mxu0 0.0
    %348 = vmatpush1.msra.mxu0 0.0
    %349 = vmatprep.subr.mxu0 0.0
    %350 = vmatpush1.msra.mxu0 0.0
    %351 = vmatprep.subr.mxu0 0.0
    %352 = vmatpush1.msra.mxu0 0.0
    %353 = vmatprep.subr.mxu0 0.0
    %354 = vmatpush1.msra.mxu0 0.0
    %355 = vmatprep.subr.mxu0 0.0
    %356 = vmatpush1.msra.mxu0 0.0
    %357 = vmatprep.subr.mxu0 0.0
    %358 = vmatpush1.msra.mxu0 0.0
    %359 = vmatprep.subr.mxu0 0.0
    %360 = vmatpush1.msra.mxu0 0.0
    %361 = vmatprep.subr.mxu0 0.0
    %362 = vmatpush1.msra.mxu0 0.0
    %363 = vmatprep.subr.mxu0 0.0
    %364 = vmatpush1.msra.mxu0 0.0
    %365 = vmatprep.subr.mxu0 0.0
    %366 = vmatpush1.msra.mxu0 0.0
    %367 = vmatprep.subr.mxu0 0.0
    %368 = vmatpush1.msra.mxu0 0.0
    %369 = vmatprep.subr.mxu0 0.0
    %370 = vmatpush1.msra.mxu0 0.0
    %371 = vmatprep.subr.mxu0 0.0
    %372 = vmatpush1.msra.mxu0 0.0
    %373 = vmatprep.subr.mxu0 0.0
    %374 = vmatpush1.msra.mxu0 0.0
    %375 = vmatprep.subr.mxu0 0.0
    %376 = vmatpush1.msra.mxu0 0.0
    %377 = vmatprep.subr.mxu0 0.0
    %378 = vmatpush1.msra.mxu0 0.0
    %379 = vmatprep.subr.mxu0 0.0
    %380 = vmatpush1.msra.mxu0 0.0
    %381 = vmatprep.subr.mxu0 0.0
    %382 = vmatpush1.msra.mxu0 0.0
    %383 = vmatprep.mubr.f32.mxu0 0.0
    %384 = vmatmul.mubr.f32.gmra.mrb[0].mxu0 %v317
    %v385 = vpop.f32.mrb[0].mxu0
    %v386 = vadd.f32 %v314, %v385
    %v387 = vpop.f32.mrb[0].mxu0
    %388 = vdwg.mxu0
    %s389 = scalar_lea.vmem %s3, 128
    %v390 = vld [vmem:[%s389] sm:$0xff]
    %v391 = vld [vmem:[%s389 + $0x8] sm:$0xff]
    %v392 = vld [vmem:[%s389 + $0x10] sm:$0xff]
    %v393 = vld [vmem:[%s389 + $0x18] sm:$0xff]
    %v394 = vld [vmem:[%s389 + $0x20] sm:$0xff]
    %v395 = vld [vmem:[%s389 + $0x28] sm:$0xff]
    %v396 = vld [vmem:[%s389 + $0x30] sm:$0xff]
    %v397 = vld [vmem:[%s389 + $0x38] sm:$0xff]
    %v399 = vsel %vm243, %v225, 0
    %401 = vmatprep.subr.mxu0 0.0
    %402 = vmatpush1.msra.mxu0 %v390
    %403 = vmatprep.subr.mxu0 0.0
    %404 = vmatpush1.msra.mxu0 %v391
    %405 = vmatprep.subr.mxu0 0.0
    %406 = vmatpush1.msra.mxu0 %v392
    %407 = vmatprep.subr.mxu0 0.0
    %408 = vmatpush1.msra.mxu0 %v393
    %409 = vmatprep.subr.mxu0 0.0
    %410 = vmatpush1.msra.mxu0 %v394
    %411 = vmatprep.subr.mxu0 0.0
    %412 = vmatpush1.msra.mxu0 %v395
    %413 = vmatprep.subr.mxu0 0.0
    %414 = vmatpush1.msra.mxu0 %v396
    %415 = vmatprep.subr.mxu0 0.0
    %416 = vmatpush1.msra.mxu0 %v397
    %417 = vmatprep.subr.mxu0 0.0
    %418 = vmatpush1.msra.mxu0 0.0
    %419 = vmatprep.subr.mxu0 0.0
    %420 = vmatpush1.msra.mxu0 0.0
    %421 = vmatprep.subr.mxu0 0.0
    %422 = vmatpush1.msra.mxu0 0.0
    %423 = vmatprep.subr.mxu0 0.0
    %424 = vmatpush1.msra.mxu0 0.0
    %425 = vmatprep.subr.mxu0 0.0
    %426 = vmatpush1.msra.mxu0 0.0
    %427 = vmatprep.subr.mxu0 0.0
    %428 = vmatpush1.msra.mxu0 0.0
    %429 = vmatprep.subr.mxu0 0.0
    %430 = vmatpush1.msra.mxu0 0.0
    %431 = vmatprep.subr.mxu0 0.0
    %432 = vmatpush1.msra.mxu0 0.0
    %433 = vmatprep.subr.mxu0 0.0
    %434 = vmatpush1.msra.mxu0 0.0
    %435 = vmatprep.subr.mxu0 0.0
    %436 = vmatpush1.msra.mxu0 0.0
    %437 = vmatprep.subr.mxu0 0.0
    %438 = vmatpush1.msra.mxu0 0.0
    %439 = vmatprep.subr.mxu0 0.0
    %440 = vmatpush1.msra.mxu0 0.0
    %441 = vmatprep.subr.mxu0 0.0
    %442 = vmatpush1.msra.mxu0 0.0
    %443 = vmatprep.subr.mxu0 0.0
    %444 = vmatpush1.msra.mxu0 0.0
    %445 = vmatprep.subr.mxu0 0.0
    %446 = vmatpush1.msra.mxu0 0.0
    %447 = vmatprep.subr.mxu0 0.0
    %448 = vmatpush1.msra.mxu0 0.0
    %449 = vmatprep.subr.mxu0 0.0
    %450 = vmatpush1.msra.mxu0 0.0
    %451 = vmatprep.subr.mxu0 0.0
    %452 = vmatpush1.msra.mxu0 0.0
    %453 = vmatprep.subr.mxu0 0.0
    %454 = vmatpush1.msra.mxu0 0.0
    %455 = vmatprep.subr.mxu0 0.0
    %456 = vmatpush1.msra.mxu0 0.0
    %457 = vmatprep.subr.mxu0 0.0
    %458 = vmatpush1.msra.mxu0 0.0
    %459 = vmatprep.subr.mxu0 0.0
    %460 = vmatpush1.msra.mxu0 0.0
    %461 = vmatprep.subr.mxu0 0.0
    %462 = vmatpush1.msra.mxu0 0.0
    %463 = vmatprep.subr.mxu0 0.0
    %464 = vmatpush1.msra.mxu0 0.0
    %465 = vmatprep.mubr.f32.mxu0 0.0
    %466 = vmatmul.mubr.f32.gmra.mrb[0].mxu0 %v399
    %v467 = vpop.f32.mrb[0].mxu0
    %v468 = vadd.f32 0.0, %v467
    %v469 = vpop.f32.mrb[0].mxu0
    %470 = vdwg.mxu0
    %v471 = vadd.f32 %v386, %v468
    %v472 = vmax.f32 %v471, 0.0
    %v474 = vrot.slane %v472, 7
    %v476 = vsel %vm218, 0.0, %v474
    %v477 = vmul.f32 %v476, %v205
    %v478 = vrot.slane %v472, 1
    %v480 = vsel %vm223, %v478, 0.0
    %v481 = vmul.f32 %v480, %v207
    %s482 = scalar_lea.vmem [#allocation2], 64
    %v483 = vld [vmem:[%s482] sm:$0xff]
    %v484 = vld [vmem:[%s482 + $0x8] sm:$0xff]
    %v485 = vld [vmem:[%s482 + $0x10] sm:$0xff]
    %v486 = vld [vmem:[%s482 + $0x18] sm:$0xff]
    %v487 = vld [vmem:[%s482 + $0x20] sm:$0xff]
    %v488 = vld [vmem:[%s482 + $0x28] sm:$0xff]
    %v489 = vld [vmem:[%s482 + $0x30] sm:$0xff]
    %v490 = vld [vmem:[%s482 + $0x38] sm:$0xff]
    %v491 = vld [vmem:[#allocation2] sm:$0xff]
    %v492 = vld [vmem:[#allocation2 + $0x8] sm:$0xff]
    %v493 = vld [vmem:[#allocation2 + $0x10] sm:$0xff]
    %v494 = vld [vmem:[#allocation2 + $0x18] sm:$0xff]
    %v495 = vld [vmem:[#allocation2 + $0x20] sm:$0xff]
    %v496 = vld [vmem:[#allocation2 + $0x28] sm:$0xff]
    %v497 = vld [vmem:[#allocation2 + $0x30] sm:$0xff]
    %v498 = vld [vmem:[#allocation2 + $0x38] sm:$0xff]
    %v500 = vsel %vm243, %v477, 0
    %502 = vmatprep.subr.mxu0 0.0
    %503 = vmatpush1.msra.mxu0 %v491
    %504 = vmatprep.subr.mxu0 0.0
    %505 = vmatpush1.msra.mxu0 %v492
    %506 = vmatprep.subr.mxu0 0.0
    %507 = vmatpush1.msra.mxu0 %v493
    %508 = vmatprep.subr.mxu0 0.0
    %509 = vmatpush1.msra.mxu0 %v494
    %510 = vmatprep.subr.mxu0 0.0
    %511 = vmatpush1.msra.mxu0 %v495
    %512 = vmatprep.subr.mxu0 0.0
    %513 = vmatpush1.msra.mxu0 %v496
    %514 = vmatprep.subr.mxu0 0.0
    %515 = vmatpush1.msra.mxu0 %v497
    %516 = vmatprep.subr.mxu0 0.0
    %517 = vmatpush1.msra.mxu0 %v498
    %518 = vmatprep.subr.mxu0 0.0
    %519 = vmatpush1.msra.mxu0 0.0
    %520 = vmatprep.subr.mxu0 0.0
    %521 = vmatpush1.msra.mxu0 0.0
    %522 = vmatprep.subr.mxu0 0.0
    %523 = vmatpush1.msra.mxu0 0.0
    %524 = vmatprep.subr.mxu0 0.0
    %525 = vmatpush1.msra.mxu0 0.0
    %526 = vmatprep.subr.mxu0 0.0
    %527 = vmatpush1.msra.mxu0 0.0
    %528 = vmatprep.subr.mxu0 0.0
    %529 = vmatpush1.msra.mxu0 0.0
    %530 = vmatprep.subr.mxu0 0.0
    %531 = vmatpush1.msra.mxu0 0.0
    %532 = vmatprep.subr.mxu0 0.0
    %533 = vmatpush1.msra.mxu0 0.0
    %534 = vmatprep.subr.mxu0 0.0
    %535 = vmatpush1.msra.mxu0 0.0
    %536 = vmatprep.subr.mxu0 0.0
    %537 = vmatpush1.msra.mxu0 0.0
    %538 = vmatprep.subr.mxu0 0.0
    %539 = vmatpush1.msra.mxu0 0.0
    %540 = vmatprep.subr.mxu0 0.0
    %541 = vmatpush1.msra.mxu0 0.0
    %542 = vmatprep.subr.mxu0 0.0
    %543 = vmatpush1.msra.mxu0 0.0
    %544 = vmatprep.subr.mxu0 0.0
    %545 = vmatpush1.msra.mxu0 0.0
    %546 = vmatprep.subr.mxu0 0.0
    %547 = vmatpush1.msra.mxu0 0.0
    %548 = vmatprep.subr.mxu0 0.0
    %549 = vmatpush1.msra.mxu0 0.0
    %550 = vmatprep.subr.mxu0 0.0
    %551 = vmatpush1.msra.mxu0 0.0
    %552 = vmatprep.subr.mxu0 0.0
    %553 = vmatpush1.msra.mxu0 0.0
    %554 = vmatprep.subr.mxu0 0.0
    %555 = vmatpush1.msra.mxu0 0.0
    %556 = vmatprep.subr.mxu0 0.0
    %557 = vmatpush1.msra.mxu0 0.0
    %558 = vmatprep.subr.mxu0 0.0
    %559 = vmatpush1.msra.mxu0 0.0
    %560 = vmatprep.subr.mxu0 0.0
    %561 = vmatpush1.msra.mxu0 0.0
    %562 = vmatprep.subr.mxu0 0.0
    %563 = vmatpush1.msra.mxu0 0.0
    %564 = vmatprep.subr.mxu0 0.0
    %565 = vmatpush1.msra.mxu0 0.0
    %566 = vmatprep.mubr.f32.mxu0 0.0
    %567 = vmatmul.mubr.f32.gmra.mrb[0].mxu0 %v500
    %v568 = vpop.f32.mrb[0].mxu0
    %v569 = vadd.f32 0.0, %v568
    %v570 = vpop.f32.mrb[0].mxu0
    %571 = vdwg.mxu0
    %v572 = vsel %vm243, %v472, 0
    %574 = vmatprep.subr.mxu0 0.0
    %575 = vmatpush1.msra.mxu0 %v483
    %576 = vmatprep.subr.mxu0 0.0
    %577 = vmatpush1.msra.mxu0 %v484
    %578 = vmatprep.subr.mxu0 0.0
    %579 = vmatpush1.msra.mxu0 %v485
    %580 = vmatprep.subr.mxu0 0.0
    %581 = vmatpush1.msra.mxu0 %v486
    %582 = vmatprep.subr.mxu0 0.0
    %583 = vmatpush1.msra.mxu0 %v487
    %584 = vmatprep.subr.mxu0 0.0
    %585 = vmatpush1.msra.mxu0 %v488
    %586 = vmatprep.subr.mxu0 0.0
    %587 = vmatpush1.msra.mxu0 %v489
    %588 = vmatprep.subr.mxu0 0.0
    %589 = vmatpush1.msra.mxu0 %v490
    %590 = vmatprep.subr.mxu0 0.0
    %591 = vmatpush1.msra.mxu0 0.0
    %592 = vmatprep.subr.mxu0 0.0
    %593 = vmatpush1.msra.mxu0 0.0
    %594 = vmatprep.subr.mxu0 0.0
    %595 = vmatpush1.msra.mxu0 0.0
    %596 = vmatprep.subr.mxu0 0.0
    %597 = vmatpush1.msra.mxu0 0.0
    %598 = vmatprep.subr.mxu0 0.0
    %599 = vmatpush1.msra.mxu0 0.0
    %600 = vmatprep.subr.mxu0 0.0
    %601 = vmatpush1.msra.mxu0 0.0
    %602 = vmatprep.subr.mxu0 0.0
    %603 = vmatpush1.msra.mxu0 0.0
    %604 = vmatprep.subr.mxu0 0.0
    %605 = vmatpush1.msra.mxu0 0.0
    %606 = vmatprep.subr.mxu0 0.0
    %607 = vmatpush1.msra.mxu0 0.0
    %608 = vmatprep.subr.mxu0 0.0
    %609 = vmatpush1.msra.mxu0 0.0
    %610 = vmatprep.subr.mxu0 0.0
    %611 = vmatpush1.msra.mxu0 0.0
    %612 = vmatprep.subr.mxu0 0.0
    %613 = vmatpush1.msra.mxu0 0.0
    %614 = vmatprep.subr.mxu0 0.0
    %615 = vmatpush1.msra.mxu0 0.0
    %616 = vmatprep.subr.mxu0 0.0
    %617 = vmatpush1.msra.mxu0 0.0
    %618 = vmatprep.subr.mxu0 0.0
    %619 = vmatpush1.msra.mxu0 0.0
    %620 = vmatprep.subr.mxu0 0.0
    %621 = vmatpush1.msra.mxu0 0.0
    %622 = vmatprep.subr.mxu0 0.0
    %623 = vmatpush1.msra.mxu0 0.0
    %624 = vmatprep.subr.mxu0 0.0
    %625 = vmatpush1.msra.mxu0 0.0
    %626 = vmatprep.subr.mxu0 0.0
    %627 = vmatpush1.msra.mxu0 0.0
    %628 = vmatprep.subr.mxu0 0.0
    %629 = vmatpush1.msra.mxu0 0.0
    %630 = vmatprep.subr.mxu0 0.0
    %631 = vmatpush1.msra.mxu0 0.0
    %632 = vmatprep.subr.mxu0 0.0
    %633 = vmatpush1.msra.mxu0 0.0
    %634 = vmatprep.subr.mxu0 0.0
    %635 = vmatpush1.msra.mxu0 0.0
    %636 = vmatprep.subr.mxu0 0.0
    %637 = vmatpush1.msra.mxu0 0.0
    %638 = vmatprep.mubr.f32.mxu0 0.0
    %639 = vmatmul.mubr.f32.gmra.mrb[0].mxu0 %v572
    %v640 = vpop.f32.mrb[0].mxu0
    %v641 = vadd.f32 %v569, %v640
    %v642 = vpop.f32.mrb[0].mxu0
    %643 = vdwg.mxu0
    %s644 = scalar_lea.vmem [#allocation2], 128
    %v645 = vld [vmem:[%s644] sm:$0xff]
    %v646 = vld [vmem:[%s644 + $0x8] sm:$0xff]
    %v647 = vld [vmem:[%s644 + $0x10] sm:$0xff]
    %v648 = vld [vmem:[%s644 + $0x18] sm:$0xff]
    %v649 = vld [vmem:[%s644 + $0x20] sm:$0xff]
    %v650 = vld [vmem:[%s644 + $0x28] sm:$0xff]
    %v651 = vld [vmem:[%s644 + $0x30] sm:$0xff]
    %v652 = vld [vmem:[%s644 + $0x38] sm:$0xff]
    %v654 = vsel %vm243, %v481, 0
    %656 = vmatprep.subr.mxu0 0.0
    %657 = vmatpush1.msra.mxu0 %v645
    %658 = vmatprep.subr.mxu0 0.0
    %659 = vmatpush1.msra.mxu0 %v646
    %660 = vmatprep.subr.mxu0 0.0
    %661 = vmatpush1.msra.mxu0 %v647
    %662 = vmatprep.subr.mxu0 0.0
    %663 = vmatpush1.msra.mxu0 %v648
    %664 = vmatprep.subr.mxu0 0.0
    %665 = vmatpush1.msra.mxu0 %v649
    %666 = vmatprep.subr.mxu0 0.0
    %667 = vmatpush1.msra.mxu0 %v650
    %668 = vmatprep.subr.mxu0 0.0
    %669 = vmatpush1.msra.mxu0 %v651
    %670 = vmatprep.subr.mxu0 0.0
    %671 = vmatpush1.msra.mxu0 %v652
    %672 = vmatprep.subr.mxu0 0.0
    %673 = vmatpush1.msra.mxu0 0.0
    %674 = vmatprep.subr.mxu0 0.0
    %675 = vmatpush1.msra.mxu0 0.0
    %676 = vmatprep.subr.mxu0 0.0
    %677 = vmatpush1.msra.mxu0 0.0
    %678 = vmatprep.subr.mxu0 0.0
    %679 = vmatpush1.msra.mxu0 0.0
    %680 = vmatprep.subr.mxu0 0.0
    %681 = vmatpush1.msra.mxu0 0.0
    %682 = vmatprep.subr.mxu0 0.0
    %683 = vmatpush1.msra.mxu0 0.0
    %684 = vmatprep.subr.mxu0 0.0
    %685 = vmatpush1.msra.mxu0 0.0
    %686 = vmatprep.subr.mxu0 0.0
    %687 = vmatpush1.msra.mxu0 0.0
    %688 = vmatprep.subr.mxu0 0.0
    %689 = vmatpush1.msra.mxu0 0.0
    %690 = vmatprep.subr.mxu0 0.0
    %691 = vmatpush1.msra.mxu0 0.0
    %692 = vmatprep.subr.mxu0 0.0
    %693 = vmatpush1.msra.mxu0 0.0
    %694 = vmatprep.subr.mxu0 0.0
    %695 = vmatpush1.msra.mxu0 0.0
    %696 = vmatprep.subr.mxu0 0.0
    %697 = vmatpush1.msra.mxu0 0.0
    %698 = vmatprep.subr.mxu0 0.0
    %699 = vmatpush1.msra.mxu0 0.0
    %700 = vmatprep.subr.mxu0 0.0
    %701 = vmatpush1.msra.mxu0 0.0
    %702 = vmatprep.subr.mxu0 0.0
    %703 = vmatpush1.msra.mxu0 0.0
    %704 = vmatprep.subr.mxu0 0.0
    %705 = vmatpush1.msra.mxu0 0.0
    %706 = vmatprep.subr.mxu0 0.0
    %707 = vmatpush1.msra.mxu0 0.0
    %708 = vmatprep.subr.mxu0 0.0
    %709 = vmatpush1.msra.mxu0 0.0
    %710 = vmatprep.subr.mxu0 0.0
    %711 = vmatpush1.msra.mxu0 0.0
    %712 = vmatprep.subr.mxu0 0.0
    %713 = vmatpush1.msra.mxu0 0.0
    %714 = vmatprep.subr.mxu0 0.0
    %715 = vmatpush1.msra.mxu0 0.0
    %716 = vmatprep.subr.mxu0 0.0
    %717 = vmatpush1.msra.mxu0 0.0
    %718 = vmatprep.subr.mxu0 0.0
    %719 = vmatpush1.msra.mxu0 0.0
    %720 = vmatprep.mubr.f32.mxu0 0.0
    %721 = vmatmul.mubr.f32.gmra.mrb[0].mxu0 %v654
    %v722 = vpop.f32.mrb[0].mxu0
    %v723 = vadd.f32 0.0, %v722
    %v724 = vpop.f32.mrb[0].mxu0
    %725 = vdwg.mxu0
    %v726 = vadd.f32 %v641, %v723
    %v727 = vmax.f32 %v726, 0.0
    %v728 = vadd.f32 %v727, %v214
    %v731 = vrot.slane %v212, 7
    %v732 = vrot.slane %v213, 7
    %v733 = vsel %vm218, %v731, %v732
    %v736 = vsel %vm218, 0.0, %v731
    %v737 = vmul.f32 %v736, %v197
    %v738 = vmul.f32 %v733, %v198
    %v739 = vrot.slane %v212, 1
    %v740 = vrot.slane %v213, 1
    %v741 = vsel %vm223, %v739, %v740
    %v744 = vsel %vm223, %v740, 0.0
    %v745 = vmul.f32 %v741, %v201
    %v746 = vmul.f32 %v744, %v202
    %s747 = scalar_lea.vmem [#allocation4], 96
    %v748 = vld [vmem:[%s747] sm:$0xff]
    %v749 = vld [vmem:[%s747 + $0x8] sm:$0xff]
    %v750 = vld [vmem:[%s747 + $0x10] sm:$0xff]
    %v751 = vld [vmem:[%s747 + $0x18] sm:$0xff]
    %v752 = vld [vmem:[%s747 + $0x20] sm:$0xff]
    %v753 = vld [vmem:[%s747 + $0x28] sm:$0xff]
    %v754 = vld [vmem:[%s747 + $0x30] sm:$0xff]
    %v755 = vld [vmem:[%s747 + $0x38] sm:$0xff]
    %v756 = vld [vmem:[%s747 + $0x40] sm:$0xff]
    %v757 = vld [vmem:[%s747 + $0x48] sm:$0xff]
    %v758 = vld [vmem:[%s747 + $0x50] sm:$0xff]
    %v759 = vld [vmem:[%s747 + $0x58] sm:$0xff]
    %v760 = vld [vmem:[#allocation4] sm:$0xff]
    %v761 = vld [vmem:[#allocation4 + $0x8] sm:$0xff]
    %v762 = vld [vmem:[#allocation4 + $0x10] sm:$0xff]
    %v763 = vld [vmem:[#allocation4 + $0x18] sm:$0xff]
    %v764 = vld [vmem:[#allocation4 + $0x20] sm:$0xff]
    %v765 = vld [vmem:[#allocation4 + $0x28] sm:$0xff]
    %v766 = vld [vmem:[#allocation4 + $0x30] sm:$0xff]
    %v767 = vld [vmem:[#allocation4 + $0x38] sm:$0xff]
    %v768 = vld [vmem:[#allocation4 + $0x40] sm:$0xff]
    %v769 = vld [vmem:[#allocation4 + $0x48] sm:$0xff]
    %v770 = vld [vmem:[#allocation4 + $0x50] sm:$0xff]
    %v771 = vld [vmem:[#allocation4 + $0x58] sm:$0xff]
    %vm772 = vcmask 785408
    %v774 = vsel %vm772, %v737, 0
    %v777 = vsel %vm772, %v738, 0
    %779 = vmatprep.subr.mxu0 0.0
    %780 = vmatpush1.msra.mxu0 %v760
    %781 = vmatprep.subr.mxu0 0.0
    %782 = vmatpush1.msra.mxu0 %v761
    %783 = vmatprep.subr.mxu0 0.0
    %784 = vmatpush1.msra.mxu0 %v762
    %785 = vmatprep.subr.mxu0 0.0
    %786 = vmatpush1.msra.mxu0 %v763
    %787 = vmatprep.subr.mxu0 0.0
    %788 = vmatpush1.msra.mxu0 %v764
    %789 = vmatprep.subr.mxu0 0.0
    %790 = vmatpush1.msra.mxu0 %v765
    %791 = vmatprep.subr.mxu0 0.0
    %792 = vmatpush1.msra.mxu0 %v766
    %793 = vmatprep.subr.mxu0 0.0
    %794 = vmatpush1.msra.mxu0 %v767
    %795 = vmatprep.subr.mxu0 0.0
    %796 = vmatpush1.msra.mxu0 %v768
    %797 = vmatprep.subr.mxu0 0.0
    %798 = vmatpush1.msra.mxu0 %v769
    %799 = vmatprep.subr.mxu0 0.0
    %800 = vmatpush1.msra.mxu0 %v770
    %801 = vmatprep.subr.mxu0 0.0
    %802 = vmatpush1.msra.mxu0 %v771
    %803 = vmatprep.subr.mxu0 0.0
    %804 = vmatpush1.msra.mxu0 0.0
    %805 = vmatprep.subr.mxu0 0.0
    %806 = vmatpush1.msra.mxu0 0.0
    %807 = vmatprep.subr.mxu0 0.0
    %808 = vmatpush1.msra.mxu0 0.0
    %809 = vmatprep.subr.mxu0 0.0
    %810 = vmatpush1.msra.mxu0 0.0
    %811 = vmatprep.subr.mxu0 0.0
    %812 = vmatpush1.msra.mxu0 0.0
    %813 = vmatprep.subr.mxu0 0.0
    %814 = vmatpush1.msra.mxu0 0.0
    %815 = vmatprep.subr.mxu0 0.0
    %816 = vmatpush1.msra.mxu0 0.0
    %817 = vmatprep.subr.mxu0 0.0
    %818 = vmatpush1.msra.mxu0 0.0
    %819 = vmatprep.subr.mxu0 0.0
    %820 = vmatpush1.msra.mxu0 0.0
    %821 = vmatprep.subr.mxu0 0.0
    %822 = vmatpush1.msra.mxu0 0.0
    %823 = vmatprep.subr.mxu0 0.0
    %824 = vmatpush1.msra.mxu0 0.0
    %825 = vmatprep.subr.mxu0 0.0
    %826 = vmatpush1.msra.mxu0 0.0
    %827 = vmatprep.subr.mxu0 0.0
    %828 = vmatpush1.msra.mxu0 0.0
    %829 = vmatprep.subr.mxu0 0.0
    %830 = vmatpush1.msra.mxu0 0.0
    %831 = vmatprep.subr.mxu0 0.0
    %832 = vmatpush1.msra.mxu0 0.0
    %833 = vmatprep.subr.mxu0 0.0
    %834 = vmatpush1.msra.mxu0 0.0
    %835 = vmatprep.subr.mxu0 0.0
    %836 = vmatpush1.msra.mxu0 0.0
    %837 = vmatprep.subr.mxu0 0.0
    %838 = vmatpush1.msra.mxu0 0.0
    %839 = vmatprep.subr.mxu0 0.0
    %840 = vmatpush1.msra.mxu0 0.0
    %841 = vmatprep.subr.mxu0 0.0
    %842 = vmatpush1.msra.mxu0 0.0
    %843 = vmatprep.mubr.f32.mxu0 0.0
    %844 = vmatmul.mubr.f32.gmra.mrb[0].mxu0 %v774
    %v845 = vpop.f32.mrb[0].mxu0
    %v846 = vadd.f32 0.0, %v845
    %v847 = vpop.f32.mrb[0].mxu0
    %848 = vmatprep.mubr.f32.mxu0 0.0
    %849 = vmatmul.mubr.f32.gmra.mrb[0].mxu0 %v777
    %v850 = vpop.f32.mrb[0].mxu0
    %v851 = vadd.f32 0.0, %v850
    %v852 = vpop.f32.mrb[0].mxu0
    %853 = vdwg.mxu0
    %v854 = vsel %vm772, %v212, 0
    %v856 = vsel %vm772, %v213, 0
    %858 = vmatprep.subr.mxu0 0.0
    %859 = vmatpush1.msra.mxu0 %v748
    %860 = vmatprep.subr.mxu0 0.0
    %861 = vmatpush1.msra.mxu0 %v749
    %862 = vmatprep.subr.mxu0 0.0
    %863 = vmatpush1.msra.mxu0 %v750
    %864 = vmatprep.subr.mxu0 0.0
    %865 = vmatpush1.msra.mxu0 %v751
    %866 = vmatprep.subr.mxu0 0.0
    %867 = vmatpush1.msra.mxu0 %v752
    %868 = vmatprep.subr.mxu0 0.0
    %869 = vmatpush1.msra.mxu0 %v753
    %870 = vmatprep.subr.mxu0 0.0
    %871 = vmatpush1.msra.mxu0 %v754
    %872 = vmatprep.subr.mxu0 0.0
    %873 = vmatpush1.msra.mxu0 %v755
    %874 = vmatprep.subr.mxu0 0.0
    %875 = vmatpush1.msra.mxu0 %v756
    %876 = vmatprep.subr.mxu0 0.0
    %877 = vmatpush1.msra.mxu0 %v757
    %878 = vmatprep.subr.mxu0 0.0
    %879 = vmatpush1.msra.mxu0 %v758
    %880 = vmatprep.subr.mxu0 0.0
    %881 = vmatpush1.msra.mxu0 %v759
    %882 = vmatprep.subr.mxu0 0.0
    %883 = vmatpush1.msra.mxu0 0.0
    %884 = vmatprep.subr.mxu0 0.0
    %885 = vmatpush1.msra.mxu0 0.0
    %886 = vmatprep.subr.mxu0 0.0
    %887 = vmatpush1.msra.mxu0 0.0
    %888 = vmatprep.subr.mxu0 0.0
    %889 = vmatpush1.msra.mxu0 0.0
    %890 = vmatprep.subr.mxu0 0.0
    %891 = vmatpush1.msra.mxu0 0.0
    %892 = vmatprep.subr.mxu0 0.0
    %893 = vmatpush1.msra.mxu0 0.0
    %894 = vmatprep.subr.mxu0 0.0
    %895 = vmatpush1.msra.mxu0 0.0
    %896 = vmatprep.subr.mxu0 0.0
    %897 = vmatpush1.msra.mxu0 0.0
    %898 = vmatprep.subr.mxu0 0.0
    %899 = vmatpush1.msra.mxu0 0.0
    %900 = vmatprep.subr.mxu0 0.0
    %901 = vmatpush1.msra.mxu0 0.0
    %902 = vmatprep.subr.mxu0 0.0
    %903 = vmatpush1.msra.mxu0 0.0
    %904 = vmatprep.subr.mxu0 0.0
    %905 = vmatpush1.msra.mxu0 0.0
    %906 = vmatprep.subr.mxu0 0.0
    %907 = vmatpush1.msra.mxu0 0.0
    %908 = vmatprep.subr.mxu0 0.0
    %909 = vmatpush1.msra.mxu0 0.0
    %910 = vmatprep.subr.mxu0 0.0
    %911 = vmatpush1.msra.mxu0 0.0
    %912 = vmatprep.subr.mxu0 0.0
    %913 = vmatpush1.msra.mxu0 0.0
    %914 = vmatprep.subr.mxu0 0.0
    %915 = vmatpush1.msra.mxu0 0.0
    %916 = vmatprep.subr.mxu0 0.0
    %917 = vmatpush1.msra.mxu0 0.0
    %918 = vmatprep.subr.mxu0 0.0
    %919 = vmatpush1.msra.mxu0 0.0
    %920 = vmatprep.subr.mxu0 0.0
    %921 = vmatpush1.msra.mxu0 0.0
    %922 = vmatprep.mubr.f32.mxu0 0.0
    %923 = vmatmul.mubr.f32.gmra.mrb[0].mxu0 %v854
    %v924 = vpop.f32.mrb[0].mxu0
    %v925 = vadd.f32 %v846, %v924
    %v926 = vpop.f32.mrb[0].mxu0
    %927 = vmatprep.mubr.f32.mxu0 0.0
    %928 = vmatmul.mubr.f32.gmra.mrb[0].mxu0 %v856
    %v929 = vpop.f32.mrb[0].mxu0
    %v930 = vadd.f32 %v851, %v929
    %v931 = vpop.f32.mrb[0].mxu0
    %932 = vdwg.mxu0
    %s933 = scalar_lea.vmem [#allocation4], 192
    %v934 = vld [vmem:[%s933] sm:$0xff]
    %v935 = vld [vmem:[%s933 + $0x8] sm:$0xff]
    %v936 = vld [vmem:[%s933 + $0x10] sm:$0xff]
    %v937 = vld [vmem:[%s933 + $0x18] sm:$0xff]
    %v938 = vld [vmem:[%s933 + $0x20] sm:$0xff]
    %v939 = vld [vmem:[%s933 + $0x28] sm:$0xff]
    %v940 = vld [vmem:[%s933 + $0x30] sm:$0xff]
    %v941 = vld [vmem:[%s933 + $0x38] sm:$0xff]
    %v942 = vld [vmem:[%s933 + $0x40] sm:$0xff]
    %v943 = vld [vmem:[%s933 + $0x48] sm:$0xff]
    %v944 = vld [vmem:[%s933 + $0x50] sm:$0xff]
    %v945 = vld [vmem:[%s933 + $0x58] sm:$0xff]
    %v947 = vsel %vm772, %v745, 0
    %v950 = vsel %vm772, %v746, 0
    %952 = vmatprep.subr.mxu0 0.0
    %953 = vmatpush1.msra.mxu0 %v934
    %954 = vmatprep.subr.mxu0 0.0
    %955 = vmatpush1.msra.mxu0 %v935
    %956 = vmatprep.subr.mxu0 0.0
    %957 = vmatpush1.msra.mxu0 %v936
    %958 = vmatprep.subr.mxu0 0.0
    %959 = vmatpush1.msra.mxu0 %v937
    %960 = vmatprep.subr.mxu0 0.0
    %961 = vmatpush1.msra.mxu0 %v938
    %962 = vmatprep.subr.mxu0 0.0
    %963 = vmatpush1.msra.mxu0 %v939
    %964 = vmatprep.subr.mxu0 0.0
    %965 = vmatpush1.msra.mxu0 %v940
    %966 = vmatprep.subr.mxu0 0.0
    %967 = vmatpush1.msra.mxu0 %v941
    %968 = vmatprep.subr.mxu0 0.0
    %969 = vmatpush1.msra.mxu0 %v942
    %970 = vmatprep.subr.mxu0 0.0
    %971 = vmatpush1.msra.mxu0 %v943
    %972 = vmatprep.subr.mxu0 0.0
    %973 = vmatpush1.msra.mxu0 %v944
    %974 = vmatprep.subr.mxu0 0.0
    %975 = vmatpush1.msra.mxu0 %v945
    %976 = vmatprep.subr.mxu0 0.0
    %977 = vmatpush1.msra.mxu0 0.0
    %978 = vmatprep.subr.mxu0 0.0
    %979 = vmatpush1.msra.mxu0 0.0
    %980 = vmatprep.subr.mxu0 0.0
    %981 = vmatpush1.msra.mxu0 0.0
    %982 = vmatprep.subr.mxu0 0.0
    %983 = vmatpush1.msra.mxu0 0.0
    %984 = vmatprep.subr.mxu0 0.0
    %985 = vmatpush1.msra.mxu0 0.0
    %986 = vmatprep.subr.mxu0 0.0
    %987 = vmatpush1.msra.mxu0 0.0
    %988 = vmatprep.subr.mxu0 0.0
    %989 = vmatpush1.msra.mxu0 0.0
    %990 = vmatprep.subr.mxu0 0.0
    %991 = vmatpush1.msra.mxu0 0.0
    %992 = vmatprep.subr.mxu0 0.0
    %993 = vmatpush1.msra.mxu0 0.0
    %994 = vmatprep.subr.mxu0 0.0
    %995 = vmatpush1.msra.mxu0 0.0
    %996 = vmatprep.subr.mxu0 0.0
    %997 = vmatpush1.msra.mxu0 0.0
    %998 = vmatprep.subr.mxu0 0.0
    %999 = vmatpush1.msra.mxu0 0.0
    %1000 = vmatprep.subr.mxu0 0.0
    %1001 = vmatpush1.msra.mxu0 0.0
    %1002 = vmatprep.subr.mxu0 0.0
    %1003 = vmatpush1.msra.mxu0 0.0
    %1004 = vmatprep.subr.mxu0 0.0
    %1005 = vmatpush1.msra.mxu0 0.0
    %1006 = vmatprep.subr.mxu0 0.0
    %1007 = vmatpush1.msra.mxu0 0.0
    %1008 = vmatprep.subr.mxu0 0.0
    %1009 = vmatpush1.msra.mxu0 0.0
    %1010 = vmatprep.subr.mxu0 0.0
    %1011 = vmatpush1.msra.mxu0 0.0
    %1012 = vmatprep.subr.mxu0 0.0
    %1013 = vmatpush1.msra.mxu0 0.0
    %1014 = vmatprep.subr.mxu0 0.0
    %1015 = vmatpush1.msra.mxu0 0.0
    %1016 = vmatprep.mubr.f32.mxu0 0.0
    %1017 = vmatmul.mubr.f32.gmra.mrb[0].mxu0 %v947
    %v1018 = vpop.f32.mrb[0].mxu0
    %v1019 = vadd.f32 0.0, %v1018
    %v1020 = vpop.f32.mrb[0].mxu0
    %1021 = vmatprep.mubr.f32.mxu0 0.0
    %1022 = vmatmul.mubr.f32.gmra.mrb[0].mxu0 %v950
    %v1023 = vpop.f32.mrb[0].mxu0
    %v1024 = vadd.f32 0.0, %v1023
    %v1025 = vpop.f32.mrb[0].mxu0
    %1026 = vdwg.mxu0
    %v1027 = vadd.f32 %v925, %v1019
    %v1028 = vadd.f32 %v930, %v1024
    %v1029 = vmax.f32 %v1027, 0.0
    %v1030 = vmax.f32 %v1028, 0.0
    %v1033 = vrot.slane %v1029, 7
    %v1034 = vrot.slane %v1030, 7
    %v1035 = vsel %vm218, %v1033, %v1034
    %v1038 = vsel %vm218, 0.0, %v1033
    %v1039 = vmul.f32 %v1038, %v197
    %v1040 = vmul.f32 %v1035, %v198
    %v1041 = vrot.slane %v1029, 1
    %v1042 = vrot.slane %v1030, 1
    %v1043 = vsel %vm223, %v1041, %v1042
    %v1046 = vsel %vm223, %v1042, 0.0
    %v1047 = vmul.f32 %v1043, %v201
    %v1048 = vmul.f32 %v1046, %v202
    %s1049 = scalar_lea.vmem [#allocation6], 96
    %v1050 = vld [vmem:[%s1049] sm:$0xff]
    %v1051 = vld [vmem:[%s1049 + $0x8] sm:$0xff]
    %v1052 = vld [vmem:[%s1049 + $0x10] sm:$0xff]
    %v1053 = vld [vmem:[%s1049 + $0x18] sm:$0xff]
    %v1054 = vld [vmem:[%s1049 + $0x20] sm:$0xff]
    %v1055 = vld [vmem:[%s1049 + $0x28] sm:$0xff]
    %v1056 = vld [vmem:[%s1049 + $0x30] sm:$0xff]
    %v1057 = vld [vmem:[%s1049 + $0x38] sm:$0xff]
    %v1058 = vld [vmem:[%s1049 + $0x40] sm:$0xff]
    %v1059 = vld [vmem:[%s1049 + $0x48] sm:$0xff]
    %v1060 = vld [vmem:[%s1049 + $0x50] sm:$0xff]
    %v1061 = vld [vmem:[%s1049 + $0x58] sm:$0xff]
    %v1062 = vld [vmem:[#allocation6] sm:$0xff]
    %v1063 = vld [vmem:[#allocation6 + $0x8] sm:$0xff]
    %v1064 = vld [vmem:[#allocation6 + $0x10] sm:$0xff]
    %v1065 = vld [vmem:[#allocation6 + $0x18] sm:$0xff]
    %v1066 = vld [vmem:[#allocation6 + $0x20] sm:$0xff]
    %v1067 = vld [vmem:[#allocation6 + $0x28] sm:$0xff]
    %v1068 = vld [vmem:[#allocation6 + $0x30] sm:$0xff]
    %v1069 = vld [vmem:[#allocation6 + $0x38] sm:$0xff]
    %v1070 = vld [vmem:[#allocation6 + $0x40] sm:$0xff]
    %v1071 = vld [vmem:[#allocation6 + $0x48] sm:$0xff]
    %v1072 = vld [vmem:[#allocation6 + $0x50] sm:$0xff]
    %v1073 = vld [vmem:[#allocation6 + $0x58] sm:$0xff]
    %v1075 = vsel %vm772, %v1039, 0
    %v1078 = vsel %vm772, %v1040, 0
    %1080 = vmatprep.subr.mxu0 0.0
    %1081 = vmatpush1.msra.mxu0 %v1062
    %1082 = vmatprep.subr.mxu0 0.0
    %1083 = vmatpush1.msra.mxu0 %v1063
    %1084 = vmatprep.subr.mxu0 0.0
    %1085 = vmatpush1.msra.mxu0 %v1064
    %1086 = vmatprep.subr.mxu0 0.0
    %1087 = vmatpush1.msra.mxu0 %v1065
    %1088 = vmatprep.subr.mxu0 0.0
    %1089 = vmatpush1.msra.mxu0 %v1066
    %1090 = vmatprep.subr.mxu0 0.0
    %1091 = vmatpush1.msra.mxu0 %v1067
    %1092 = vmatprep.subr.mxu0 0.0
    %1093 = vmatpush1.msra.mxu0 %v1068
    %1094 = vmatprep.subr.mxu0 0.0
    %1095 = vmatpush1.msra.mxu0 %v1069
    %1096 = vmatprep.subr.mxu0 0.0
    %1097 = vmatpush1.msra.mxu0 %v1070
    %1098 = vmatprep.subr.mxu0 0.0
    %1099 = vmatpush1.msra.mxu0 %v1071
    %1100 = vmatprep.subr.mxu0 0.0
    %1101 = vmatpush1.msra.mxu0 %v1072
    %1102 = vmatprep.subr.mxu0 0.0
    %1103 = vmatpush1.msra.mxu0 %v1073
    %1104 = vmatprep.subr.mxu0 0.0
    %1105 = vmatpush1.msra.mxu0 0.0
    %1106 = vmatprep.subr.mxu0 0.0
    %1107 = vmatpush1.msra.mxu0 0.0
    %1108 = vmatprep.subr.mxu0 0.0
    %1109 = vmatpush1.msra.mxu0 0.0
    %1110 = vmatprep.subr.mxu0 0.0
    %1111 = vmatpush1.msra.mxu0 0.0
    %1112 = vmatprep.subr.mxu0 0.0
    %1113 = vmatpush1.msra.mxu0 0.0
    %1114 = vmatprep.subr.mxu0 0.0
    %1115 = vmatpush1.msra.mxu0 0.0
    %1116 = vmatprep.subr.mxu0 0.0
    %1117 = vmatpush1.msra.mxu0 0.0
    %1118 = vmatprep.subr.mxu0 0.0
    %1119 = vmatpush1.msra.mxu0 0.0
    %1120 = vmatprep.subr.mxu0 0.0
    %1121 = vmatpush1.msra.mxu0 0.0
    %1122 = vmatprep.subr.mxu0 0.0
    %1123 = vmatpush1.msra.mxu0 0.0
    %1124 = vmatprep.subr.mxu0 0.0
    %1125 = vmatpush1.msra.mxu0 0.0
    %1126 = vmatprep.subr.mxu0 0.0
    %1127 = vmatpush1.msra.mxu0 0.0
    %1128 = vmatprep.subr.mxu0 0.0
    %1129 = vmatpush1.msra.mxu0 0.0
    %1130 = vmatprep.subr.mxu0 0.0
    %1131 = vmatpush1.msra.mxu0 0.0
    %1132 = vmatprep.subr.mxu0 0.0
    %1133 = vmatpush1.msra.mxu0 0.0
    %1134 = vmatprep.subr.mxu0 0.0
    %1135 = vmatpush1.msra.mxu0 0.0
    %1136 = vmatprep.subr.mxu0 0.0
    %1137 = vmatpush1.msra.mxu0 0.0
    %1138 = vmatprep.subr.mxu0 0.0
    %1139 = vmatpush1.msra.mxu0 0.0
    %1140 = vmatprep.subr.mxu0 0.0
    %1141 = vmatpush1.msra.mxu0 0.0
    %1142 = vmatprep.subr.mxu0 0.0
    %1143 = vmatpush1.msra.mxu0 0.0
    %1144 = vmatprep.mubr.f32.mxu0 0.0
    %1145 = vmatmul.mubr.f32.gmra.mrb[0].mxu0 %v1075
    %v1146 = vpop.f32.mrb[0].mxu0
    %v1147 = vadd.f32 0.0, %v1146
    %v1148 = vpop.f32.mrb[0].mxu0
    %1149 = vmatprep.mubr.f32.mxu0 0.0
    %1150 = vmatmul.mubr.f32.gmra.mrb[0].mxu0 %v1078
    %v1151 = vpop.f32.mrb[0].mxu0
    %v1152 = vadd.f32 0.0, %v1151
    %v1153 = vpop.f32.mrb[0].mxu0
    %1154 = vdwg.mxu0
    %v1155 = vsel %vm772, %v1029, 0
    %v1157 = vsel %vm772, %v1030, 0
    %1159 = vmatprep.subr.mxu0 0.0
    %1160 = vmatpush1.msra.mxu0 %v1050
    %1161 = vmatprep.subr.mxu0 0.0
    %1162 = vmatpush1.msra.mxu0 %v1051
    %1163 = vmatprep.subr.mxu0 0.0
    %1164 = vmatpush1.msra.mxu0 %v1052
    %1165 = vmatprep.subr.mxu0 0.0
    %1166 = vmatpush1.msra.mxu0 %v1053
    %1167 = vmatprep.subr.mxu0 0.0
    %1168 = vmatpush1.msra.mxu0 %v1054
    %1169 = vmatprep.subr.mxu0 0.0
    %1170 = vmatpush1.msra.mxu0 %v1055
    %1171 = vmatprep.subr.mxu0 0.0
    %1172 = vmatpush1.msra.mxu0 %v1056
    %1173 = vmatprep.subr.mxu0 0.0
    %1174 = vmatpush1.msra.mxu0 %v1057
    %1175 = vmatprep.subr.mxu0 0.0
    %1176 = vmatpush1.msra.mxu0 %v1058
    %1177 = vmatprep.subr.mxu0 0.0
    %1178 = vmatpush1.msra.mxu0 %v1059
    %1179 = vmatprep.subr.mxu0 0.0
    %1180 = vmatpush1.msra.mxu0 %v1060
    %1181 = vmatprep.subr.mxu0 0.0
    %1182 = vmatpush1.msra.mxu0 %v1061
    %1183 = vmatprep.subr.mxu0 0.0
    %1184 = vmatpush1.msra.mxu0 0.0
    %1185 = vmatprep.subr.mxu0 0.0
    %1186 = vmatpush1.msra.mxu0 0.0
    %1187 = vmatprep.subr.mxu0 0.0
    %1188 = vmatpush1.msra.mxu0 0.0
    %1189 = vmatprep.subr.mxu0 0.0
    %1190 = vmatpush1.msra.mxu0 0.0
    %1191 = vmatprep.subr.mxu0 0.0
    %1192 = vmatpush1.msra.mxu0 0.0
    %1193 = vmatprep.subr.mxu0 0.0
    %1194 = vmatpush1.msra.mxu0 0.0
    %1195 = vmatprep.subr.mxu0 0.0
    %1196 = vmatpush1.msra.mxu0 0.0
    %1197 = vmatprep.subr.mxu0 0.0
    %1198 = vmatpush1.msra.mxu0 0.0
    %1199 = vmatprep.subr.mxu0 0.0
    %1200 = vmatpush1.msra.mxu0 0.0
    %1201 = vmatprep.subr.mxu0 0.0
    %1202 = vmatpush1.msra.mxu0 0.0
    %1203 = vmatprep.subr.mxu0 0.0
    %1204 = vmatpush1.msra.mxu0 0.0
    %1205 = vmatprep.subr.mxu0 0.0
    %1206 = vmatpush1.msra.mxu0 0.0
    %1207 = vmatprep.subr.mxu0 0.0
    %1208 = vmatpush1.msra.mxu0 0.0
    %1209 = vmatprep.subr.mxu0 0.0
    %1210 = vmatpush1.msra.mxu0 0.0
    %1211 = vmatprep.subr.mxu0 0.0
    %1212 = vmatpush1.msra.mxu0 0.0
    %1213 = vmatprep.subr.mxu0 0.0
    %1214 = vmatpush1.msra.mxu0 0.0
    %1215 = vmatprep.subr.mxu0 0.0
    %1216 = vmatpush1.msra.mxu0 0.0
    %1217 = vmatprep.subr.mxu0 0.0
    %1218 = vmatpush1.msra.mxu0 0.0
    %1219 = vmatprep.subr.mxu0 0.0
    %1220 = vmatpush1.msra.mxu0 0.0
    %1221 = vmatprep.subr.mxu0 0.0
    %1222 = vmatpush1.msra.mxu0 0.0
    %1223 = vmatprep.mubr.f32.mxu0 0.0
    %1224 = vmatmul.mubr.f32.gmra.mrb[0].mxu0 %v1155
    %v1225 = vpop.f32.mrb[0].mxu0
    %v1226 = vadd.f32 %v1147, %v1225
    %v1227 = vpop.f32.mrb[0].mxu0
    %1228 = vmatprep.mubr.f32.mxu0 0.0
    %1229 = vmatmul.mubr.f32.gmra.mrb[0].mxu0 %v1157
    %v1230 = vpop.f32.mrb[0].mxu0
    %v1231 = vadd.f32 %v1152, %v1230
    %v1232 = vpop.f32.mrb[0].mxu0
    %1233 = vdwg.mxu0
    %s1234 = scalar_lea.vmem [#allocation6], 192
    %v1235 = vld [vmem:[%s1234] sm:$0xff]
    %v1236 = vld [vmem:[%s1234 + $0x8] sm:$0xff]
    %v1237 = vld [vmem:[%s1234 + $0x10] sm:$0xff]
    %v1238 = vld [vmem:[%s1234 + $0x18] sm:$0xff]
    %v1239 = vld [vmem:[%s1234 + $0x20] sm:$0xff]
    %v1240 = vld [vmem:[%s1234 + $0x28] sm:$0xff]
    %v1241 = vld [vmem:[%s1234 + $0x30] sm:$0xff]
    %v1242 = vld [vmem:[%s1234 + $0x38] sm:$0xff]
    %v1243 = vld [vmem:[%s1234 + $0x40] sm:$0xff]
    %v1244 = vld [vmem:[%s1234 + $0x48] sm:$0xff]
    %v1245 = vld [vmem:[%s1234 + $0x50] sm:$0xff]
    %v1246 = vld [vmem:[%s1234 + $0x58] sm:$0xff]
    %v1248 = vsel %vm772, %v1047, 0
    %v1251 = vsel %vm772, %v1048, 0
    %1253 = vmatprep.subr.mxu0 0.0
    %1254 = vmatpush1.msra.mxu0 %v1235
    %1255 = vmatprep.subr.mxu0 0.0
    %1256 = vmatpush1.msra.mxu0 %v1236
    %1257 = vmatprep.subr.mxu0 0.0
    %1258 = vmatpush1.msra.mxu0 %v1237
    %1259 = vmatprep.subr.mxu0 0.0
    %1260 = vmatpush1.msra.mxu0 %v1238
    %1261 = vmatprep.subr.mxu0 0.0
    %1262 = vmatpush1.msra.mxu0 %v1239
    %1263 = vmatprep.subr.mxu0 0.0
    %1264 = vmatpush1.msra.mxu0 %v1240
    %1265 = vmatprep.subr.mxu0 0.0
    %1266 = vmatpush1.msra.mxu0 %v1241
    %1267 = vmatprep.subr.mxu0 0.0
    %1268 = vmatpush1.msra.mxu0 %v1242
    %1269 = vmatprep.subr.mxu0 0.0
    %1270 = vmatpush1.msra.mxu0 %v1243
    %1271 = vmatprep.subr.mxu0 0.0
    %1272 = vmatpush1.msra.mxu0 %v1244
    %1273 = vmatprep.subr.mxu0 0.0
    %1274 = vmatpush1.msra.mxu0 %v1245
    %1275 = vmatprep.subr.mxu0 0.0
    %1276 = vmatpush1.msra.mxu0 %v1246
    %1277 = vmatprep.subr.mxu0 0.0
    %1278 = vmatpush1.msra.mxu0 0.0
    %1279 = vmatprep.subr.mxu0 0.0
    %1280 = vmatpush1.msra.mxu0 0.0
    %1281 = vmatprep.subr.mxu0 0.0
    %1282 = vmatpush1.msra.mxu0 0.0
    %1283 = vmatprep.subr.mxu0 0.0
    %1284 = vmatpush1.msra.mxu0 0.0
    %1285 = vmatprep.subr.mxu0 0.0
    %1286 = vmatpush1.msra.mxu0 0.0
    %1287 = vmatprep.subr.mxu0 0.0
    %1288 = vmatpush1.msra.mxu0 0.0
    %1289 = vmatprep.subr.mxu0 0.0
    %1290 = vmatpush1.msra.mxu0 0.0
    %1291 = vmatprep.subr.mxu0 0.0
    %1292 = vmatpush1.msra.mxu0 0.0
    %1293 = vmatprep.subr.mxu0 0.0
    %1294 = vmatpush1.msra.mxu0 0.0
    %1295 = vmatprep.subr.mxu0 0.0
    %1296 = vmatpush1.msra.mxu0 0.0
    %1297 = vmatprep.subr.mxu0 0.0
    %1298 = vmatpush1.msra.mxu0 0.0
    %1299 = vmatprep.subr.mxu0 0.0
    %1300 = vmatpush1.msra.mxu0 0.0
    %1301 = vmatprep.subr.mxu0 0.0
    %1302 = vmatpush1.msra.mxu0 0.0
    %1303 = vmatprep.subr.mxu0 0.0
    %1304 = vmatpush1.msra.mxu0 0.0
    %1305 = vmatprep.subr.mxu0 0.0
    %1306 = vmatpush1.msra.mxu0 0.0
    %1307 = vmatprep.subr.mxu0 0.0
    %1308 = vmatpush1.msra.mxu0 0.0
    %1309 = vmatprep.subr.mxu0 0.0
    %1310 = vmatpush1.msra.mxu0 0.0
    %1311 = vmatprep.subr.mxu0 0.0
    %1312 = vmatpush1.msra.mxu0 0.0
    %1313 = vmatprep.subr.mxu0 0.0
    %1314 = vmatpush1.msra.mxu0 0.0
    %1315 = vmatprep.subr.mxu0 0.0
    %1316 = vmatpush1.msra.mxu0 0.0
    %1317 = vmatprep.mubr.f32.mxu0 0.0
    %1318 = vmatmul.mubr.f32.gmra.mrb[0].mxu0 %v1248
    %v1319 = vpop.f32.mrb[0].mxu0
    %v1320 = vadd.f32 0.0, %v1319
    %v1321 = vpop.f32.mrb[0].mxu0
    %1322 = vmatprep.mubr.f32.mxu0 0.0
    %1323 = vmatmul.mubr.f32.gmra.mrb[0].mxu0 %v1251
    %v1324 = vpop.f32.mrb[0].mxu0
    %v1325 = vadd.f32 0.0, %v1324
    %v1326 = vpop.f32.mrb[0].mxu0
    %1327 = vdwg.mxu0
    %v1328 = vadd.f32 %v1226, %v1320
    %v1329 = vadd.f32 %v1231, %v1325
    %v1330 = vmax.f32 %v1328, 0.0
    %v1331 = vmax.f32 %v1329, 0.0
    %v1332 = vadd.f32 %v1330, %v212
    %v1333 = vadd.f32 %v1331, %v213
    %v1334 = vld [vmem:[%s7] sm:$0xff]
    %v1335 = vld [vmem:[%s7 + $0x8] sm:$0xff]
    %vm1336 = vcmask 64512
    %v1338 = vsel %vm1336, %v1334, 0
    %v1341 = vsel %vm1336, %v1335, 0
    %1343 = vmatprep.subr.mxu0 0.0
    %1344 = vmatpush1.msra.mxu0 %v728
    %1345 = vmatprep.subr.mxu0 0.0
    %1346 = vmatpush1.msra.mxu0 0.0
    %1347 = vmatprep.subr.mxu0 0.0
    %1348 = vmatpush1.msra.mxu0 0.0
    %1349 = vmatprep.subr.mxu0 0.0
    %1350 = vmatpush1.msra.mxu0 0.0
    %1351 = vmatprep.subr.mxu0 0.0
    %1352 = vmatpush1.msra.mxu0 0.0
    %1353 = vmatprep.subr.mxu0 0.0
    %1354 = vmatpush1.msra.mxu0 0.0
    %1355 = vmatprep.subr.mxu0 0.0
    %1356 = vmatpush1.msra.mxu0 0.0
    %1357 = vmatprep.subr.mxu0 0.0
    %1358 = vmatpush1.msra.mxu0 0.0
    %1359 = vmatprep.subr.mxu0 0.0
    %1360 = vmatpush1.msra.mxu0 0.0
    %1361 = vmatprep.subr.mxu0 0.0
    %1362 = vmatpush1.msra.mxu0 0.0
    %1363 = vmatprep.subr.mxu0 0.0
    %1364 = vmatpush1.msra.mxu0 0.0
    %1365 = vmatprep.subr.mxu0 0.0
    %1366 = vmatpush1.msra.mxu0 0.0
    %1367 = vmatprep.subr.mxu0 0.0
    %1368 = vmatpush1.msra.mxu0 0.0
    %1369 = vmatprep.subr.mxu0 0.0
    %1370 = vmatpush1.msra.mxu0 0.0
    %1371 = vmatprep.subr.mxu0 0.0
    %1372 = vmatpush1.msra.mxu0 0.0
    %1373 = vmatprep.subr.mxu0 0.0
    %1374 = vmatpush1.msra.mxu0 0.0
    %1375 = vmatprep.subr.mxu0 0.0
    %1376 = vmatpush1.msra.mxu0 0.0
    %1377 = vmatprep.subr.mxu0 0.0
    %1378 = vmatpush1.msra.mxu0 0.0
    %1379 = vmatprep.subr.mxu0 0.0
    %1380 = vmatpush1.msra.mxu0 0.0
    %1381 = vmatprep.subr.mxu0 0.0
    %1382 = vmatpush1.msra.mxu0 0.0
    %1383 = vmatprep.subr.mxu0 0.0
    %1384 = vmatpush1.msra.mxu0 0.0
    %1385 = vmatprep.subr.mxu0 0.0
    %1386 = vmatpush1.msra.mxu0 0.0
    %1387 = vmatprep.subr.mxu0 0.0
    %1388 = vmatpush1.msra.mxu0 0.0
    %1389 = vmatprep.subr.mxu0 0.0
    %1390 = vmatpush1.msra.mxu0 0.0
    %1391 = vmatprep.subr.mxu0 0.0
    %1392 = vmatpush1.msra.mxu0 0.0
    %1393 = vmatprep.subr.mxu0 0.0
    %1394 = vmatpush1.msra.mxu0 0.0
    %1395 = vmatprep.subr.mxu0 0.0
    %1396 = vmatpush1.msra.mxu0 0.0
    %1397 = vmatprep.subr.mxu0 0.0
    %1398 = vmatpush1.msra.mxu0 0.0
    %1399 = vmatprep.subr.mxu0 0.0
    %1400 = vmatpush1.msra.mxu0 0.0
    %1401 = vmatprep.subr.mxu0 0.0
    %1402 = vmatpush1.msra.mxu0 0.0
    %1403 = vmatprep.subr.mxu0 0.0
    %1404 = vmatpush1.msra.mxu0 0.0
    %1405 = vmatprep.subr.mxu0 0.0
    %1406 = vmatpush1.msra.mxu0 0.0
    %1407 = vmatprep.mubr.f32.mxu0 0.0
    %1408 = vmatmul.mubr.f32.gmra.mrb[0].mxu0 %v1338
    %v1409 = vpop.f32.mrb[0].mxu0
    %v1410 = vadd.f32 0.0, %v1409
    %v1411 = vpop.f32.mrb[0].mxu0
    %1412 = vmatprep.mubr.f32.mxu0 0.0
    %1413 = vmatmul.mubr.f32.gmra.mrb[0].mxu0 %v1341
    %v1414 = vpop.f32.mrb[0].mxu0
    %v1415 = vadd.f32 0.0, %v1414
    %v1416 = vpop.f32.mrb[0].mxu0
    %1417 = vdwg.mxu0
    %v1418 = vld [vmem:[#allocation7] sm:$0xff]
    %v1419 = vld [vmem:[#allocation7 + $0x8] sm:$0xff]
    %v1420 = vld [vmem:[#allocation7 + $0x10] sm:$0xff]
    %v1421 = vld [vmem:[#allocation7 + $0x18] sm:$0xff]
    %v1422 = vld [vmem:[#allocation7 + $0x20] sm:$0xff]
    %v1423 = vld [vmem:[#allocation7 + $0x28] sm:$0xff]
    %v1424 = vld [vmem:[#allocation7 + $0x30] sm:$0xff]
    %v1425 = vld [vmem:[#allocation7 + $0x38] sm:$0xff]
    %v1427 = vsel %vm243, %v1410, 0
    %v1430 = vsel %vm243, %v1415, 0
    %1432 = vmatprep.subr.mxu0 0.0
    %1433 = vmatpush1.msra.mxu0 %v1418
    %1434 = vmatprep.subr.mxu0 0.0
    %1435 = vmatpush1.msra.mxu0 %v1419
    %1436 = vmatprep.subr.mxu0 0.0
    %1437 = vmatpush1.msra.mxu0 %v1420
    %1438 = vmatprep.subr.mxu0 0.0
    %1439 = vmatpush1.msra.mxu0 %v1421
    %1440 = vmatprep.subr.mxu0 0.0
    %1441 = vmatpush1.msra.mxu0 %v1422
    %1442 = vmatprep.subr.mxu0 0.0
    %1443 = vmatpush1.msra.mxu0 %v1423
    %1444 = vmatprep.subr.mxu0 0.0
    %1445 = vmatpush1.msra.mxu0 %v1424
    %1446 = vmatprep.subr.mxu0 0.0
    %1447 = vmatpush1.msra.mxu0 %v1425
    %1448 = vmatprep.subr.mxu0 0.0
    %1449 = vmatpush1.msra.mxu0 0.0
    %1450 = vmatprep.subr.mxu0 0.0
    %1451 = vmatpush1.msra.mxu0 0.0
    %1452 = vmatprep.subr.mxu0 0.0
    %1453 = vmatpush1.msra.mxu0 0.0
    %1454 = vmatprep.subr.mxu0 0.0
    %1455 = vmatpush1.msra.mxu0 0.0
    %1456 = vmatprep.subr.mxu0 0.0
    %1457 = vmatpush1.msra.mxu0 0.0
    %1458 = vmatprep.subr.mxu0 0.0
    %1459 = vmatpush1.msra.mxu0 0.0
    %1460 = vmatprep.subr.mxu0 0.0
    %1461 = vmatpush1.msra.mxu0 0.0
    %1462 = vmatprep.subr.mxu0 0.0
    %1463 = vmatpush1.msra.mxu0 0.0
    %1464 = vmatprep.subr.mxu0 0.0
    %1465 = vmatpush1.msra.mxu0 0.0
    %1466 = vmatprep.subr.mxu0 0.0
    %1467 = vmatpush1.msra.mxu0 0.0
    %1468 = vmatprep.subr.mxu0 0.0
    %1469 = vmatpush1.msra.mxu0 0.0
    %1470 = vmatprep.subr.mxu0 0.0
    %1471 = vmatpush1.msra.mxu0 0.0
    %1472 = vmatprep.subr.mxu0 0.0
    %1473 = vmatpush1.msra.mxu0 0.0
    %1474 = vmatprep.subr.mxu0 0.0
    %1475 = vmatpush1.msra.mxu0 0.0
    %1476 = vmatprep.subr.mxu0 0.0
    %1477 = vmatpush1.msra.mxu0 0.0
    %1478 = vmatprep.subr.mxu0 0.0
    %1479 = vmatpush1.msra.mxu0 0.0
    %1480 = vmatprep.subr.mxu0 0.0
    %1481 = vmatpush1.msra.mxu0 0.0
    %1482 = vmatprep.subr.mxu0 0.0
    %1483 = vmatpush1.msra.mxu0 0.0
    %1484 = vmatprep.subr.mxu0 0.0
    %1485 = vmatpush1.msra.mxu0 0.0
    %1486 = vmatprep.subr.mxu0 0.0
    %1487 = vmatpush1.msra.mxu0 0.0
    %1488 = vmatprep.subr.mxu0 0.0
    %1489 = vmatpush1.msra.mxu0 0.0
    %1490 = vmatprep.subr.mxu0 0.0
    %1491 = vmatpush1.msra.mxu0 0.0
    %1492 = vmatprep.subr.mxu0 0.0
    %1493 = vmatpush1.msra.mxu0 0.0
    %1494 = vmatprep.subr.mxu0 0.0
    %1495 = vmatpush1.msra.mxu0 0.0
    %1496 = vmatprep.mubr.f32.mxu0 0.0
    %1497 = vmatmul.mubr.f32.gmra.mrb[0].mxu0 %v1427
    %v1498 = vpop.f32.mrb[0].mxu0
    %v1499 = vadd.f32 0.0, %v1498
    %v1500 = vpop.f32.mrb[0].mxu0
    %1501 = vmatprep.mubr.f32.mxu0 0.0
    %1502 = vmatmul.mubr.f32.gmra.mrb[0].mxu0 %v1430
    %v1503 = vpop.f32.mrb[0].mxu0
    %v1504 = vadd.f32 0.0, %v1503
    %v1505 = vpop.f32.mrb[0].mxu0
    %1506 = vdwg.mxu0
    %v1507 = vmax.f32 %v1499, 0.0
    %v1508 = vmax.f32 %v1504, 0.0
    %v1509 = vadd.f32 %v1507, %v1332
    %v1510 = vadd.f32 %v1508, %v1333
    %v1513 = vrot.slane %v1509, 7
    %v1514 = vrot.slane %v1510, 7
    %v1515 = vsel %vm218, %v1513, %v1514
    %v1518 = vsel %vm218, 0.0, %v1513
    %v1519 = vmul.f32 %v1518, %v197
    %v1520 = vmul.f32 %v1515, %v198
    %v1521 = vrot.slane %v1509, 1
    %v1522 = vrot.slane %v1510, 1
    %v1523 = vsel %vm223, %v1521, %v1522
    %v1526 = vsel %vm223, %v1522, 0.0
    %v1527 = vmul.f32 %v1523, %v201
    %v1528 = vmul.f32 %v1526, %v202
    %s1529 = scalar_lea.vmem [#allocation9], 96
    %v1530 = vld [vmem:[%s1529] sm:$0xff]
    %v1531 = vld [vmem:[%s1529 + $0x8] sm:$0xff]
    %v1532 = vld [vmem:[%s1529 + $0x10] sm:$0xff]
    %v1533 = vld [vmem:[%s1529 + $0x18] sm:$0xff]
    %v1534 = vld [vmem:[%s1529 + $0x20] sm:$0xff]
    %v1535 = vld [vmem:[%s1529 + $0x28] sm:$0xff]
    %v1536 = vld [vmem:[%s1529 + $0x30] sm:$0xff]
    %v1537 = vld [vmem:[%s1529 + $0x38] sm:$0xff]
    %v1538 = vld [vmem:[%s1529 + $0x40] sm:$0xff]
    %v1539 = vld [vmem:[%s1529 + $0x48] sm:$0xff]
    %v1540 = vld [vmem:[%s1529 + $0x50] sm:$0xff]
    %v1541 = vld [vmem:[%s1529 + $0x58] sm:$0xff]
    %v1542 = vld [vmem:[#allocation9] sm:$0xff]
    %v1543 = vld [vmem:[#allocation9 + $0x8] sm:$0xff]
    %v1544 = vld [vmem:[#allocation9 + $0x10] sm:$0xff]
    %v1545 = vld [vmem:[#allocation9 + $0x18] sm:$0xff]
    %v1546 = vld [vmem:[#allocation9 + $0x20] sm:$0xff]
    %v1547 = vld [vmem:[#allocation9 + $0x28] sm:$0xff]
    %v1548 = vld [vmem:[#allocation9 + $0x30] sm:$0xff]
    %v1549 = vld [vmem:[#allocation9 + $0x38] sm:$0xff]
    %v1550 = vld [vmem:[#allocation9 + $0x40] sm:$0xff]
    %v1551 = vld [vmem:[#allocation9 + $0x48] sm:$0xff]
    %v1552 = vld [vmem:[#allocation9 + $0x50] sm:$0xff]
    %v1553 = vld [vmem:[#allocation9 + $0x58] sm:$0xff]
    %v1555 = vsel %vm772, %v1519, 0
    %v1558 = vsel %vm772, %v1520, 0
    %1560 = vmatprep.subr.mxu0 0.0
    %1561 = vmatpush1.msra.mxu0 %v1542
    %1562 = vmatprep.subr.mxu0 0.0
    %1563 = vmatpush1.msra.mxu0 %v1543
    %1564 = vmatprep.subr.mxu0 0.0
    %1565 = vmatpush1.msra.mxu0 %v1544
    %1566 = vmatprep.subr.mxu0 0.0
    %1567 = vmatpush1.msra.mxu0 %v1545
    %1568 = vmatprep.subr.mxu0 0.0
    %1569 = vmatpush1.msra.mxu0 %v1546
    %1570 = vmatprep.subr.mxu0 0.0
    %1571 = vmatpush1.msra.mxu0 %v1547
    %1572 = vmatprep.subr.mxu0 0.0
    %1573 = vmatpush1.msra.mxu0 %v1548
    %1574 = vmatprep.subr.mxu0 0.0
    %1575 = vmatpush1.msra.mxu0 %v1549
    %1576 = vmatprep.subr.mxu0 0.0
    %1577 = vmatpush1.msra.mxu0 %v1550
    %1578 = vmatprep.subr.mxu0 0.0
    %1579 = vmatpush1.msra.mxu0 %v1551
    %1580 = vmatprep.subr.mxu0 0.0
    %1581 = vmatpush1.msra.mxu0 %v1552
    %1582 = vmatprep.subr.mxu0 0.0
    %1583 = vmatpush1.msra.mxu0 %v1553
    %1584 = vmatprep.subr.mxu0 0.0
    %1585 = vmatpush1.msra.mxu0 0.0
    %1586 = vmatprep.subr.mxu0 0.0
    %1587 = vmatpush1.msra.mxu0 0.0
    %1588 = vmatprep.subr.mxu0 0.0
    %1589 = vmatpush1.msra.mxu0 0.0
    %1590 = vmatprep.subr.mxu0 0.0
    %1591 = vmatpush1.msra.mxu0 0.0
    %1592 = vmatprep.subr.mxu0 0.0
    %1593 = vmatpush1.msra.mxu0 0.0
    %1594 = vmatprep.subr.mxu0 0.0
    %1595 = vmatpush1.msra.mxu0 0.0
    %1596 = vmatprep.subr.mxu0 0.0
    %1597 = vmatpush1.msra.mxu0 0.0
    %1598 = vmatprep.subr.mxu0 0.0
    %1599 = vmatpush1.msra.mxu0 0.0
    %1600 = vmatprep.subr.mxu0 0.0
    %1601 = vmatpush1.msra.mxu0 0.0
    %1602 = vmatprep.subr.mxu0 0.0
    %1603 = vmatpush1.msra.mxu0 0.0
    %1604 = vmatprep.subr.mxu0 0.0
    %1605 = vmatpush1.msra.mxu0 0.0
    %1606 = vmatprep.subr.mxu0 0.0
    %1607 = vmatpush1.msra.mxu0 0.0
    %1608 = vmatprep.subr.mxu0 0.0
    %1609 = vmatpush1.msra.mxu0 0.0
    %1610 = vmatprep.subr.mxu0 0.0
    %1611 = vmatpush1.msra.mxu0 0.0
    %1612 = vmatprep.subr.mxu0 0.0
    %1613 = vmatpush1.msra.mxu0 0.0
    %1614 = vmatprep.subr.mxu0 0.0
    %1615 = vmatpush1.msra.mxu0 0.0
    %1616 = vmatprep.subr.mxu0 0.0
    %1617 = vmatpush1.msra.mxu0 0.0
    %1618 = vmatprep.subr.mxu0 0.0
    %1619 = vmatpush1.msra.mxu0 0.0
    %1620 = vmatprep.subr.mxu0 0.0
    %1621 = vmatpush1.msra.mxu0 0.0
    %1622 = vmatprep.subr.mxu0 0.0
    %1623 = vmatpush1.msra.mxu0 0.0
    %1624 = vmatprep.mubr.f32.mxu0 0.0
    %1625 = vmatmul.mubr.f32.gmra.mrb[0].mxu0 %v1555
    %v1626 = vpop.f32.mrb[0].mxu0
    %v1627 = vadd.f32 0.0, %v1626
    %v1628 = vpop.f32.mrb[0].mxu0
    %1629 = vmatprep.mubr.f32.mxu0 0.0
    %1630 = vmatmul.mubr.f32.gmra.mrb[0].mxu0 %v1558
    %v1631 = vpop.f32.mrb[0].mxu0
    %v1632 = vadd.f32 0.0, %v1631
    %v1633 = vpop.f32.mrb[0].mxu0
    %1634 = vdwg.mxu0
    %v1635 = vsel %vm772, %v1509, 0
    %v1637 = vsel %vm772, %v1510, 0
    %1639 = vmatprep.subr.mxu0 0.0
    %1640 = vmatpush1.msra.mxu0 %v1530
    %1641 = vmatprep.subr.mxu0 0.0
    %1642 = vmatpush1.msra.mxu0 %v1531
    %1643 = vmatprep.subr.mxu0 0.0
    %1644 = vmatpush1.msra.mxu0 %v1532
    %1645 = vmatprep.subr.mxu0 0.0
    %1646 = vmatpush1.msra.mxu0 %v1533
    %1647 = vmatprep.subr.mxu0 0.0
    %1648 = vmatpush1.msra.mxu0 %v1534
    %1649 = vmatprep.subr.mxu0 0.0
    %1650 = vmatpush1.msra.mxu0 %v1535
    %1651 = vmatprep.subr.mxu0 0.0
    %1652 = vmatpush1.msra.mxu0 %v1536
    %1653 = vmatprep.subr.mxu0 0.0
    %1654 = vmatpush1.msra.mxu0 %v1537
    %1655 = vmatprep.subr.mxu0 0.0
    %1656 = vmatpush1.msra.mxu0 %v1538
    %1657 = vmatprep.subr.mxu0 0.0
    %1658 = vmatpush1.msra.mxu0 %v1539
    %1659 = vmatprep.subr.mxu0 0.0
    %1660 = vmatpush1.msra.mxu0 %v1540
    %1661 = vmatprep.subr.mxu0 0.0
    %1662 = vmatpush1.msra.mxu0 %v1541
    %1663 = vmatprep.subr.mxu0 0.0
    %1664 = vmatpush1.msra.mxu0 0.0
    %1665 = vmatprep.subr.mxu0 0.0
    %1666 = vmatpush1.msra.mxu0 0.0
    %1667 = vmatprep.subr.mxu0 0.0
    %1668 = vmatpush1.msra.mxu0 0.0
    %1669 = vmatprep.subr.mxu0 0.0
    %1670 = vmatpush1.msra.mxu0 0.0
    %1671 = vmatprep.subr.mxu0 0.0
    %1672 = vmatpush1.msra.mxu0 0.0
    %1673 = vmatprep.subr.mxu0 0.0
    %1674 = vmatpush1.msra.mxu0 0.0
    %1675 = vmatprep.subr.mxu0 0.0
    %1676 = vmatpush1.msra.mxu0 0.0
    %1677 = vmatprep.subr.mxu0 0.0
    %1678 = vmatpush1.msra.mxu0 0.0
    %1679 = vmatprep.subr.mxu0 0.0
    %1680 = vmatpush1.msra.mxu0 0.0
    %1681 = vmatprep.subr.mxu0 0.0
    %1682 = vmatpush1.msra.mxu0 0.0
    %1683 = vmatprep.subr.mxu0 0.0
    %1684 = vmatpush1.msra.mxu0 0.0
    %1685 = vmatprep.subr.mxu0 0.0
    %1686 = vmatpush1.msra.mxu0 0.0
    %1687 = vmatprep.subr.mxu0 0.0
    %1688 = vmatpush1.msra.mxu0 0.0
    %1689 = vmatprep.subr.mxu0 0.0
    %1690 = vmatpush1.msra.mxu0 0.0
    %1691 = vmatprep.subr.mxu0 0.0
    %1692 = vmatpush1.msra.mxu0 0.0
    %1693 = vmatprep.subr.mxu0 0.0
    %1694 = vmatpush1.msra.mxu0 0.0
    %1695 = vmatprep.subr.mxu0 0.0
    %1696 = vmatpush1.msra.mxu0 0.0
    %1697 = vmatprep.subr.mxu0 0.0
    %1698 = vmatpush1.msra.mxu0 0.0
    %1699 = vmatprep.subr.mxu0 0.0
    %1700 = vmatpush1.msra.mxu0 0.0
    %1701 = vmatprep.subr.mxu0 0.0
    %1702 = vmatpush1.msra.mxu0 0.0
    %1703 = vmatprep.mubr.f32.mxu0 0.0
    %1704 = vmatmul.mubr.f32.gmra.mrb[0].mxu0 %v1635
    %v1705 = vpop.f32.mrb[0].mxu0
    %v1706 = vadd.f32 %v1627, %v1705
    %v1707 = vpop.f32.mrb[0].mxu0
    %1708 = vmatprep.mubr.f32.mxu0 0.0
    %1709 = vmatmul.mubr.f32.gmra.mrb[0].mxu0 %v1637
    %v1710 = vpop.f32.mrb[0].mxu0
    %v1711 = vadd.f32 %v1632, %v1710
    %v1712 = vpop.f32.mrb[0].mxu0
    %1713 = vdwg.mxu0
    %s1714 = scalar_lea.vmem [#allocation9], 192
    %v1715 = vld [vmem:[%s1714] sm:$0xff]
    %v1716 = vld [vmem:[%s1714 + $0x8] sm:$0xff]
    %v1717 = vld [vmem:[%s1714 + $0x10] sm:$0xff]
    %v1718 = vld [vmem:[%s1714 + $0x18] sm:$0xff]
    %v1719 = vld [vmem:[%s1714 + $0x20] sm:$0xff]
    %v1720 = vld [vmem:[%s1714 + $0x28] sm:$0xff]
    %v1721 = vld [vmem:[%s1714 + $0x30] sm:$0xff]
    %v1722 = vld [vmem:[%s1714 + $0x38] sm:$0xff]
    %v1723 = vld [vmem:[%s1714 + $0x40] sm:$0xff]
    %v1724 = vld [vmem:[%s1714 + $0x48] sm:$0xff]
    %v1725 = vld [vmem:[%s1714 + $0x50] sm:$0xff]
    %v1726 = vld [vmem:[%s1714 + $0x58] sm:$0xff]
    %v1728 = vsel %vm772, %v1527, 0
    %v1731 = vsel %vm772, %v1528, 0
    %1733 = vmatprep.subr.mxu0 0.0
    %1734 = vmatpush1.msra.mxu0 %v1715
    %1735 = vmatprep.subr.mxu0 0.0
    %1736 = vmatpush1.msra.mxu0 %v1716
    %1737 = vmatprep.subr.mxu0 0.0
    %1738 = vmatpush1.msra.mxu0 %v1717
    %1739 = vmatprep.subr.mxu0 0.0
    %1740 = vmatpush1.msra.mxu0 %v1718
    %1741 = vmatprep.subr.mxu0 0.0
    %1742 = vmatpush1.msra.mxu0 %v1719
    %1743 = vmatprep.subr.mxu0 0.0
    %1744 = vmatpush1.msra.mxu0 %v1720
    %1745 = vmatprep.subr.mxu0 0.0
    %1746 = vmatpush1.msra.mxu0 %v1721
    %1747 = vmatprep.subr.mxu0 0.0
    %1748 = vmatpush1.msra.mxu0 %v1722
    %1749 = vmatprep.subr.mxu0 0.0
    %1750 = vmatpush1.msra.mxu0 %v1723
    %1751 = vmatprep.subr.mxu0 0.0
    %1752 = vmatpush1.msra.mxu0 %v1724
    %1753 = vmatprep.subr.mxu0 0.0
    %1754 = vmatpush1.msra.mxu0 %v1725
    %1755 = vmatprep.subr.mxu0 0.0
    %1756 = vmatpush1.msra.mxu0 %v1726
    %1757 = vmatprep.subr.mxu0 0.0
    %1758 = vmatpush1.msra.mxu0 0.0
    %1759 = vmatprep.subr.mxu0 0.0
    %1760 = vmatpush1.msra.mxu0 0.0
    %1761 = vmatprep.subr.mxu0 0.0
    %1762 = vmatpush1.msra.mxu0 0.0
    %1763 = vmatprep.subr.mxu0 0.0
    %1764 = vmatpush1.msra.mxu0 0.0
    %1765 = vmatprep.subr.mxu0 0.0
    %1766 = vmatpush1.msra.mxu0 0.0
    %1767 = vmatprep.subr.mxu0 0.0
    %1768 = vmatpush1.msra.mxu0 0.0
    %1769 = vmatprep.subr.mxu0 0.0
    %1770 = vmatpush1.msra.mxu0 0.0
    %1771 = vmatprep.subr.mxu0 0.0
    %1772 = vmatpush1.msra.mxu0 0.0
    %1773 = vmatprep.subr.mxu0 0.0
    %1774 = vmatpush1.msra.mxu0 0.0
    %1775 = vmatprep.subr.mxu0 0.0
    %1776 = vmatpush1.msra.mxu0 0.0
    %1777 = vmatprep.subr.mxu0 0.0
    %1778 = vmatpush1.msra.mxu0 0.0
    %1779 = vmatprep.subr.mxu0 0.0
    %1780 = vmatpush1.msra.mxu0 0.0
    %1781 = vmatprep.subr.mxu0 0.0
    %1782 = vmatpush1.msra.mxu0 0.0
    %1783 = vmatprep.subr.mxu0 0.0
    %1784 = vmatpush1.msra.mxu0 0.0
    %1785 = vmatprep.subr.mxu0 0.0
    %1786 = vmatpush1.msra.mxu0 0.0
    %1787 = vmatprep.subr.mxu0 0.0
    %1788 = vmatpush1.msra.mxu0 0.0
    %1789 = vmatprep.subr.mxu0 0.0
    %1790 = vmatpush1.msra.mxu0 0.0
    %1791 = vmatprep.subr.mxu0 0.0
    %1792 = vmatpush1.msra.mxu0 0.0
    %1793 = vmatprep.subr.mxu0 0.0
    %1794 = vmatpush1.msra.mxu0 0.0
    %1795 = vmatprep.subr.mxu0 0.0
    %1796 = vmatpush1.msra.mxu0 0.0
    %1797 = vmatprep.mubr.f32.mxu0 0.0
    %1798 = vmatmul.mubr.f32.gmra.mrb[0].mxu0 %v1728
    %v1799 = vpop.f32.mrb[0].mxu0
    %v1800 = vadd.f32 0.0, %v1799
    %v1801 = vpop.f32.mrb[0].mxu0
    %1802 = vmatprep.mubr.f32.mxu0 0.0
    %1803 = vmatmul.mubr.f32.gmra.mrb[0].mxu0 %v1731
    %v1804 = vpop.f32.mrb[0].mxu0
    %v1805 = vadd.f32 0.0, %v1804
    %v1806 = vpop.f32.mrb[0].mxu0
    %1807 = vdwg.mxu0
    %v1808 = vadd.f32 %v1706, %v1800
    %v1809 = vadd.f32 %v1711, %v1805
    %v1810 = vmax.f32 %v1808, 0.0
    %v1811 = vmax.f32 %v1809, 0.0
    %v1814 = vrot.slane %v1810, 7
    %v1815 = vrot.slane %v1811, 7
    %v1816 = vsel %vm218, %v1814, %v1815
    %v1819 = vsel %vm218, 0.0, %v1814
    %v1820 = vmul.f32 %v1819, %v197
    %v1821 = vmul.f32 %v1816, %v198
    %v1822 = vrot.slane %v1810, 1
    %v1823 = vrot.slane %v1811, 1
    %v1824 = vsel %vm223, %v1822, %v1823
    %v1827 = vsel %vm223, %v1823, 0.0
    %v1828 = vmul.f32 %v1824, %v201
    %v1829 = vmul.f32 %v1827, %v202
    %s1830 = scalar_lea.vmem [#allocation10], 96
    %v1831 = vld [vmem:[%s1830] sm:$0xff]
    %v1832 = vld [vmem:[%s1830 + $0x8] sm:$0xff]
    %v1833 = vld [vmem:[%s1830 + $0x10] sm:$0xff]
    %v1834 = vld [vmem:[%s1830 + $0x18] sm:$0xff]
    %v1835 = vld [vmem:[%s1830 + $0x20] sm:$0xff]
    %v1836 = vld [vmem:[%s1830 + $0x28] sm:$0xff]
    %v1837 = vld [vmem:[%s1830 + $0x30] sm:$0xff]
    %v1838 = vld [vmem:[%s1830 + $0x38] sm:$0xff]
    %v1839 = vld [vmem:[%s1830 + $0x40] sm:$0xff]
    %v1840 = vld [vmem:[%s1830 + $0x48] sm:$0xff]
    %v1841 = vld [vmem:[%s1830 + $0x50] sm:$0xff]
    %v1842 = vld [vmem:[%s1830 + $0x58] sm:$0xff]
    %v1843 = vld [vmem:[#allocation10] sm:$0xff]
    %v1844 = vld [vmem:[#allocation10 + $0x8] sm:$0xff]
    %v1845 = vld [vmem:[#allocation10 + $0x10] sm:$0xff]
    %v1846 = vld [vmem:[#allocation10 + $0x18] sm:$0xff]
    %v1847 = vld [vmem:[#allocation10 + $0x20] sm:$0xff]
    %v1848 = vld [vmem:[#allocation10 + $0x28] sm:$0xff]
    %v1849 = vld [vmem:[#allocation10 + $0x30] sm:$0xff]
    %v1850 = vld [vmem:[#allocation10 + $0x38] sm:$0xff]
    %v1851 = vld [vmem:[#allocation10 + $0x40] sm:$0xff]
    %v1852 = vld [vmem:[#allocation10 + $0x48] sm:$0xff]
    %v1853 = vld [vmem:[#allocation10 + $0x50] sm:$0xff]
    %v1854 = vld [vmem:[#allocation10 + $0x58] sm:$0xff]
    %v1856 = vsel %vm772, %v1820, 0
    %v1859 = vsel %vm772, %v1821, 0
    %1861 = vmatprep.subr.mxu0 0.0
    %1862 = vmatpush1.msra.mxu0 %v1843
    %1863 = vmatprep.subr.mxu0 0.0
    %1864 = vmatpush1.msra.mxu0 %v1844
    %1865 = vmatprep.subr.mxu0 0.0
    %1866 = vmatpush1.msra.mxu0 %v1845
    %1867 = vmatprep.subr.mxu0 0.0
    %1868 = vmatpush1.msra.mxu0 %v1846
    %1869 = vmatprep.subr.mxu0 0.0
    %1870 = vmatpush1.msra.mxu0 %v1847
    %1871 = vmatprep.subr.mxu0 0.0
    %1872 = vmatpush1.msra.mxu0 %v1848
    %1873 = vmatprep.subr.mxu0 0.0
    %1874 = vmatpush1.msra.mxu0 %v1849
    %1875 = vmatprep.subr.mxu0 0.0
    %1876 = vmatpush1.msra.mxu0 %v1850
    %1877 = vmatprep.subr.mxu0 0.0
    %1878 = vmatpush1.msra.mxu0 %v1851
    %1879 = vmatprep.subr.mxu0 0.0
    %1880 = vmatpush1.msra.mxu0 %v1852
    %1881 = vmatprep.subr.mxu0 0.0
    %1882 = vmatpush1.msra.mxu0 %v1853
    %1883 = vmatprep.subr.mxu0 0.0
    %1884 = vmatpush1.msra.mxu0 %v1854
    %1885 = vmatprep.subr.mxu0 0.0
    %1886 = vmatpush1.msra.mxu0 0.0
    %1887 = vmatprep.subr.mxu0 0.0
    %1888 = vmatpush1.msra.mxu0 0.0
    %1889 = vmatprep.subr.mxu0 0.0
    %1890 = vmatpush1.msra.mxu0 0.0
    %1891 = vmatprep.subr.mxu0 0.0
    %1892 = vmatpush1.msra.mxu0 0.0
    %1893 = vmatprep.subr.mxu0 0.0
    %1894 = vmatpush1.msra.mxu0 0.0
    %1895 = vmatprep.subr.mxu0 0.0
    %1896 = vmatpush1.msra.mxu0 0.0
    %1897 = vmatprep.subr.mxu0 0.0
    %1898 = vmatpush1.msra.mxu0 0.0
    %1899 = vmatprep.subr.mxu0 0.0
    %1900 = vmatpush1.msra.mxu0 0.0
    %1901 = vmatprep.subr.mxu0 0.0
    %1902 = vmatpush1.msra.mxu0 0.0
    %1903 = vmatprep.subr.mxu0 0.0
    %1904 = vmatpush1.msra.mxu0 0.0
    %1905 = vmatprep.subr.mxu0 0.0
    %1906 = vmatpush1.msra.mxu0 0.0
    %1907 = vmatprep.subr.mxu0 0.0
    %1908 = vmatpush1.msra.mxu0 0.0
    %1909 = vmatprep.subr.mxu0 0.0
    %1910 = vmatpush1.msra.mxu0 0.0
    %1911 = vmatprep.subr.mxu0 0.0
    %1912 = vmatpush1.msra.mxu0 0.0
    %1913 = vmatprep.subr.mxu0 0.0
    %1914 = vmatpush1.msra.mxu0 0.0
    %1915 = vmatprep.subr.mxu0 0.0
    %1916 = vmatpush1.msra.mxu0 0.0
    %1917 = vmatprep.subr.mxu0 0.0
    %1918 = vmatpush1.msra.mxu0 0.0
    %1919 = vmatprep.subr.mxu0 0.0
    %1920 = vmatpush1.msra.mxu0 0.0
    %1921 = vmatprep.subr.mxu0 0.0
    %1922 = vmatpush1.msra.mxu0 0.0
    %1923 = vmatprep.subr.mxu0 0.0
    %1924 = vmatpush1.msra.mxu0 0.0
    %1925 = vmatprep.mubr.f32.mxu0 0.0
    %1926 = vmatmul.mubr.f32.gmra.mrb[0].mxu0 %v1856
    %v1927 = vpop.f32.mrb[0].mxu0
    %v1928 = vadd.f32 0.0, %v1927
    %v1929 = vpop.f32.mrb[0].mxu0
    %1930 = vmatprep.mubr.f32.mxu0 0.0
    %1931 = vmatmul.mubr.f32.gmra.mrb[0].mxu0 %v1859
    %v1932 = vpop.f32.mrb[0].mxu0
    %v1933 = vadd.f32 0.0, %v1932
    %v1934 = vpop.f32.mrb[0].mxu0
    %1935 = vdwg.mxu0
    %v1936 = vsel %vm772, %v1810, 0
    %v1938 = vsel %vm772, %v1811, 0
    %1940 = vmatprep.subr.mxu0 0.0
    %1941 = vmatpush1.msra.mxu0 %v1831
    %1942 = vmatprep.subr.mxu0 0.0
    %1943 = vmatpush1.msra.mxu0 %v1832
    %1944 = vmatprep.subr.mxu0 0.0
    %1945 = vmatpush1.msra.mxu0 %v1833
    %1946 = vmatprep.subr.mxu0 0.0
    %1947 = vmatpush1.msra.mxu0 %v1834
    %1948 = vmatprep.subr.mxu0 0.0
    %1949 = vmatpush1.msra.mxu0 %v1835
    %1950 = vmatprep.subr.mxu0 0.0
    %1951 = vmatpush1.msra.mxu0 %v1836
    %1952 = vmatprep.subr.mxu0 0.0
    %1953 = vmatpush1.msra.mxu0 %v1837
    %1954 = vmatprep.subr.mxu0 0.0
    %1955 = vmatpush1.msra.mxu0 %v1838
    %1956 = vmatprep.subr.mxu0 0.0
    %1957 = vmatpush1.msra.mxu0 %v1839
    %1958 = vmatprep.subr.mxu0 0.0
    %1959 = vmatpush1.msra.mxu0 %v1840
    %1960 = vmatprep.subr.mxu0 0.0
    %1961 = vmatpush1.msra.mxu0 %v1841
    %1962 = vmatprep.subr.mxu0 0.0
    %1963 = vmatpush1.msra.mxu0 %v1842
    %1964 = vmatprep.subr.mxu0 0.0
    %1965 = vmatpush1.msra.mxu0 0.0
    %1966 = vmatprep.subr.mxu0 0.0
    %1967 = vmatpush1.msra.mxu0 0.0
    %1968 = vmatprep.subr.mxu0 0.0
    %1969 = vmatpush1.msra.mxu0 0.0
    %1970 = vmatprep.subr.mxu0 0.0
    %1971 = vmatpush1.msra.mxu0 0.0
    %1972 = vmatprep.subr.mxu0 0.0
    %1973 = vmatpush1.msra.mxu0 0.0
    %1974 = vmatprep.subr.mxu0 0.0
    %1975 = vmatpush1.msra.mxu0 0.0
    %1976 = vmatprep.subr.mxu0 0.0
    %1977 = vmatpush1.msra.mxu0 0.0
    %1978 = vmatprep.subr.mxu0 0.0
    %1979 = vmatpush1.msra.mxu0 0.0
    %1980 = vmatprep.subr.mxu0 0.0
    %1981 = vmatpush1.msra.mxu0 0.0
    %1982 = vmatprep.subr.mxu0 0.0
    %1983 = vmatpush1.msra.mxu0 0.0
    %1984 = vmatprep.subr.mxu0 0.0
    %1985 = vmatpush1.msra.mxu0 0.0
    %1986 = vmatprep.subr.mxu0 0.0
    %1987 = vmatpush1.msra.mxu0 0.0
    %1988 = vmatprep.subr.mxu0 0.0
    %1989 = vmatpush1.msra.mxu0 0.0
    %1990 = vmatprep.subr.mxu0 0.0
    %1991 = vmatpush1.msra.mxu0 0.0
    %1992 = vmatprep.subr.mxu0 0.0
    %1993 = vmatpush1.msra.mxu0 0.0
    %1994 = vmatprep.subr.mxu0 0.0
    %1995 = vmatpush1.msra.mxu0 0.0
    %1996 = vmatprep.subr.mxu0 0.0
    %1997 = vmatpush1.msra.mxu0 0.0
    %1998 = vmatprep.subr.mxu0 0.0
    %1999 = vmatpush1.msra.mxu0 0.0
    %2000 = vmatprep.subr.mxu0 0.0
    %2001 = vmatpush1.msra.mxu0 0.0
    %2002 = vmatprep.subr.mxu0 0.0
    %2003 = vmatpush1.msra.mxu0 0.0
    %2004 = vmatprep.mubr.f32.mxu0 0.0
    %2005 = vmatmul.mubr.f32.gmra.mrb[0].mxu0 %v1936
    %v2006 = vpop.f32.mrb[0].mxu0
    %v2007 = vadd.f32 %v1928, %v2006
    %v2008 = vpop.f32.mrb[0].mxu0
    %2009 = vmatprep.mubr.f32.mxu0 0.0
    %2010 = vmatmul.mubr.f32.gmra.mrb[0].mxu0 %v1938
    %v2011 = vpop.f32.mrb[0].mxu0
    %v2012 = vadd.f32 %v1933, %v2011
    %v2013 = vpop.f32.mrb[0].mxu0
    %2014 = vdwg.mxu0
    %s2015 = scalar_lea.vmem [#allocation10], 192
    %v2016 = vld [vmem:[%s2015] sm:$0xff]
    %v2017 = vld [vmem:[%s2015 + $0x8] sm:$0xff]
    %v2018 = vld [vmem:[%s2015 + $0x10] sm:$0xff]
    %v2019 = vld [vmem:[%s2015 + $0x18] sm:$0xff]
    %v2020 = vld [vmem:[%s2015 + $0x20] sm:$0xff]
    %v2021 = vld [vmem:[%s2015 + $0x28] sm:$0xff]
    %v2022 = vld [vmem:[%s2015 + $0x30] sm:$0xff]
    %v2023 = vld [vmem:[%s2015 + $0x38] sm:$0xff]
    %v2024 = vld [vmem:[%s2015 + $0x40] sm:$0xff]
    %v2025 = vld [vmem:[%s2015 + $0x48] sm:$0xff]
    %v2026 = vld [vmem:[%s2015 + $0x50] sm:$0xff]
    %v2027 = vld [vmem:[%s2015 + $0x58] sm:$0xff]
    %v2029 = vsel %vm772, %v1828, 0
    %v2032 = vsel %vm772, %v1829, 0
    %2034 = vmatprep.subr.mxu0 0.0
    %2035 = vmatpush1.msra.mxu0 %v2016
    %2036 = vmatprep.subr.mxu0 0.0
    %2037 = vmatpush1.msra.mxu0 %v2017
    %2038 = vmatprep.subr.mxu0 0.0
    %2039 = vmatpush1.msra.mxu0 %v2018
    %2040 = vmatprep.subr.mxu0 0.0
    %2041 = vmatpush1.msra.mxu0 %v2019
    %2042 = vmatprep.subr.mxu0 0.0
    %2043 = vmatpush1.msra.mxu0 %v2020
    %2044 = vmatprep.subr.mxu0 0.0
    %2045 = vmatpush1.msra.mxu0 %v2021
    %2046 = vmatprep.subr.mxu0 0.0
    %2047 = vmatpush1.msra.mxu0 %v2022
    %2048 = vmatprep.subr.mxu0 0.0
    %2049 = vmatpush1.msra.mxu0 %v2023
    %2050 = vmatprep.subr.mxu0 0.0
    %2051 = vmatpush1.msra.mxu0 %v2024
    %2052 = vmatprep.subr.mxu0 0.0
    %2053 = vmatpush1.msra.mxu0 %v2025
    %2054 = vmatprep.subr.mxu0 0.0
    %2055 = vmatpush1.msra.mxu0 %v2026
    %2056 = vmatprep.subr.mxu0 0.0
    %2057 = vmatpush1.msra.mxu0 %v2027
    %2058 = vmatprep.subr.mxu0 0.0
    %2059 = vmatpush1.msra.mxu0 0.0
    %2060 = vmatprep.subr.mxu0 0.0
    %2061 = vmatpush1.msra.mxu0 0.0
    %2062 = vmatprep.subr.mxu0 0.0
    %2063 = vmatpush1.msra.mxu0 0.0
    %2064 = vmatprep.subr.mxu0 0.0
    %2065 = vmatpush1.msra.mxu0 0.0
    %2066 = vmatprep.subr.mxu0 0.0
    %2067 = vmatpush1.msra.mxu0 0.0
    %2068 = vmatprep.subr.mxu0 0.0
    %2069 = vmatpush1.msra.mxu0 0.0
    %2070 = vmatprep.subr.mxu0 0.0
    %2071 = vmatpush1.msra.mxu0 0.0
    %2072 = vmatprep.subr.mxu0 0.0
    %2073 = vmatpush1.msra.mxu0 0.0
    %2074 = vmatprep.subr.mxu0 0.0
    %2075 = vmatpush1.msra.mxu0 0.0
    %2076 = vmatprep.subr.mxu0 0.0
    %2077 = vmatpush1.msra.mxu0 0.0
    %2078 = vmatprep.subr.mxu0 0.0
    %2079 = vmatpush1.msra.mxu0 0.0
    %2080 = vmatprep.subr.mxu0 0.0
    %2081 = vmatpush1.msra.mxu0 0.0
    %2082 = vmatprep.subr.mxu0 0.0
    %2083 = vmatpush1.msra.mxu0 0.0
    %2084 = vmatprep.subr.mxu0 0.0
    %2085 = vmatpush1.msra.mxu0 0.0
    %2086 = vmatprep.subr.mxu0 0.0
    %2087 = vmatpush1.msra.mxu0 0.0
    %2088 = vmatprep.subr.mxu0 0.0
    %2089 = vmatpush1.msra.mxu0 0.0
    %2090 = vmatprep.subr.mxu0 0.0
    %2091 = vmatpush1.msra.mxu0 0.0
    %2092 = vmatprep.subr.mxu0 0.0
    %2093 = vmatpush1.msra.mxu0 0.0
    %2094 = vmatprep.subr.mxu0 0.0
    %2095 = vmatpush1.msra.mxu0 0.0
    %2096 = vmatprep.subr.mxu0 0.0
    %2097 = vmatpush1.msra.mxu0 0.0
    %2098 = vmatprep.mubr.f32.mxu0 0.0
    %2099 = vmatmul.mubr.f32.gmra.mrb[0].mxu0 %v2029
    %v2100 = vpop.f32.mrb[0].mxu0
    %v2101 = vadd.f32 0.0, %v2100
    %v2102 = vpop.f32.mrb[0].mxu0
    %2103 = vmatprep.mubr.f32.mxu0 0.0
    %2104 = vmatmul.mubr.f32.gmra.mrb[0].mxu0 %v2032
    %v2105 = vpop.f32.mrb[0].mxu0
    %v2106 = vadd.f32 0.0, %v2105
    %v2107 = vpop.f32.mrb[0].mxu0
    %2108 = vdwg.mxu0
    %v2109 = vadd.f32 %v2007, %v2101
    %v2110 = vadd.f32 %v2012, %v2106
    %v2111 = vmax.f32 %v2109, 0.0
    %v2112 = vmax.f32 %v2110, 0.0
    %v2113 = vadd.f32 %v2111, %v1509
    %v2114 = vadd.f32 %v2112, %v1510
    %v2119 = vrot.slane %v208, 7
    %v2120 = vrot.slane %v209, 7
    %v2121 = vsel %vm218, %v2119, %v2120
    %v2122 = vrot.slane %v210, 7
    %v2123 = vsel %vm218, %v2120, %v2122
    %v2124 = vrot.slane %v211, 7
    %v2125 = vsel %vm218, %v2122, %v2124
    %v2130 = vsel %vm218, 0.0, %v2119
    %v2131 = vmul.f32 %v2130, %v181
    %v2132 = vmul.f32 %v2121, %v182
    %v2133 = vmul.f32 %v2123, %v183
    %v2134 = vmul.f32 %v2125, %v184
    %v2135 = vrot.slane %v208, 1
    %v2136 = vrot.slane %v209, 1
    %v2137 = vsel %vm223, %v2135, %v2136
    %v2138 = vrot.slane %v210, 1
    %v2139 = vsel %vm223, %v2136, %v2138
    %v2140 = vrot.slane %v211, 1
    %v2141 = vsel %vm223, %v2138, %v2140
    %v2146 = vsel %vm223, %v2140, 0.0
    %v2147 = vmul.f32 %v2137, %v189
    %v2148 = vmul.f32 %v2139, %v190
    %v2149 = vmul.f32 %v2141, %v191
    %v2150 = vmul.f32 %v2146, %v192
    %s2151 = scalar_lea.vmem %s11, 128
    %v2152 = vld [vmem:[%s2151] sm:$0xff]
    %v2153 = vld [vmem:[%s2151 + $0x8] sm:$0xff]
    %v2154 = vld [vmem:[%s2151 + $0x10] sm:$0xff]
    %v2155 = vld [vmem:[%s2151 + $0x18] sm:$0xff]
    %v2156 = vld [vmem:[%s2151 + $0x20] sm:$0xff]
    %v2157 = vld [vmem:[%s2151 + $0x28] sm:$0xff]
    %v2158 = vld [vmem:[%s2151 + $0x30] sm:$0xff]
    %v2159 = vld [vmem:[%s2151 + $0x38] sm:$0xff]
    %v2160 = vld [vmem:[%s2151 + $0x40] sm:$0xff]
    %v2161 = vld [vmem:[%s2151 + $0x48] sm:$0xff]
    %v2162 = vld [vmem:[%s2151 + $0x50] sm:$0xff]
    %v2163 = vld [vmem:[%s2151 + $0x58] sm:$0xff]
    %v2164 = vld [vmem:[%s2151 + $0x60] sm:$0xff]
    %v2165 = vld [vmem:[%s2151 + $0x68] sm:$0xff]
    %v2166 = vld [vmem:[%s2151 + $0x70] sm:$0xff]
    %v2167 = vld [vmem:[%s2151 + $0x78] sm:$0xff]
    %v2168 = vld [vmem:[%s11] sm:$0xff]
    %v2169 = vld [vmem:[%s11 + $0x8] sm:$0xff]
    %v2170 = vld [vmem:[%s11 + $0x10] sm:$0xff]
    %v2171 = vld [vmem:[%s11 + $0x18] sm:$0xff]
    %v2172 = vld [vmem:[%s11 + $0x20] sm:$0xff]
    %v2173 = vld [vmem:[%s11 + $0x28] sm:$0xff]
    %v2174 = vld [vmem:[%s11 + $0x30] sm:$0xff]
    %v2175 = vld [vmem:[%s11 + $0x38] sm:$0xff]
    %v2176 = vld [vmem:[%s11 + $0x40] sm:$0xff]
    %v2177 = vld [vmem:[%s11 + $0x48] sm:$0xff]
    %v2178 = vld [vmem:[%s11 + $0x50] sm:$0xff]
    %v2179 = vld [vmem:[%s11 + $0x58] sm:$0xff]
    %v2180 = vld [vmem:[%s11 + $0x60] sm:$0xff]
    %v2181 = vld [vmem:[%s11 + $0x68] sm:$0xff]
    %v2182 = vld [vmem:[%s11 + $0x70] sm:$0xff]
    %v2183 = vld [vmem:[%s11 + $0x78] sm:$0xff]
    %2184 = vmatprep.subr.mxu0 0.0
    %2185 = vmatpush1.msra.mxu0 %v2168
    %2186 = vmatprep.subr.mxu0 0.0
    %2187 = vmatpush1.msra.mxu0 %v2169
    %2188 = vmatprep.subr.mxu0 0.0
    %2189 = vmatpush1.msra.mxu0 %v2170
    %2190 = vmatprep.subr.mxu0 0.0
    %2191 = vmatpush1.msra.mxu0 %v2171
    %2192 = vmatprep.subr.mxu0 0.0
    %2193 = vmatpush1.msra.mxu0 %v2172
    %2194 = vmatprep.subr.mxu0 0.0
    %2195 = vmatpush1.msra.mxu0 %v2173
    %2196 = vmatprep.subr.mxu0 0.0
    %2197 = vmatpush1.msra.mxu0 %v2174
    %2198 = vmatprep.subr.mxu0 0.0
    %2199 = vmatpush1.msra.mxu0 %v2175
    %2200 = vmatprep.subr.mxu0 0.0
    %2201 = vmatpush1.msra.mxu0 %v2176
    %2202 = vmatprep.subr.mxu0 0.0
    %2203 = vmatpush1.msra.mxu0 %v2177
    %2204 = vmatprep.subr.mxu0 0.0
    %2205 = vmatpush1.msra.mxu0 %v2178
    %2206 = vmatprep.subr.mxu0 0.0
    %2207 = vmatpush1.msra.mxu0 %v2179
    %2208 = vmatprep.subr.mxu0 0.0
    %2209 = vmatpush1.msra.mxu0 %v2180
    %2210 = vmatprep.subr.mxu0 0.0
    %2211 = vmatpush1.msra.mxu0 %v2181
    %2212 = vmatprep.subr.mxu0 0.0
    %2213 = vmatpush1.msra.mxu0 %v2182
    %2214 = vmatprep.subr.mxu0 0.0
    %2215 = vmatpush1.msra.mxu0 %v2183
    %2216 = vmatprep.subr.mxu0 0.0
    %2217 = vmatpush1.msra.mxu0 0.0
    %2218 = vmatprep.subr.mxu0 0.0
    %2219 = vmatpush1.msra.mxu0 0.0
    %2220 = vmatprep.subr.mxu0 0.0
    %2221 = vmatpush1.msra.mxu0 0.0
    %2222 = vmatprep.subr.mxu0 0.0
    %2223 = vmatpush1.msra.mxu0 0.0
    %2224 = vmatprep.subr.mxu0 0.0
    %2225 = vmatpush1.msra.mxu0 0.0
    %2226 = vmatprep.subr.mxu0 0.0
    %2227 = vmatpush1.msra.mxu0 0.0
    %2228 = vmatprep.subr.mxu0 0.0
    %2229 = vmatpush1.msra.mxu0 0.0
    %2230 = vmatprep.subr.mxu0 0.0
    %2231 = vmatpush1.msra.mxu0 0.0
    %2232 = vmatprep.subr.mxu0 0.0
    %2233 = vmatpush1.msra.mxu0 0.0
    %2234 = vmatprep.subr.mxu0 0.0
    %2235 = vmatpush1.msra.mxu0 0.0
    %2236 = vmatprep.subr.mxu0 0.0
    %2237 = vmatpush1.msra.mxu0 0.0
    %2238 = vmatprep.subr.mxu0 0.0
    %2239 = vmatpush1.msra.mxu0 0.0
    %2240 = vmatprep.subr.mxu0 0.0
    %2241 = vmatpush1.msra.mxu0 0.0
    %2242 = vmatprep.subr.mxu0 0.0
    %2243 = vmatpush1.msra.mxu0 0.0
    %2244 = vmatprep.subr.mxu0 0.0
    %2245 = vmatpush1.msra.mxu0 0.0
    %2246 = vmatprep.subr.mxu0 0.0
    %2247 = vmatpush1.msra.mxu0 0.0
    %2248 = vmatprep.mubr.f32.mxu0 0.0
    %2249 = vmatmul.mubr.f32.gmra.mrb[0].mxu0 %v2131
    %v2250 = vpop.f32.mrb[0].mxu0
    %v2251 = vadd.f32 0.0, %v2250
    %v2252 = vpop.f32.mrb[0].mxu0
    %2253 = vmatprep.mubr.f32.mxu0 0.0
    %2254 = vmatmul.mubr.f32.gmra.mrb[0].mxu0 %v2132
    %v2255 = vpop.f32.mrb[0].mxu0
    %v2256 = vadd.f32 0.0, %v2255
    %v2257 = vpop.f32.mrb[0].mxu0
    %2258 = vmatprep.mubr.f32.mxu0 0.0
    %2259 = vmatmul.mubr.f32.gmra.mrb[0].mxu0 %v2133
    %v2260 = vpop.f32.mrb[0].mxu0
    %v2261 = vadd.f32 0.0, %v2260
    %v2262 = vpop.f32.mrb[0].mxu0
    %2263 = vmatprep.mubr.f32.mxu0 0.0
    %2264 = vmatmul.mubr.f32.gmra.mrb[0].mxu0 %v2134
    %v2265 = vpop.f32.mrb[0].mxu0
    %v2266 = vadd.f32 0.0, %v2265
    %v2267 = vpop.f32.mrb[0].mxu0
    %2268 = vdwg.mxu0
    %2269 = vmatprep.subr.mxu0 0.0
    %2270 = vmatpush1.msra.mxu0 %v2152
    %2271 = vmatprep.subr.mxu0 0.0
    %2272 = vmatpush1.msra.mxu0 %v2153
    %2273 = vmatprep.subr.mxu0 0.0
    %2274 = vmatpush1.msra.mxu0 %v2154
    %2275 = vmatprep.subr.mxu0 0.0
    %2276 = vmatpush1.msra.mxu0 %v2155
    %2277 = vmatprep.subr.mxu0 0.0
    %2278 = vmatpush1.msra.mxu0 %v2156
    %2279 = vmatprep.subr.mxu0 0.0
    %2280 = vmatpush1.msra.mxu0 %v2157
    %2281 = vmatprep.subr.mxu0 0.0
    %2282 = vmatpush1.msra.mxu0 %v2158
    %2283 = vmatprep.subr.mxu0 0.0
    %2284 = vmatpush1.msra.mxu0 %v2159
    %2285 = vmatprep.subr.mxu0 0.0
    %2286 = vmatpush1.msra.mxu0 %v2160
    %2287 = vmatprep.subr.mxu0 0.0
    %2288 = vmatpush1.msra.mxu0 %v2161
    %2289 = vmatprep.subr.mxu0 0.0
    %2290 = vmatpush1.msra.mxu0 %v2162
    %2291 = vmatprep.subr.mxu0 0.0
    %2292 = vmatpush1.msra.mxu0 %v2163
    %2293 = vmatprep.subr.mxu0 0.0
    %2294 = vmatpush1.msra.mxu0 %v2164
    %2295 = vmatprep.subr.mxu0 0.0
    %2296 = vmatpush1.msra.mxu0 %v2165
    %2297 = vmatprep.subr.mxu0 0.0
    %2298 = vmatpush1.msra.mxu0 %v2166
    %2299 = vmatprep.subr.mxu0 0.0
    %2300 = vmatpush1.msra.mxu0 %v2167
    %2301 = vmatprep.subr.mxu0 0.0
    %2302 = vmatpush1.msra.mxu0 0.0
    %2303 = vmatprep.subr.mxu0 0.0
    %2304 = vmatpush1.msra.mxu0 0.0
    %2305 = vmatprep.subr.mxu0 0.0
    %2306 = vmatpush1.msra.mxu0 0.0
    %2307 = vmatprep.subr.mxu0 0.0
    %2308 = vmatpush1.msra.mxu0 0.0
    %2309 = vmatprep.subr.mxu0 0.0
    %2310 = vmatpush1.msra.mxu0 0.0
    %2311 = vmatprep.subr.mxu0 0.0
    %2312 = vmatpush1.msra.mxu0 0.0
    %2313 = vmatprep.subr.mxu0 0.0
    %2314 = vmatpush1.msra.mxu0 0.0
    %2315 = vmatprep.subr.mxu0 0.0
    %2316 = vmatpush1.msra.mxu0 0.0
    %2317 = vmatprep.subr.mxu0 0.0
    %2318 = vmatpush1.msra.mxu0 0.0
    %2319 = vmatprep.subr.mxu0 0.0
    %2320 = vmatpush1.msra.mxu0 0.0
    %2321 = vmatprep.subr.mxu0 0.0
    %2322 = vmatpush1.msra.mxu0 0.0
    %2323 = vmatprep.subr.mxu0 0.0
    %2324 = vmatpush1.msra.mxu0 0.0
    %2325 = vmatprep.subr.mxu0 0.0
    %2326 = vmatpush1.msra.mxu0 0.0
    %2327 = vmatprep.subr.mxu0 0.0
    %2328 = vmatpush1.msra.mxu0 0.0
    %2329 = vmatprep.subr.mxu0 0.0
    %2330 = vmatpush1.msra.mxu0 0.0
    %2331 = vmatprep.subr.mxu0 0.0
    %2332 = vmatpush1.msra.mxu0 0.0
    %2333 = vmatprep.mubr.f32.mxu0 0.0
    %2334 = vmatmul.mubr.f32.gmra.mrb[0].mxu0 %v208
    %v2335 = vpop.f32.mrb[0].mxu0
    %v2336 = vadd.f32 %v2251, %v2335
    %v2337 = vpop.f32.mrb[0].mxu0
    %2338 = vmatprep.mubr.f32.mxu0 0.0
    %2339 = vmatmul.mubr.f32.gmra.mrb[0].mxu0 %v209
    %v2340 = vpop.f32.mrb[0].mxu0
    %v2341 = vadd.f32 %v2256, %v2340
    %v2342 = vpop.f32.mrb[0].mxu0
    %2343 = vmatprep.mubr.f32.mxu0 0.0
    %2344 = vmatmul.mubr.f32.gmra.mrb[0].mxu0 %v210
    %v2345 = vpop.f32.mrb[0].mxu0
    %v2346 = vadd.f32 %v2261, %v2345
    %v2347 = vpop.f32.mrb[0].mxu0
    %2348 = vmatprep.mubr.f32.mxu0 0.0
    %2349 = vmatmul.mubr.f32.gmra.mrb[0].mxu0 %v211
    %v2350 = vpop.f32.mrb[0].mxu0
    %v2351 = vadd.f32 %v2266, %v2350
    %v2352 = vpop.f32.mrb[0].mxu0
    %2353 = vdwg.mxu0
    %s2354 = scalar_lea.vmem %s11, 256
    %v2355 = vld [vmem:[%s2354] sm:$0xff]
    %v2356 = vld [vmem:[%s2354 + $0x8] sm:$0xff]
    %v2357 = vld [vmem:[%s2354 + $0x10] sm:$0xff]
    %v2358 = vld [vmem:[%s2354 + $0x18] sm:$0xff]
    %v2359 = vld [vmem:[%s2354 + $0x20] sm:$0xff]
    %v2360 = vld [vmem:[%s2354 + $0x28] sm:$0xff]
    %v2361 = vld [vmem:[%s2354 + $0x30] sm:$0xff]
    %v2362 = vld [vmem:[%s2354 + $0x38] sm:$0xff]
    %v2363 = vld [vmem:[%s2354 + $0x40] sm:$0xff]
    %v2364 = vld [vmem:[%s2354 + $0x48] sm:$0xff]
    %v2365 = vld [vmem:[%s2354 + $0x50] sm:$0xff]
    %v2366 = vld [vmem:[%s2354 + $0x58] sm:$0xff]
    %v2367 = vld [vmem:[%s2354 + $0x60] sm:$0xff]
    %v2368 = vld [vmem:[%s2354 + $0x68] sm:$0xff]
    %v2369 = vld [vmem:[%s2354 + $0x70] sm:$0xff]
    %v2370 = vld [vmem:[%s2354 + $0x78] sm:$0xff]
    %2371 = vmatprep.subr.mxu0 0.0
    %2372 = vmatpush1.msra.mxu0 %v2355
    %2373 = vmatprep.subr.mxu0 0.0
    %2374 = vmatpush1.msra.mxu0 %v2356
    %2375 = vmatprep.subr.mxu0 0.0
    %2376 = vmatpush1.msra.mxu0 %v2357
    %2377 = vmatprep.subr.mxu0 0.0
    %2378 = vmatpush1.msra.mxu0 %v2358
    %2379 = vmatprep.subr.mxu0 0.0
    %2380 = vmatpush1.msra.mxu0 %v2359
    %2381 = vmatprep.subr.mxu0 0.0
    %2382 = vmatpush1.msra.mxu0 %v2360
    %2383 = vmatprep.subr.mxu0 0.0
    %2384 = vmatpush1.msra.mxu0 %v2361
    %2385 = vmatprep.subr.mxu0 0.0
    %2386 = vmatpush1.msra.mxu0 %v2362
    %2387 = vmatprep.subr.mxu0 0.0
    %2388 = vmatpush1.msra.mxu0 %v2363
    %2389 = vmatprep.subr.mxu0 0.0
    %2390 = vmatpush1.msra.mxu0 %v2364
    %2391 = vmatprep.subr.mxu0 0.0
    %2392 = vmatpush1.msra.mxu0 %v2365
    %2393 = vmatprep.subr.mxu0 0.0
    %2394 = vmatpush1.msra.mxu0 %v2366
    %2395 = vmatprep.subr.mxu0 0.0
    %2396 = vmatpush1.msra.mxu0 %v2367
    %2397 = vmatprep.subr.mxu0 0.0
    %2398 = vmatpush1.msra.mxu0 %v2368
    %2399 = vmatprep.subr.mxu0 0.0
    %2400 = vmatpush1.msra.mxu0 %v2369
    %2401 = vmatprep.subr.mxu0 0.0
    %2402 = vmatpush1.msra.mxu0 %v2370
    %2403 = vmatprep.subr.mxu0 0.0
    %2404 = vmatpush1.msra.mxu0 0.0
    %2405 = vmatprep.subr.mxu0 0.0
    %2406 = vmatpush1.msra.mxu0 0.0
    %2407 = vmatprep.subr.mxu0 0.0
    %2408 = vmatpush1.msra.mxu0 0.0
    %2409 = vmatprep.subr.mxu0 0.0
    %2410 = vmatpush1.msra.mxu0 0.0
    %2411 = vmatprep.subr.mxu0 0.0
    %2412 = vmatpush1.msra.mxu0 0.0
    %2413 = vmatprep.subr.mxu0 0.0
    %2414 = vmatpush1.msra.mxu0 0.0
    %2415 = vmatprep.subr.mxu0 0.0
    %2416 = vmatpush1.msra.mxu0 0.0
    %2417 = vmatprep.subr.mxu0 0.0
    %2418 = vmatpush1.msra.mxu0 0.0
    %2419 = vmatprep.subr.mxu0 0.0
    %2420 = vmatpush1.msra.mxu0 0.0
    %2421 = vmatprep.subr.mxu0 0.0
    %2422 = vmatpush1.msra.mxu0 0.0
    %2423 = vmatprep.subr.mxu0 0.0
    %2424 = vmatpush1.msra.mxu0 0.0
    %2425 = vmatprep.subr.mxu0 0.0
    %2426 = vmatpush1.msra.mxu0 0.0
    %2427 = vmatprep.subr.mxu0 0.0
    %2428 = vmatpush1.msra.mxu0 0.0
    %2429 = vmatprep.subr.mxu0 0.0
    %2430 = vmatpush1.msra.mxu0 0.0
    %2431 = vmatprep.subr.mxu0 0.0
    %2432 = vmatpush1.msra.mxu0 0.0
    %2433 = vmatprep.subr.mxu0 0.0
    %2434 = vmatpush1.msra.mxu0 0.0
    %2435 = vmatprep.mubr.f32.mxu0 0.0
    %2436 = vmatmul.mubr.f32.gmra.mrb[0].mxu0 %v2147
    %v2437 = vpop.f32.mrb[0].mxu0
    %v2438 = vadd.f32 0.0, %v2437
    %v2439 = vpop.f32.mrb[0].mxu0
    %2440 = vmatprep.mubr.f32.mxu0 0.0
    %2441 = vmatmul.mubr.f32.gmra.mrb[0].mxu0 %v2148
    %v2442 = vpop.f32.mrb[0].mxu0
    %v2443 = vadd.f32 0.0, %v2442
    %v2444 = vpop.f32.mrb[0].mxu0
    %2445 = vmatprep.mubr.f32.mxu0 0.0
    %2446 = vmatmul.mubr.f32.gmra.mrb[0].mxu0 %v2149
    %v2447 = vpop.f32.mrb[0].mxu0
    %v2448 = vadd.f32 0.0, %v2447
    %v2449 = vpop.f32.mrb[0].mxu0
    %2450 = vmatprep.mubr.f32.mxu0 0.0
    %2451 = vmatmul.mubr.f32.gmra.mrb[0].mxu0 %v2150
    %v2452 = vpop.f32.mrb[0].mxu0
    %v2453 = vadd.f32 0.0, %v2452
    %v2454 = vpop.f32.mrb[0].mxu0
    %2455 = vdwg.mxu0
    %v2456 = vadd.f32 %v2336, %v2438
    %v2457 = vadd.f32 %v2341, %v2443
    %v2458 = vadd.f32 %v2346, %v2448
    %v2459 = vadd.f32 %v2351, %v2453
    %v2460 = vmax.f32 %v2456, 0.0
    %v2461 = vmax.f32 %v2457, 0.0
    %v2462 = vmax.f32 %v2458, 0.0
    %v2463 = vmax.f32 %v2459, 0.0
    %v2468 = vrot.slane %v2460, 7
    %v2469 = vrot.slane %v2461, 7
    %v2470 = vsel %vm218, %v2468, %v2469
    %v2471 = vrot.slane %v2462, 7
    %v2472 = vsel %vm218, %v2469, %v2471
    %v2473 = vrot.slane %v2463, 7
    %v2474 = vsel %vm218, %v2471, %v2473
    %v2479 = vsel %vm218, 0.0, %v2468
    %v2480 = vmul.f32 %v2479, %v181
    %v2481 = vmul.f32 %v2470, %v182
    %v2482 = vmul.f32 %v2472, %v183
    %v2483 = vmul.f32 %v2474, %v184
    %v2484 = vrot.slane %v2460, 1
    %v2485 = vrot.slane %v2461, 1
    %v2486 = vsel %vm223, %v2484, %v2485
    %v2487 = vrot.slane %v2462, 1
    %v2488 = vsel %vm223, %v2485, %v2487
    %v2489 = vrot.slane %v2463, 1
    %v2490 = vsel %vm223, %v2487, %v2489
    %v2495 = vsel %vm223, %v2489, 0.0
    %v2496 = vmul.f32 %v2486, %v189
    %v2497 = vmul.f32 %v2488, %v190
    %v2498 = vmul.f32 %v2490, %v191
    %v2499 = vmul.f32 %v2495, %v192
    %s2500 = scalar_lea.vmem %s12, 128
    %v2501 = vld [vmem:[%s2500] sm:$0xff]
    %v2502 = vld [vmem:[%s2500 + $0x8] sm:$0xff]
    %v2503 = vld [vmem:[%s2500 + $0x10] sm:$0xff]
    %v2504 = vld [vmem:[%s2500 + $0x18] sm:$0xff]
    %v2505 = vld [vmem:[%s2500 + $0x20] sm:$0xff]
    %v2506 = vld [vmem:[%s2500 + $0x28] sm:$0xff]
    %v2507 = vld [vmem:[%s2500 + $0x30] sm:$0xff]
    %v2508 = vld [vmem:[%s2500 + $0x38] sm:$0xff]
    %v2509 = vld [vmem:[%s2500 + $0x40] sm:$0xff]
    %v2510 = vld [vmem:[%s2500 + $0x48] sm:$0xff]
    %v2511 = vld [vmem:[%s2500 + $0x50] sm:$0xff]
    %v2512 = vld [vmem:[%s2500 + $0x58] sm:$0xff]
    %v2513 = vld [vmem:[%s2500 + $0x60] sm:$0xff]
    %v2514 = vld [vmem:[%s2500 + $0x68] sm:$0xff]
    %v2515 = vld [vmem:[%s2500 + $0x70] sm:$0xff]
    %v2516 = vld [vmem:[%s2500 + $0x78] sm:$0xff]
    %v2517 = vld [vmem:[%s12] sm:$0xff]
    %v2518 = vld [vmem:[%s12 + $0x8] sm:$0xff]
    %v2519 = vld [vmem:[%s12 + $0x10] sm:$0xff]
    %v2520 = vld [vmem:[%s12 + $0x18] sm:$0xff]
    %v2521 = vld [vmem:[%s12 + $0x20] sm:$0xff]
    %v2522 = vld [vmem:[%s12 + $0x28] sm:$0xff]
    %v2523 = vld [vmem:[%s12 + $0x30] sm:$0xff]
    %v2524 = vld [vmem:[%s12 + $0x38] sm:$0xff]
    %v2525 = vld [vmem:[%s12 + $0x40] sm:$0xff]
    %v2526 = vld [vmem:[%s12 + $0x48] sm:$0xff]
    %v2527 = vld [vmem:[%s12 + $0x50] sm:$0xff]
    %v2528 = vld [vmem:[%s12 + $0x58] sm:$0xff]
    %v2529 = vld [vmem:[%s12 + $0x60] sm:$0xff]
    %v2530 = vld [vmem:[%s12 + $0x68] sm:$0xff]
    %v2531 = vld [vmem:[%s12 + $0x70] sm:$0xff]
    %v2532 = vld [vmem:[%s12 + $0x78] sm:$0xff]
    %2533 = vmatprep.subr.mxu0 0.0
    %2534 = vmatpush1.msra.mxu0 %v2517
    %2535 = vmatprep.subr.mxu0 0.0
    %2536 = vmatpush1.msra.mxu0 %v2518
    %2537 = vmatprep.subr.mxu0 0.0
    %2538 = vmatpush1.msra.mxu0 %v2519
    %2539 = vmatprep.subr.mxu0 0.0
    %2540 = vmatpush1.msra.mxu0 %v2520
    %2541 = vmatprep.subr.mxu0 0.0
    %2542 = vmatpush1.msra.mxu0 %v2521
    %2543 = vmatprep.subr.mxu0 0.0
    %2544 = vmatpush1.msra.mxu0 %v2522
    %2545 = vmatprep.subr.mxu0 0.0
    %2546 = vmatpush1.msra.mxu0 %v2523
    %2547 = vmatprep.subr.mxu0 0.0
    %2548 = vmatpush1.msra.mxu0 %v2524
    %2549 = vmatprep.subr.mxu0 0.0
    %2550 = vmatpush1.msra.mxu0 %v2525
    %2551 = vmatprep.subr.mxu0 0.0
    %2552 = vmatpush1.msra.mxu0 %v2526
    %2553 = vmatprep.subr.mxu0 0.0
    %2554 = vmatpush1.msra.mxu0 %v2527
    %2555 = vmatprep.subr.mxu0 0.0
    %2556 = vmatpush1.msra.mxu0 %v2528
    %2557 = vmatprep.subr.mxu0 0.0
    %2558 = vmatpush1.msra.mxu0 %v2529
    %2559 = vmatprep.subr.mxu0 0.0
    %2560 = vmatpush1.msra.mxu0 %v2530
    %2561 = vmatprep.subr.mxu0 0.0
    %2562 = vmatpush1.msra.mxu0 %v2531
    %2563 = vmatprep.subr.mxu0 0.0
    %2564 = vmatpush1.msra.mxu0 %v2532
    %2565 = vmatprep.subr.mxu0 0.0
    %2566 = vmatpush1.msra.mxu0 0.0
    %2567 = vmatprep.subr.mxu0 0.0
    %2568 = vmatpush1.msra.mxu0 0.0
    %2569 = vmatprep.subr.mxu0 0.0
    %2570 = vmatpush1.msra.mxu0 0.0
    %2571 = vmatprep.subr.mxu0 0.0
    %2572 = vmatpush1.msra.mxu0 0.0
    %2573 = vmatprep.subr.mxu0 0.0
    %2574 = vmatpush1.msra.mxu0 0.0
    %2575 = vmatprep.subr.mxu0 0.0
    %2576 = vmatpush1.msra.mxu0 0.0
    %2577 = vmatprep.subr.mxu0 0.0
    %2578 = vmatpush1.msra.mxu0 0.0
    %2579 = vmatprep.subr.mxu0 0.0
    %2580 = vmatpush1.msra.mxu0 0.0
    %2581 = vmatprep.subr.mxu0 0.0
    %2582 = vmatpush1.msra.mxu0 0.0
    %2583 = vmatprep.subr.mxu0 0.0
    %2584 = vmatpush1.msra.mxu0 0.0
    %2585 = vmatprep.subr.mxu0 0.0
    %2586 = vmatpush1.msra.mxu0 0.0
    %2587 = vmatprep.subr.mxu0 0.0
    %2588 = vmatpush1.msra.mxu0 0.0
    %2589 = vmatprep.subr.mxu0 0.0
    %2590 = vmatpush1.msra.mxu0 0.0
    %2591 = vmatprep.subr.mxu0 0.0
    %2592 = vmatpush1.msra.mxu0 0.0
    %2593 = vmatprep.subr.mxu0 0.0
    %2594 = vmatpush1.msra.mxu0 0.0
    %2595 = vmatprep.subr.mxu0 0.0
    %2596 = vmatpush1.msra.mxu0 0.0
    %2597 = vmatprep.mubr.f32.mxu0 0.0
    %2598 = vmatmul.mubr.f32.gmra.mrb[0].mxu0 %v2480
    %v2599 = vpop.f32.mrb[0].mxu0
    %v2600 = vadd.f32 0.0, %v2599
    %v2601 = vpop.f32.mrb[0].mxu0
    %2602 = vmatprep.mubr.f32.mxu0 0.0
    %2603 = vmatmul.mubr.f32.gmra.mrb[0].mxu0 %v2481
    %v2604 = vpop.f32.mrb[0].mxu0
    %v2605 = vadd.f32 0.0, %v2604
    %v2606 = vpop.f32.mrb[0].mxu0
    %2607 = vmatprep.mubr.f32.mxu0 0.0
    %2608 = vmatmul.mubr.f32.gmra.mrb[0].mxu0 %v2482
    %v2609 = vpop.f32.mrb[0].mxu0
    %v2610 = vadd.f32 0.0, %v2609
    %v2611 = vpop.f32.mrb[0].mxu0
    %2612 = vmatprep.mubr.f32.mxu0 0.0
    %2613 = vmatmul.mubr.f32.gmra.mrb[0].mxu0 %v2483
    %v2614 = vpop.f32.mrb[0].mxu0
    %v2615 = vadd.f32 0.0, %v2614
    %v2616 = vpop.f32.mrb[0].mxu0
    %2617 = vdwg.mxu0
    %2618 = vmatprep.subr.mxu0 0.0
    %2619 = vmatpush1.msra.mxu0 %v2501
    %2620 = vmatprep.subr.mxu0 0.0
    %2621 = vmatpush1.msra.mxu0 %v2502
    %2622 = vmatprep.subr.mxu0 0.0
    %2623 = vmatpush1.msra.mxu0 %v2503
    %2624 = vmatprep.subr.mxu0 0.0
    %2625 = vmatpush1.msra.mxu0 %v2504
    %2626 = vmatprep.subr.mxu0 0.0
    %2627 = vmatpush1.msra.mxu0 %v2505
    %2628 = vmatprep.subr.mxu0 0.0
    %2629 = vmatpush1.msra.mxu0 %v2506
    %2630 = vmatprep.subr.mxu0 0.0
    %2631 = vmatpush1.msra.mxu0 %v2507
    %2632 = vmatprep.subr.mxu0 0.0
    %2633 = vmatpush1.msra.mxu0 %v2508
    %2634 = vmatprep.subr.mxu0 0.0
    %2635 = vmatpush1.msra.mxu0 %v2509
    %2636 = vmatprep.subr.mxu0 0.0
    %2637 = vmatpush1.msra.mxu0 %v2510
    %2638 = vmatprep.subr.mxu0 0.0
    %2639 = vmatpush1.msra.mxu0 %v2511
    %2640 = vmatprep.subr.mxu0 0.0
    %2641 = vmatpush1.msra.mxu0 %v2512
    %2642 = vmatprep.subr.mxu0 0.0
    %2643 = vmatpush1.msra.mxu0 %v2513
    %2644 = vmatprep.subr.mxu0 0.0
    %2645 = vmatpush1.msra.mxu0 %v2514
    %2646 = vmatprep.subr.mxu0 0.0
    %2647 = vmatpush1.msra.mxu0 %v2515
    %2648 = vmatprep.subr.mxu0 0.0
    %2649 = vmatpush1.msra.mxu0 %v2516
    %2650 = vmatprep.subr.mxu0 0.0
    %2651 = vmatpush1.msra.mxu0 0.0
    %2652 = vmatprep.subr.mxu0 0.0
    %2653 = vmatpush1.msra.mxu0 0.0
    %2654 = vmatprep.subr.mxu0 0.0
    %2655 = vmatpush1.msra.mxu0 0.0
    %2656 = vmatprep.subr.mxu0 0.0
    %2657 = vmatpush1.msra.mxu0 0.0
    %2658 = vmatprep.subr.mxu0 0.0
    %2659 = vmatpush1.msra.mxu0 0.0
    %2660 = vmatprep.subr.mxu0 0.0
    %2661 = vmatpush1.msra.mxu0 0.0
    %2662 = vmatprep.subr.mxu0 0.0
    %2663 = vmatpush1.msra.mxu0 0.0
    %2664 = vmatprep.subr.mxu0 0.0
    %2665 = vmatpush1.msra.mxu0 0.0
    %2666 = vmatprep.subr.mxu0 0.0
    %2667 = vmatpush1.msra.mxu0 0.0
    %2668 = vmatprep.subr.mxu0 0.0
    %2669 = vmatpush1.msra.mxu0 0.0
    %2670 = vmatprep.subr.mxu0 0.0
    %2671 = vmatpush1.msra.mxu0 0.0
    %2672 = vmatprep.subr.mxu0 0.0
    %2673 = vmatpush1.msra.mxu0 0.0
    %2674 = vmatprep.subr.mxu0 0.0
    %2675 = vmatpush1.msra.mxu0 0.0
    %2676 = vmatprep.subr.mxu0 0.0
    %2677 = vmatpush1.msra.mxu0 0.0
    %2678 = vmatprep.subr.mxu0 0.0
    %2679 = vmatpush1.msra.mxu0 0.0
    %2680 = vmatprep.subr.mxu0 0.0
    %2681 = vmatpush1.msra.mxu0 0.0
    %2682 = vmatprep.mubr.f32.mxu0 0.0
    %2683 = vmatmul.mubr.f32.gmra.mrb[0].mxu0 %v2460
    %v2684 = vpop.f32.mrb[0].mxu0
    %v2685 = vadd.f32 %v2600, %v2684
    %v2686 = vpop.f32.mrb[0].mxu0
    %2687 = vmatprep.mubr.f32.mxu0 0.0
    %2688 = vmatmul.mubr.f32.gmra.mrb[0].mxu0 %v2461
    %v2689 = vpop.f32.mrb[0].mxu0
    %v2690 = vadd.f32 %v2605, %v2689
    %v2691 = vpop.f32.mrb[0].mxu0
    %2692 = vmatprep.mubr.f32.mxu0 0.0
    %2693 = vmatmul.mubr.f32.gmra.mrb[0].mxu0 %v2462
    %v2694 = vpop.f32.mrb[0].mxu0
    %v2695 = vadd.f32 %v2610, %v2694
    %v2696 = vpop.f32.mrb[0].mxu0
    %2697 = vmatprep.mubr.f32.mxu0 0.0
    %2698 = vmatmul.mubr.f32.gmra.mrb[0].mxu0 %v2463
    %v2699 = vpop.f32.mrb[0].mxu0
    %v2700 = vadd.f32 %v2615, %v2699
    %v2701 = vpop.f32.mrb[0].mxu0
    %2702 = vdwg.mxu0
    %s2703 = scalar_lea.vmem %s12, 256
    %v2704 = vld [vmem:[%s2703] sm:$0xff]
    %v2705 = vld [vmem:[%s2703 + $0x8] sm:$0xff]
    %v2706 = vld [vmem:[%s2703 + $0x10] sm:$0xff]
    %v2707 = vld [vmem:[%s2703 + $0x18] sm:$0xff]
    %v2708 = vld [vmem:[%s2703 + $0x20] sm:$0xff]
    %v2709 = vld [vmem:[%s2703 + $0x28] sm:$0xff]
    %v2710 = vld [vmem:[%s2703 + $0x30] sm:$0xff]
    %v2711 = vld [vmem:[%s2703 + $0x38] sm:$0xff]
    %v2712 = vld [vmem:[%s2703 + $0x40] sm:$0xff]
    %v2713 = vld [vmem:[%s2703 + $0x48] sm:$0xff]
    %v2714 = vld [vmem:[%s2703 + $0x50] sm:$0xff]
    %v2715 = vld [vmem:[%s2703 + $0x58] sm:$0xff]
    %v2716 = vld [vmem:[%s2703 + $0x60] sm:$0xff]
    %v2717 = vld [vmem:[%s2703 + $0x68] sm:$0xff]
    %v2718 = vld [vmem:[%s2703 + $0x70] sm:$0xff]
    %v2719 = vld [vmem:[%s2703 + $0x78] sm:$0xff]
    %2720 = vmatprep.subr.mxu0 0.0
    %2721 = vmatpush1.msra.mxu0 %v2704
    %2722 = vmatprep.subr.mxu0 0.0
    %2723 = vmatpush1.msra.mxu0 %v2705
    %2724 = vmatprep.subr.mxu0 0.0
    %2725 = vmatpush1.msra.mxu0 %v2706
    %2726 = vmatprep.subr.mxu0 0.0
    %2727 = vmatpush1.msra.mxu0 %v2707
    %2728 = vmatprep.subr.mxu0 0.0
    %2729 = vmatpush1.msra.mxu0 %v2708
    %2730 = vmatprep.subr.mxu0 0.0
    %2731 = vmatpush1.msra.mxu0 %v2709
    %2732 = vmatprep.subr.mxu0 0.0
    %2733 = vmatpush1.msra.mxu0 %v2710
    %2734 = vmatprep.subr.mxu0 0.0
    %2735 = vmatpush1.msra.mxu0 %v2711
    %2736 = vmatprep.subr.mxu0 0.0
    %2737 = vmatpush1.msra.mxu0 %v2712
    %2738 = vmatprep.subr.mxu0 0.0
    %2739 = vmatpush1.msra.mxu0 %v2713
    %2740 = vmatprep.subr.mxu0 0.0
    %2741 = vmatpush1.msra.mxu0 %v2714
    %2742 = vmatprep.subr.mxu0 0.0
    %2743 = vmatpush1.msra.mxu0 %v2715
    %2744 = vmatprep.subr.mxu0 0.0
    %2745 = vmatpush1.msra.mxu0 %v2716
    %2746 = vmatprep.subr.mxu0 0.0
    %2747 = vmatpush1.msra.mxu0 %v2717
    %2748 = vmatprep.subr.mxu0 0.0
    %2749 = vmatpush1.msra.mxu0 %v2718
    %2750 = vmatprep.subr.mxu0 0.0
    %2751 = vmatpush1.msra.mxu0 %v2719
    %2752 = vmatprep.subr.mxu0 0.0
    %2753 = vmatpush1.msra.mxu0 0.0
    %2754 = vmatprep.subr.mxu0 0.0
    %2755 = vmatpush1.msra.mxu0 0.0
    %2756 = vmatprep.subr.mxu0 0.0
    %2757 = vmatpush1.msra.mxu0 0.0
    %2758 = vmatprep.subr.mxu0 0.0
    %2759 = vmatpush1.msra.mxu0 0.0
    %2760 = vmatprep.subr.mxu0 0.0
    %2761 = vmatpush1.msra.mxu0 0.0
    %2762 = vmatprep.subr.mxu0 0.0
    %2763 = vmatpush1.msra.mxu0 0.0
    %2764 = vmatprep.subr.mxu0 0.0
    %2765 = vmatpush1.msra.mxu0 0.0
    %2766 = vmatprep.subr.mxu0 0.0
    %2767 = vmatpush1.msra.mxu0 0.0
    %2768 = vmatprep.subr.mxu0 0.0
    %2769 = vmatpush1.msra.mxu0 0.0
    %2770 = vmatprep.subr.mxu0 0.0
    %2771 = vmatpush1.msra.mxu0 0.0
    %2772 = vmatprep.subr.mxu0 0.0
    %2773 = vmatpush1.msra.mxu0 0.0
    %2774 = vmatprep.subr.mxu0 0.0
    %2775 = vmatpush1.msra.mxu0 0.0
    %2776 = vmatprep.subr.mxu0 0.0
    %2777 = vmatpush1.msra.mxu0 0.0
    %2778 = vmatprep.subr.mxu0 0.0
    %2779 = vmatpush1.msra.mxu0 0.0
    %2780 = vmatprep.subr.mxu0 0.0
    %2781 = vmatpush1.msra.mxu0 0.0
    %2782 = vmatprep.subr.mxu0 0.0
    %2783 = vmatpush1.msra.mxu0 0.0
    %2784 = vmatprep.mubr.f32.mxu0 0.0
    %2785 = vmatmul.mubr.f32.gmra.mrb[0].mxu0 %v2496
    %v2786 = vpop.f32.mrb[0].mxu0
    %v2787 = vadd.f32 0.0, %v2786
    %v2788 = vpop.f32.mrb[0].mxu0
    %2789 = vmatprep.mubr.f32.mxu0 0.0
    %2790 = vmatmul.mubr.f32.gmra.mrb[0].mxu0 %v2497
    %v2791 = vpop.f32.mrb[0].mxu0
    %v2792 = vadd.f32 0.0, %v2791
    %v2793 = vpop.f32.mrb[0].mxu0
    %2794 = vmatprep.mubr.f32.mxu0 0.0
    %2795 = vmatmul.mubr.f32.gmra.mrb[0].mxu0 %v2498
    %v2796 = vpop.f32.mrb[0].mxu0
    %v2797 = vadd.f32 0.0, %v2796
    %v2798 = vpop.f32.mrb[0].mxu0
    %2799 = vmatprep.mubr.f32.mxu0 0.0
    %2800 = vmatmul.mubr.f32.gmra.mrb[0].mxu0 %v2499
    %v2801 = vpop.f32.mrb[0].mxu0
    %v2802 = vadd.f32 0.0, %v2801
    %v2803 = vpop.f32.mrb[0].mxu0
    %2804 = vdwg.mxu0
    %v2805 = vadd.f32 %v2685, %v2787
    %v2806 = vadd.f32 %v2690, %v2792
    %v2807 = vadd.f32 %v2695, %v2797
    %v2808 = vadd.f32 %v2700, %v2802
    %v2809 = vmax.f32 %v2805, 0.0
    %v2810 = vmax.f32 %v2806, 0.0
    %v2811 = vmax.f32 %v2807, 0.0
    %v2812 = vmax.f32 %v2808, 0.0
    %v2813 = vadd.f32 %v2809, %v208
    %v2814 = vadd.f32 %v2810, %v209
    %v2815 = vadd.f32 %v2811, %v210
    %v2816 = vadd.f32 %v2812, %v211
    %v2817 = vld [vmem:[%s13] sm:$0xff]
    %v2818 = vld [vmem:[%s13 + $0x8] sm:$0xff]
    %v2819 = vld [vmem:[%s13 + $0x10] sm:$0xff]
    %v2820 = vld [vmem:[%s13 + $0x18] sm:$0xff]
    %vm2821 = vcmask 130048
    %v2823 = vsel %vm2821, %v2817, 0
    %v2826 = vsel %vm2821, %v2818, 0
    %v2829 = vsel %vm2821, %v2819, 0
    %v2832 = vsel %vm2821, %v2820, 0
    %2834 = vmatprep.subr.mxu0 0.0
    %2835 = vmatpush1.msra.mxu0 %v2113
    %2836 = vmatprep.subr.mxu0 0.0
    %2837 = vmatpush1.msra.mxu0 %v2114
    %2838 = vmatprep.subr.mxu0 0.0
    %2839 = vmatpush1.msra.mxu0 0.0
    %2840 = vmatprep.subr.mxu0 0.0
    %2841 = vmatpush1.msra.mxu0 0.0
    %2842 = vmatprep.subr.mxu0 0.0
    %2843 = vmatpush1.msra.mxu0 0.0
    %2844 = vmatprep.subr.mxu0 0.0
    %2845 = vmatpush1.msra.mxu0 0.0
    %2846 = vmatprep.subr.mxu0 0.0
    %2847 = vmatpush1.msra.mxu0 0.0
    %2848 = vmatprep.subr.mxu0 0.0
    %2849 = vmatpush1.msra.mxu0 0.0
    %2850 = vmatprep.subr.mxu0 0.0
    %2851 = vmatpush1.msra.mxu0 0.0
    %2852 = vmatprep.subr.mxu0 0.0
    %2853 = vmatpush1.msra.mxu0 0.0
    %2854 = vmatprep.subr.mxu0 0.0
    %2855 = vmatpush1.msra.mxu0 0.0
    %2856 = vmatprep.subr.mxu0 0.0
    %2857 = vmatpush1.msra.mxu0 0.0
    %2858 = vmatprep.subr.mxu0 0.0
    %2859 = vmatpush1.msra.mxu0 0.0
    %2860 = vmatprep.subr.mxu0 0.0
    %2861 = vmatpush1.msra.mxu0 0.0
    %2862 = vmatprep.subr.mxu0 0.0
    %2863 = vmatpush1.msra.mxu0 0.0
    %2864 = vmatprep.subr.mxu0 0.0
    %2865 = vmatpush1.msra.mxu0 0.0
    %2866 = vmatprep.subr.mxu0 0.0
    %2867 = vmatpush1.msra.mxu0 0.0
    %2868 = vmatprep.subr.mxu0 0.0
    %2869 = vmatpush1.msra.mxu0 0.0
    %2870 = vmatprep.subr.mxu0 0.0
    %2871 = vmatpush1.msra.mxu0 0.0
    %2872 = vmatprep.subr.mxu0 0.0
    %2873 = vmatpush1.msra.mxu0 0.0
    %2874 = vmatprep.subr.mxu0 0.0
    %2875 = vmatpush1.msra.mxu0 0.0
    %2876 = vmatprep.subr.mxu0 0.0
    %2877 = vmatpush1.msra.mxu0 0.0
    %2878 = vmatprep.subr.mxu0 0.0
    %2879 = vmatpush1.msra.mxu0 0.0
    %2880 = vmatprep.subr.mxu0 0.0
    %2881 = vmatpush1.msra.mxu0 0.0
    %2882 = vmatprep.subr.mxu0 0.0
    %2883 = vmatpush1.msra.mxu0 0.0
    %2884 = vmatprep.subr.mxu0 0.0
    %2885 = vmatpush1.msra.mxu0 0.0
    %2886 = vmatprep.subr.mxu0 0.0
    %2887 = vmatpush1.msra.mxu0 0.0
    %2888 = vmatprep.subr.mxu0 0.0
    %2889 = vmatpush1.msra.mxu0 0.0
    %2890 = vmatprep.subr.mxu0 0.0
    %2891 = vmatpush1.msra.mxu0 0.0
    %2892 = vmatprep.subr.mxu0 0.0
    %2893 = vmatpush1.msra.mxu0 0.0
    %2894 = vmatprep.subr.mxu0 0.0
    %2895 = vmatpush1.msra.mxu0 0.0
    %2896 = vmatprep.subr.mxu0 0.0
    %2897 = vmatpush1.msra.mxu0 0.0
    %2898 = vmatprep.mubr.f32.mxu0 0.0
    %2899 = vmatmul.mubr.f32.gmra.mrb[0].mxu0 %v2823
    %v2900 = vpop.f32.mrb[0].mxu0
    %v2901 = vadd.f32 0.0, %v2900
    %v2902 = vpop.f32.mrb[0].mxu0
    %2903 = vmatprep.mubr.f32.mxu0 0.0
    %2904 = vmatmul.mubr.f32.gmra.mrb[0].mxu0 %v2826
    %v2905 = vpop.f32.mrb[0].mxu0
    %v2906 = vadd.f32 0.0, %v2905
    %v2907 = vpop.f32.mrb[0].mxu0
    %2908 = vmatprep.mubr.f32.mxu0 0.0
    %2909 = vmatmul.mubr.f32.gmra.mrb[0].mxu0 %v2829
    %v2910 = vpop.f32.mrb[0].mxu0
    %v2911 = vadd.f32 0.0, %v2910
    %v2912 = vpop.f32.mrb[0].mxu0
    %2913 = vmatprep.mubr.f32.mxu0 0.0
    %2914 = vmatmul.mubr.f32.gmra.mrb[0].mxu0 %v2832
    %v2915 = vpop.f32.mrb[0].mxu0
    %v2916 = vadd.f32 0.0, %v2915
    %v2917 = vpop.f32.mrb[0].mxu0
    %2918 = vdwg.mxu0
    %v2919 = vld [vmem:[#allocation12] sm:$0xff]
    %v2920 = vld [vmem:[#allocation12 + $0x8] sm:$0xff]
    %v2921 = vld [vmem:[#allocation12 + $0x10] sm:$0xff]
    %v2922 = vld [vmem:[#allocation12 + $0x18] sm:$0xff]
    %v2923 = vld [vmem:[#allocation12 + $0x20] sm:$0xff]
    %v2924 = vld [vmem:[#allocation12 + $0x28] sm:$0xff]
    %v2925 = vld [vmem:[#allocation12 + $0x30] sm:$0xff]
    %v2926 = vld [vmem:[#allocation12 + $0x38] sm:$0xff]
    %v2927 = vld [vmem:[#allocation12 + $0x40] sm:$0xff]
    %v2928 = vld [vmem:[#allocation12 + $0x48] sm:$0xff]
    %v2929 = vld [vmem:[#allocation12 + $0x50] sm:$0xff]
    %v2930 = vld [vmem:[#allocation12 + $0x58] sm:$0xff]
    %v2932 = vsel %vm772, %v2901, 0
    %v2935 = vsel %vm772, %v2906, 0
    %v2938 = vsel %vm772, %v2911, 0
    %v2941 = vsel %vm772, %v2916, 0
    %2943 = vmatprep.subr.mxu0 0.0
    %2944 = vmatpush1.msra.mxu0 %v2919
    %2945 = vmatprep.subr.mxu0 0.0
    %2946 = vmatpush1.msra.mxu0 %v2920
    %2947 = vmatprep.subr.mxu0 0.0
    %2948 = vmatpush1.msra.mxu0 %v2921
    %2949 = vmatprep.subr.mxu0 0.0
    %2950 = vmatpush1.msra.mxu0 %v2922
    %2951 = vmatprep.subr.mxu0 0.0
    %2952 = vmatpush1.msra.mxu0 %v2923
    %2953 = vmatprep.subr.mxu0 0.0
    %2954 = vmatpush1.msra.mxu0 %v2924
    %2955 = vmatprep.subr.mxu0 0.0
    %2956 = vmatpush1.msra.mxu0 %v2925
    %2957 = vmatprep.subr.mxu0 0.0
    %2958 = vmatpush1.msra.mxu0 %v2926
    %2959 = vmatprep.subr.mxu0 0.0
    %2960 = vmatpush1.msra.mxu0 %v2927
    %2961 = vmatprep.subr.mxu0 0.0
    %2962 = vmatpush1.msra.mxu0 %v2928
    %2963 = vmatprep.subr.mxu0 0.0
    %2964 = vmatpush1.msra.mxu0 %v2929
    %2965 = vmatprep.subr.mxu0 0.0
    %2966 = vmatpush1.msra.mxu0 %v2930
    %2967 = vmatprep.subr.mxu0 0.0
    %2968 = vmatpush1.msra.mxu0 0.0
    %2969 = vmatprep.subr.mxu0 0.0
    %2970 = vmatpush1.msra.mxu0 0.0
    %2971 = vmatprep.subr.mxu0 0.0
    %2972 = vmatpush1.msra.mxu0 0.0
    %2973 = vmatprep.subr.mxu0 0.0
    %2974 = vmatpush1.msra.mxu0 0.0
    %2975 = vmatprep.subr.mxu0 0.0
    %2976 = vmatpush1.msra.mxu0 0.0
    %2977 = vmatprep.subr.mxu0 0.0
    %2978 = vmatpush1.msra.mxu0 0.0
    %2979 = vmatprep.subr.mxu0 0.0
    %2980 = vmatpush1.msra.mxu0 0.0
    %2981 = vmatprep.subr.mxu0 0.0
    %2982 = vmatpush1.msra.mxu0 0.0
    %2983 = vmatprep.subr.mxu0 0.0
    %2984 = vmatpush1.msra.mxu0 0.0
    %2985 = vmatprep.subr.mxu0 0.0
    %2986 = vmatpush1.msra.mxu0 0.0
    %2987 = vmatprep.subr.mxu0 0.0
    %2988 = vmatpush1.msra.mxu0 0.0
    %2989 = vmatprep.subr.mxu0 0.0
    %2990 = vmatpush1.msra.mxu0 0.0
    %2991 = vmatprep.subr.mxu0 0.0
    %2992 = vmatpush1.msra.mxu0 0.0
    %2993 = vmatprep.subr.mxu0 0.0
    %2994 = vmatpush1.msra.mxu0 0.0
    %2995 = vmatprep.subr.mxu0 0.0
    %2996 = vmatpush1.msra.mxu0 0.0
    %2997 = vmatprep.subr.mxu0 0.0
    %2998 = vmatpush1.msra.mxu0 0.0
    %2999 = vmatprep.subr.mxu0 0.0
    %3000 = vmatpush1.msra.mxu0 0.0
    %3001 = vmatprep.subr.mxu0 0.0
    %3002 = vmatpush1.msra.mxu0 0.0
    %3003 = vmatprep.subr.mxu0 0.0
    %3004 = vmatpush1.msra.mxu0 0.0
    %3005 = vmatprep.subr.mxu0 0.0
    %3006 = vmatpush1.msra.mxu0 0.0
    %3007 = vmatprep.mubr.f32.mxu0 0.0
    %3008 = vmatmul.mubr.f32.gmra.mrb[0].mxu0 %v2932
    %v3009 = vpop.f32.mrb[0].mxu0
    %v3010 = vadd.f32 0.0, %v3009
    %v3011 = vpop.f32.mrb[0].mxu0
    %3012 = vmatprep.mubr.f32.mxu0 0.0
    %3013 = vmatmul.mubr.f32.gmra.mrb[0].mxu0 %v2935
    %v3014 = vpop.f32.mrb[0].mxu0
    %v3015 = vadd.f32 0.0, %v3014
    %v3016 = vpop.f32.mrb[0].mxu0
    %3017 = vmatprep.mubr.f32.mxu0 0.0
    %3018 = vmatmul.mubr.f32.gmra.mrb[0].mxu0 %v2938
    %v3019 = vpop.f32.mrb[0].mxu0
    %v3020 = vadd.f32 0.0, %v3019
    %v3021 = vpop.f32.mrb[0].mxu0
    %3022 = vmatprep.mubr.f32.mxu0 0.0
    %3023 = vmatmul.mubr.f32.gmra.mrb[0].mxu0 %v2941
    %v3024 = vpop.f32.mrb[0].mxu0
    %v3025 = vadd.f32 0.0, %v3024
    %v3026 = vpop.f32.mrb[0].mxu0
    %3027 = vdwg.mxu0
    %v3028 = vmax.f32 %v3010, 0.0
    %v3029 = vmax.f32 %v3015, 0.0
    %v3030 = vmax.f32 %v3020, 0.0
    %v3031 = vmax.f32 %v3025, 0.0
    %v3032 = vadd.f32 %v3028, %v2813
    %v3033 = vadd.f32 %v3029, %v2814
    %v3034 = vadd.f32 %v3030, %v2815
    %v3035 = vadd.f32 %v3031, %v2816
    %v3040 = vrot.slane %v3032, 7
    %v3041 = vrot.slane %v3033, 7
    %v3042 = vsel %vm218, %v3040, %v3041
    %v3043 = vrot.slane %v3034, 7
    %v3044 = vsel %vm218, %v3041, %v3043
    %v3045 = vrot.slane %v3035, 7
    %v3046 = vsel %vm218, %v3043, %v3045
    %v3051 = vsel %vm218, 0.0, %v3040
    %v3052 = vmul.f32 %v3051, %v181
    %v3053 = vmul.f32 %v3042, %v182
    %v3054 = vmul.f32 %v3044, %v183
    %v3055 = vmul.f32 %v3046, %v184
    %v3056 = vrot.slane %v3032, 1
    %v3057 = vrot.slane %v3033, 1
    %v3058 = vsel %vm223, %v3056, %v3057
    %v3059 = vrot.slane %v3034, 1
    %v3060 = vsel %vm223, %v3057, %v3059
    %v3061 = vrot.slane %v3035, 1
    %v3062 = vsel %vm223, %v3059, %v3061
    %v3067 = vsel %vm223, %v3061, 0.0
    %v3068 = vmul.f32 %v3058, %v189
    %v3069 = vmul.f32 %v3060, %v190
    %v3070 = vmul.f32 %v3062, %v191
    %v3071 = vmul.f32 %v3067, %v192
    %s3072 = scalar_lea.vmem %s15, 128
    %v3073 = vld [vmem:[%s3072] sm:$0xff]
    %v3074 = vld [vmem:[%s3072 + $0x8] sm:$0xff]
    %v3075 = vld [vmem:[%s3072 + $0x10] sm:$0xff]
    %v3076 = vld [vmem:[%s3072 + $0x18] sm:$0xff]
    %v3077 = vld [vmem:[%s3072 + $0x20] sm:$0xff]
    %v3078 = vld [vmem:[%s3072 + $0x28] sm:$0xff]
    %v3079 = vld [vmem:[%s3072 + $0x30] sm:$0xff]
    %v3080 = vld [vmem:[%s3072 + $0x38] sm:$0xff]
    %v3081 = vld [vmem:[%s3072 + $0x40] sm:$0xff]
    %v3082 = vld [vmem:[%s3072 + $0x48] sm:$0xff]
    %v3083 = vld [vmem:[%s3072 + $0x50] sm:$0xff]
    %v3084 = vld [vmem:[%s3072 + $0x58] sm:$0xff]
    %v3085 = vld [vmem:[%s3072 + $0x60] sm:$0xff]
    %v3086 = vld [vmem:[%s3072 + $0x68] sm:$0xff]
    %v3087 = vld [vmem:[%s3072 + $0x70] sm:$0xff]
    %v3088 = vld [vmem:[%s3072 + $0x78] sm:$0xff]
    %v3089 = vld [vmem:[%s15] sm:$0xff]
    %v3090 = vld [vmem:[%s15 + $0x8] sm:$0xff]
    %v3091 = vld [vmem:[%s15 + $0x10] sm:$0xff]
    %v3092 = vld [vmem:[%s15 + $0x18] sm:$0xff]
    %v3093 = vld [vmem:[%s15 + $0x20] sm:$0xff]
    %v3094 = vld [vmem:[%s15 + $0x28] sm:$0xff]
    %v3095 = vld [vmem:[%s15 + $0x30] sm:$0xff]
    %v3096 = vld [vmem:[%s15 + $0x38] sm:$0xff]
    %v3097 = vld [vmem:[%s15 + $0x40] sm:$0xff]
    %v3098 = vld [vmem:[%s15 + $0x48] sm:$0xff]
    %v3099 = vld [vmem:[%s15 + $0x50] sm:$0xff]
    %v3100 = vld [vmem:[%s15 + $0x58] sm:$0xff]
    %v3101 = vld [vmem:[%s15 + $0x60] sm:$0xff]
    %v3102 = vld [vmem:[%s15 + $0x68] sm:$0xff]
    %v3103 = vld [vmem:[%s15 + $0x70] sm:$0xff]
    %v3104 = vld [vmem:[%s15 + $0x78] sm:$0xff]
    %3105 = vmatprep.subr.mxu0 0.0
    %3106 = vmatpush1.msra.mxu0 %v3089
    %3107 = vmatprep.subr.mxu0 0.0
    %3108 = vmatpush1.msra.mxu0 %v3090
    %3109 = vmatprep.subr.mxu0 0.0
    %3110 = vmatpush1.msra.mxu0 %v3091
    %3111 = vmatprep.subr.mxu0 0.0
    %3112 = vmatpush1.msra.mxu0 %v3092
    %3113 = vmatprep.subr.mxu0 0.0
    %3114 = vmatpush1.msra.mxu0 %v3093
    %3115 = vmatprep.subr.mxu0 0.0
    %3116 = vmatpush1.msra.mxu0 %v3094
    %3117 = vmatprep.subr.mxu0 0.0
    %3118 = vmatpush1.msra.mxu0 %v3095
    %3119 = vmatprep.subr.mxu0 0.0
    %3120 = vmatpush1.msra.mxu0 %v3096
    %3121 = vmatprep.subr.mxu0 0.0
    %3122 = vmatpush1.msra.mxu0 %v3097
    %3123 = vmatprep.subr.mxu0 0.0
    %3124 = vmatpush1.msra.mxu0 %v3098
    %3125 = vmatprep.subr.mxu0 0.0
    %3126 = vmatpush1.msra.mxu0 %v3099
    %3127 = vmatprep.subr.mxu0 0.0
    %3128 = vmatpush1.msra.mxu0 %v3100
    %3129 = vmatprep.subr.mxu0 0.0
    %3130 = vmatpush1.msra.mxu0 %v3101
    %3131 = vmatprep.subr.mxu0 0.0
    %3132 = vmatpush1.msra.mxu0 %v3102
    %3133 = vmatprep.subr.mxu0 0.0
    %3134 = vmatpush1.msra.mxu0 %v3103
    %3135 = vmatprep.subr.mxu0 0.0
    %3136 = vmatpush1.msra.mxu0 %v3104
    %3137 = vmatprep.subr.mxu0 0.0
    %3138 = vmatpush1.msra.mxu0 0.0
    %3139 = vmatprep.subr.mxu0 0.0
    %3140 = vmatpush1.msra.mxu0 0.0
    %3141 = vmatprep.subr.mxu0 0.0
    %3142 = vmatpush1.msra.mxu0 0.0
    %3143 = vmatprep.subr.mxu0 0.0
    %3144 = vmatpush1.msra.mxu0 0.0
    %3145 = vmatprep.subr.mxu0 0.0
    %3146 = vmatpush1.msra.mxu0 0.0
    %3147 = vmatprep.subr.mxu0 0.0
    %3148 = vmatpush1.msra.mxu0 0.0
    %3149 = vmatprep.subr.mxu0 0.0
    %3150 = vmatpush1.msra.mxu0 0.0
    %3151 = vmatprep.subr.mxu0 0.0
    %3152 = vmatpush1.msra.mxu0 0.0
    %3153 = vmatprep.subr.mxu0 0.0
    %3154 = vmatpush1.msra.mxu0 0.0
    %3155 = vmatprep.subr.mxu0 0.0
    %3156 = vmatpush1.msra.mxu0 0.0
    %3157 = vmatprep.subr.mxu0 0.0
    %3158 = vmatpush1.msra.mxu0 0.0
    %3159 = vmatprep.subr.mxu0 0.0
    %3160 = vmatpush1.msra.mxu0 0.0
    %3161 = vmatprep.subr.mxu0 0.0
    %3162 = vmatpush1.msra.mxu0 0.0
    %3163 = vmatprep.subr.mxu0 0.0
    %3164 = vmatpush1.msra.mxu0 0.0
    %3165 = vmatprep.subr.mxu0 0.0
    %3166 = vmatpush1.msra.mxu0 0.0
    %3167 = vmatprep.subr.mxu0 0.0
    %3168 = vmatpush1.msra.mxu0 0.0
    %3169 = vmatprep.mubr.f32.mxu0 0.0
    %3170 = vmatmul.mubr.f32.gmra.mrb[0].mxu0 %v3052
    %v3171 = vpop.f32.mrb[0].mxu0
    %v3172 = vadd.f32 0.0, %v3171
    %v3173 = vpop.f32.mrb[0].mxu0
    %3174 = vmatprep.mubr.f32.mxu0 0.0
    %3175 = vmatmul.mubr.f32.gmra.mrb[0].mxu0 %v3053
    %v3176 = vpop.f32.mrb[0].mxu0
    %v3177 = vadd.f32 0.0, %v3176
    %v3178 = vpop.f32.mrb[0].mxu0
    %3179 = vmatprep.mubr.f32.mxu0 0.0
    %3180 = vmatmul.mubr.f32.gmra.mrb[0].mxu0 %v3054
    %v3181 = vpop.f32.mrb[0].mxu0
    %v3182 = vadd.f32 0.0, %v3181
    %v3183 = vpop.f32.mrb[0].mxu0
    %3184 = vmatprep.mubr.f32.mxu0 0.0
    %3185 = vmatmul.mubr.f32.gmra.mrb[0].mxu0 %v3055
    %v3186 = vpop.f32.mrb[0].mxu0
    %v3187 = vadd.f32 0.0, %v3186
    %v3188 = vpop.f32.mrb[0].mxu0
    %3189 = vdwg.mxu0
    %3190 = vmatprep.subr.mxu0 0.0
    %3191 = vmatpush1.msra.mxu0 %v3073
    %3192 = vmatprep.subr.mxu0 0.0
    %3193 = vmatpush1.msra.mxu0 %v3074
    %3194 = vmatprep.subr.mxu0 0.0
    %3195 = vmatpush1.msra.mxu0 %v3075
    %3196 = vmatprep.subr.mxu0 0.0
    %3197 = vmatpush1.msra.mxu0 %v3076
    %3198 = vmatprep.subr.mxu0 0.0
    %3199 = vmatpush1.msra.mxu0 %v3077
    %3200 = vmatprep.subr.mxu0 0.0
    %3201 = vmatpush1.msra.mxu0 %v3078
    %3202 = vmatprep.subr.mxu0 0.0
    %3203 = vmatpush1.msra.mxu0 %v3079
    %3204 = vmatprep.subr.mxu0 0.0
    %3205 = vmatpush1.msra.mxu0 %v3080
    %3206 = vmatprep.subr.mxu0 0.0
    %3207 = vmatpush1.msra.mxu0 %v3081
    %3208 = vmatprep.subr.mxu0 0.0
    %3209 = vmatpush1.msra.mxu0 %v3082
    %3210 = vmatprep.subr.mxu0 0.0
    %3211 = vmatpush1.msra.mxu0 %v3083
    %3212 = vmatprep.subr.mxu0 0.0
    %3213 = vmatpush1.msra.mxu0 %v3084
    %3214 = vmatprep.subr.mxu0 0.0
    %3215 = vmatpush1.msra.mxu0 %v3085
    %3216 = vmatprep.subr.mxu0 0.0
    %3217 = vmatpush1.msra.mxu0 %v3086
    %3218 = vmatprep.subr.mxu0 0.0
    %3219 = vmatpush1.msra.mxu0 %v3087
    %3220 = vmatprep.subr.mxu0 0.0
    %3221 = vmatpush1.msra.mxu0 %v3088
    %3222 = vmatprep.subr.mxu0 0.0
    %3223 = vmatpush1.msra.mxu0 0.0
    %3224 = vmatprep.subr.mxu0 0.0
    %3225 = vmatpush1.msra.mxu0 0.0
    %3226 = vmatprep.subr.mxu0 0.0
    %3227 = vmatpush1.msra.mxu0 0.0
    %3228 = vmatprep.subr.mxu0 0.0
    %3229 = vmatpush1.msra.mxu0 0.0
    %3230 = vmatprep.subr.mxu0 0.0
    %3231 = vmatpush1.msra.mxu0 0.0
    %3232 = vmatprep.subr.mxu0 0.0
    %3233 = vmatpush1.msra.mxu0 0.0
    %3234 = vmatprep.subr.mxu0 0.0
    %3235 = vmatpush1.msra.mxu0 0.0
    %3236 = vmatprep.subr.mxu0 0.0
    %3237 = vmatpush1.msra.mxu0 0.0
    %3238 = vmatprep.subr.mxu0 0.0
    %3239 = vmatpush1.msra.mxu0 0.0
    %3240 = vmatprep.subr.mxu0 0.0
    %3241 = vmatpush1.msra.mxu0 0.0
    %3242 = vmatprep.subr.mxu0 0.0
    %3243 = vmatpush1.msra.mxu0 0.0
    %3244 = vmatprep.subr.mxu0 0.0
    %3245 = vmatpush1.msra.mxu0 0.0
    %3246 = vmatprep.subr.mxu0 0.0
    %3247 = vmatpush1.msra.mxu0 0.0
    %3248 = vmatprep.subr.mxu0 0.0
    %3249 = vmatpush1.msra.mxu0 0.0
    %3250 = vmatprep.subr.mxu0 0.0
    %3251 = vmatpush1.msra.mxu0 0.0
    %3252 = vmatprep.subr.mxu0 0.0
    %3253 = vmatpush1.msra.mxu0 0.0
    %3254 = vmatprep.mubr.f32.mxu0 0.0
    %3255 = vmatmul.mubr.f32.gmra.mrb[0].mxu0 %v3032
    %v3256 = vpop.f32.mrb[0].mxu0
    %v3257 = vadd.f32 %v3172, %v3256
    %v3258 = vpop.f32.mrb[0].mxu0
    %3259 = vmatprep.mubr.f32.mxu0 0.0
    %3260 = vmatmul.mubr.f32.gmra.mrb[0].mxu0 %v3033
    %v3261 = vpop.f32.mrb[0].mxu0
    %v3262 = vadd.f32 %v3177, %v3261
    %v3263 = vpop.f32.mrb[0].mxu0
    %3264 = vmatprep.mubr.f32.mxu0 0.0
    %3265 = vmatmul.mubr.f32.gmra.mrb[0].mxu0 %v3034
    %v3266 = vpop.f32.mrb[0].mxu0
    %v3267 = vadd.f32 %v3182, %v3266
    %v3268 = vpop.f32.mrb[0].mxu0
    %3269 = vmatprep.mubr.f32.mxu0 0.0
    %3270 = vmatmul.mubr.f32.gmra.mrb[0].mxu0 %v3035
    %v3271 = vpop.f32.mrb[0].mxu0
    %v3272 = vadd.f32 %v3187, %v3271
    %v3273 = vpop.f32.mrb[0].mxu0
    %3274 = vdwg.mxu0
    %s3275 = scalar_lea.vmem %s15, 256
    %v3276 = vld [vmem:[%s3275] sm:$0xff]
    %v3277 = vld [vmem:[%s3275 + $0x8] sm:$0xff]
    %v3278 = vld [vmem:[%s3275 + $0x10] sm:$0xff]
    %v3279 = vld [vmem:[%s3275 + $0x18] sm:$0xff]
    %v3280 = vld [vmem:[%s3275 + $0x20] sm:$0xff]
    %v3281 = vld [vmem:[%s3275 + $0x28] sm:$0xff]
    %v3282 = vld [vmem:[%s3275 + $0x30] sm:$0xff]
    %v3283 = vld [vmem:[%s3275 + $0x38] sm:$0xff]
    %v3284 = vld [vmem:[%s3275 + $0x40] sm:$0xff]
    %v3285 = vld [vmem:[%s3275 + $0x48] sm:$0xff]
    %v3286 = vld [vmem:[%s3275 + $0x50] sm:$0xff]
    %v3287 = vld [vmem:[%s3275 + $0x58] sm:$0xff]
    %v3288 = vld [vmem:[%s3275 + $0x60] sm:$0xff]
    %v3289 = vld [vmem:[%s3275 + $0x68] sm:$0xff]
    %v3290 = vld [vmem:[%s3275 + $0x70] sm:$0xff]
    %v3291 = vld [vmem:[%s3275 + $0x78] sm:$0xff]
    %3292 = vmatprep.subr.mxu0 0.0
    %3293 = vmatpush1.msra.mxu0 %v3276
    %3294 = vmatprep.subr.mxu0 0.0
    %3295 = vmatpush1.msra.mxu0 %v3277
    %3296 = vmatprep.subr.mxu0 0.0
    %3297 = vmatpush1.msra.mxu0 %v3278
    %3298 = vmatprep.subr.mxu0 0.0
    %3299 = vmatpush1.msra.mxu0 %v3279
    %3300 = vmatprep.subr.mxu0 0.0
    %3301 = vmatpush1.msra.mxu0 %v3280
    %3302 = vmatprep.subr.mxu0 0.0
    %3303 = vmatpush1.msra.mxu0 %v3281
    %3304 = vmatprep.subr.mxu0 0.0
    %3305 = vmatpush1.msra.mxu0 %v3282
    %3306 = vmatprep.subr.mxu0 0.0
    %3307 = vmatpush1.msra.mxu0 %v3283
    %3308 = vmatprep.subr.mxu0 0.0
    %3309 = vmatpush1.msra.mxu0 %v3284
    %3310 = vmatprep.subr.mxu0 0.0
    %3311 = vmatpush1.msra.mxu0 %v3285
    %3312 = vmatprep.subr.mxu0 0.0
    %3313 = vmatpush1.msra.mxu0 %v3286
    %3314 = vmatprep.subr.mxu0 0.0
    %3315 = vmatpush1.msra.mxu0 %v3287
    %3316 = vmatprep.subr.mxu0 0.0
    %3317 = vmatpush1.msra.mxu0 %v3288
    %3318 = vmatprep.subr.mxu0 0.0
    %3319 = vmatpush1.msra.mxu0 %v3289
    %3320 = vmatprep.subr.mxu0 0.0
    %3321 = vmatpush1.msra.mxu0 %v3290
    %3322 = vmatprep.subr.mxu0 0.0
    %3323 = vmatpush1.msra.mxu0 %v3291
    %3324 = vmatprep.subr.mxu0 0.0
    %3325 = vmatpush1.msra.mxu0 0.0
    %3326 = vmatprep.subr.mxu0 0.0
    %3327 = vmatpush1.msra.mxu0 0.0
    %3328 = vmatprep.subr.mxu0 0.0
    %3329 = vmatpush1.msra.mxu0 0.0
    %3330 = vmatprep.subr.mxu0 0.0
    %3331 = vmatpush1.msra.mxu0 0.0
    %3332 = vmatprep.subr.mxu0 0.0
    %3333 = vmatpush1.msra.mxu0 0.0
    %3334 = vmatprep.subr.mxu0 0.0
    %3335 = vmatpush1.msra.mxu0 0.0
    %3336 = vmatprep.subr.mxu0 0.0
    %3337 = vmatpush1.msra.mxu0 0.0
    %3338 = vmatprep.subr.mxu0 0.0
    %3339 = vmatpush1.msra.mxu0 0.0
    %3340 = vmatprep.subr.mxu0 0.0
    %3341 = vmatpush1.msra.mxu0 0.0
    %3342 = vmatprep.subr.mxu0 0.0
    %3343 = vmatpush1.msra.mxu0 0.0
    %3344 = vmatprep.subr.mxu0 0.0
    %3345 = vmatpush1.msra.mxu0 0.0
    %3346 = vmatprep.subr.mxu0 0.0
    %3347 = vmatpush1.msra.mxu0 0.0
    %3348 = vmatprep.subr.mxu0 0.0
    %3349 = vmatpush1.msra.mxu0 0.0
    %3350 = vmatprep.subr.mxu0 0.0
    %3351 = vmatpush1.msra.mxu0 0.0
    %3352 = vmatprep.subr.mxu0 0.0
    %3353 = vmatpush1.msra.mxu0 0.0
    %3354 = vmatprep.subr.mxu0 0.0
    %3355 = vmatpush1.msra.mxu0 0.0
    %3356 = vmatprep.mubr.f32.mxu0 0.0
    %3357 = vmatmul.mubr.f32.gmra.mrb[0].mxu0 %v3068
    %v3358 = vpop.f32.mrb[0].mxu0
    %v3359 = vadd.f32 0.0, %v3358
    %v3360 = vpop.f32.mrb[0].mxu0
    %3361 = vmatprep.mubr.f32.mxu0 0.0
    %3362 = vmatmul.mubr.f32.gmra.mrb[0].mxu0 %v3069
    %v3363 = vpop.f32.mrb[0].mxu0
    %v3364 = vadd.f32 0.0, %v3363
    %v3365 = vpop.f32.mrb[0].mxu0
    %3366 = vmatprep.mubr.f32.mxu0 0.0
    %3367 = vmatmul.mubr.f32.gmra.mrb[0].mxu0 %v3070
    %v3368 = vpop.f32.mrb[0].mxu0
    %v3369 = vadd.f32 0.0, %v3368
    %v3370 = vpop.f32.mrb[0].mxu0
    %3371 = vmatprep.mubr.f32.mxu0 0.0
    %3372 = vmatmul.mubr.f32.gmra.mrb[0].mxu0 %v3071
    %v3373 = vpop.f32.mrb[0].mxu0
    %v3374 = vadd.f32 0.0, %v3373
    %v3375 = vpop.f32.mrb[0].mxu0
    %3376 = vdwg.mxu0
    %v3377 = vadd.f32 %v3257, %v3359
    %v3378 = vadd.f32 %v3262, %v3364
    %v3379 = vadd.f32 %v3267, %v3369
    %v3380 = vadd.f32 %v3272, %v3374
    %v3381 = vmax.f32 %v3377, 0.0
    %v3382 = vmax.f32 %v3378, 0.0
    %v3383 = vmax.f32 %v3379, 0.0
    %v3384 = vmax.f32 %v3380, 0.0
    %v3389 = vrot.slane %v3381, 7
    %v3390 = vrot.slane %v3382, 7
    %v3391 = vsel %vm218, %v3389, %v3390
    %v3392 = vrot.slane %v3383, 7
    %v3393 = vsel %vm218, %v3390, %v3392
    %v3394 = vrot.slane %v3384, 7
    %v3395 = vsel %vm218, %v3392, %v3394
    %v3400 = vsel %vm218, 0.0, %v3389
    %v3401 = vmul.f32 %v3400, %v181
    %v3402 = vmul.f32 %v3391, %v182
    %v3403 = vmul.f32 %v3393, %v183
    %v3404 = vmul.f32 %v3395, %v184
    %v3405 = vrot.slane %v3381, 1
    %v3406 = vrot.slane %v3382, 1
    %v3407 = vsel %vm223, %v3405, %v3406
    %v3408 = vrot.slane %v3383, 1
    %v3409 = vsel %vm223, %v3406, %v3408
    %v3410 = vrot.slane %v3384, 1
    %v3411 = vsel %vm223, %v3408, %v3410
    %v3416 = vsel %vm223, %v3410, 0.0
    %v3417 = vmul.f32 %v3407, %v189
    %v3418 = vmul.f32 %v3409, %v190
    %v3419 = vmul.f32 %v3411, %v191
    %v3420 = vmul.f32 %v3416, %v192
    %s3421 = scalar_lea.vmem [#allocation13], 128
    %v3422 = vld [vmem:[%s3421] sm:$0xff]
    %v3423 = vld [vmem:[%s3421 + $0x8] sm:$0xff]
    %v3424 = vld [vmem:[%s3421 + $0x10] sm:$0xff]
    %v3425 = vld [vmem:[%s3421 + $0x18] sm:$0xff]
    %v3426 = vld [vmem:[%s3421 + $0x20] sm:$0xff]
    %v3427 = vld [vmem:[%s3421 + $0x28] sm:$0xff]
    %v3428 = vld [vmem:[%s3421 + $0x30] sm:$0xff]
    %v3429 = vld [vmem:[%s3421 + $0x38] sm:$0xff]
    %v3430 = vld [vmem:[%s3421 + $0x40] sm:$0xff]
    %v3431 = vld [vmem:[%s3421 + $0x48] sm:$0xff]
    %v3432 = vld [vmem:[%s3421 + $0x50] sm:$0xff]
    %v3433 = vld [vmem:[%s3421 + $0x58] sm:$0xff]
    %v3434 = vld [vmem:[%s3421 + $0x60] sm:$0xff]
    %v3435 = vld [vmem:[%s3421 + $0x68] sm:$0xff]
    %v3436 = vld [vmem:[%s3421 + $0x70] sm:$0xff]
    %v3437 = vld [vmem:[%s3421 + $0x78] sm:$0xff]
    %v3438 = vld [vmem:[#allocation13] sm:$0xff]
    %v3439 = vld [vmem:[#allocation13 + $0x8] sm:$0xff]
    %v3440 = vld [vmem:[#allocation13 + $0x10] sm:$0xff]
    %v3441 = vld [vmem:[#allocation13 + $0x18] sm:$0xff]
    %v3442 = vld [vmem:[#allocation13 + $0x20] sm:$0xff]
    %v3443 = vld [vmem:[#allocation13 + $0x28] sm:$0xff]
    %v3444 = vld [vmem:[#allocation13 + $0x30] sm:$0xff]
    %v3445 = vld [vmem:[#allocation13 + $0x38] sm:$0xff]
    %v3446 = vld [vmem:[#allocation13 + $0x40] sm:$0xff]
    %v3447 = vld [vmem:[#allocation13 + $0x48] sm:$0xff]
    %v3448 = vld [vmem:[#allocation13 + $0x50] sm:$0xff]
    %v3449 = vld [vmem:[#allocation13 + $0x58] sm:$0xff]
    %v3450 = vld [vmem:[#allocation13 + $0x60] sm:$0xff]
    %v3451 = vld [vmem:[#allocation13 + $0x68] sm:$0xff]
    %v3452 = vld [vmem:[#allocation13 + $0x70] sm:$0xff]
    %v3453 = vld [vmem:[#allocation13 + $0x78] sm:$0xff]
    %3454 = vmatprep.subr.mxu0 0.0
    %3455 = vmatpush1.msra.mxu0 %v3438
    %3456 = vmatprep.subr.mxu0 0.0
    %3457 = vmatpush1.msra.mxu0 %v3439
    %3458 = vmatprep.subr.mxu0 0.0
    %3459 = vmatpush1.msra.mxu0 %v3440
    %3460 = vmatprep.subr.mxu0 0.0
    %3461 = vmatpush1.msra.mxu0 %v3441
    %3462 = vmatprep.subr.mxu0 0.0
    %3463 = vmatpush1.msra.mxu0 %v3442
    %3464 = vmatprep.subr.mxu0 0.0
    %3465 = vmatpush1.msra.mxu0 %v3443
    %3466 = vmatprep.subr.mxu0 0.0
    %3467 = vmatpush1.msra.mxu0 %v3444
    %3468 = vmatprep.subr.mxu0 0.0
    %3469 = vmatpush1.msra.mxu0 %v3445
    %3470 = vmatprep.subr.mxu0 0.0
    %3471 = vmatpush1.msra.mxu0 %v3446
    %3472 = vmatprep.subr.mxu0 0.0
    %3473 = vmatpush1.msra.mxu0 %v3447
    %3474 = vmatprep.subr.mxu0 0.0
    %3475 = vmatpush1.msra.mxu0 %v3448
    %3476 = vmatprep.subr.mxu0 0.0
    %3477 = vmatpush1.msra.mxu0 %v3449
    %3478 = vmatprep.subr.mxu0 0.0
    %3479 = vmatpush1.msra.mxu0 %v3450
    %3480 = vmatprep.subr.mxu0 0.0
    %3481 = vmatpush1.msra.mxu0 %v3451
    %3482 = vmatprep.subr.mxu0 0.0
    %3483 = vmatpush1.msra.mxu0 %v3452
    %3484 = vmatprep.subr.mxu0 0.0
    %3485 = vmatpush1.msra.mxu0 %v3453
    %3486 = vmatprep.subr.mxu0 0.0
    %3487 = vmatpush1.msra.mxu0 0.0
    %3488 = vmatprep.subr.mxu0 0.0
    %3489 = vmatpush1.msra.mxu0 0.0
    %3490 = vmatprep.subr.mxu0 0.0
    %3491 = vmatpush1.msra.mxu0 0.0
    %3492 = vmatprep.subr.mxu0 0.0
    %3493 = vmatpush1.msra.mxu0 0.0
    %3494 = vmatprep.subr.mxu0 0.0
    %3495 = vmatpush1.msra.mxu0 0.0
    %3496 = vmatprep.subr.mxu0 0.0
    %3497 = vmatpush1.msra.mxu0 0.0
    %3498 = vmatprep.subr.mxu0 0.0
    %3499 = vmatpush1.msra.mxu0 0.0
    %3500 = vmatprep.subr.mxu0 0.0
    %3501 = vmatpush1.msra.mxu0 0.0
    %3502 = vmatprep.subr.mxu0 0.0
    %3503 = vmatpush1.msra.mxu0 0.0
    %3504 = vmatprep.subr.mxu0 0.0
    %3505 = vmatpush1.msra.mxu0 0.0
    %3506 = vmatprep.subr.mxu0 0.0
    %3507 = vmatpush1.msra.mxu0 0.0
    %3508 = vmatprep.subr.mxu0 0.0
    %3509 = vmatpush1.msra.mxu0 0.0
    %3510 = vmatprep.subr.mxu0 0.0
    %3511 = vmatpush1.msra.mxu0 0.0
    %3512 = vmatprep.subr.mxu0 0.0
    %3513 = vmatpush1.msra.mxu0 0.0
    %3514 = vmatprep.subr.mxu0 0.0
    %3515 = vmatpush1.msra.mxu0 0.0
    %3516 = vmatprep.subr.mxu0 0.0
    %3517 = vmatpush1.msra.mxu0 0.0
    %3518 = vmatprep.mubr.f32.mxu0 0.0
    %3519 = vmatmul.mubr.f32.gmra.mrb[0].mxu0 %v3401
    %v3520 = vpop.f32.mrb[0].mxu0
    %v3521 = vadd.f32 0.0, %v3520
    %v3522 = vpop.f32.mrb[0].mxu0
    %3523 = vmatprep.mubr.f32.mxu0 0.0
    %3524 = vmatmul.mubr.f32.gmra.mrb[0].mxu0 %v3402
    %v3525 = vpop.f32.mrb[0].mxu0
    %v3526 = vadd.f32 0.0, %v3525
    %v3527 = vpop.f32.mrb[0].mxu0
    %3528 = vmatprep.mubr.f32.mxu0 0.0
    %3529 = vmatmul.mubr.f32.gmra.mrb[0].mxu0 %v3403
    %v3530 = vpop.f32.mrb[0].mxu0
    %v3531 = vadd.f32 0.0, %v3530
    %v3532 = vpop.f32.mrb[0].mxu0
    %3533 = vmatprep.mubr.f32.mxu0 0.0
    %3534 = vmatmul.mubr.f32.gmra.mrb[0].mxu0 %v3404
    %v3535 = vpop.f32.mrb[0].mxu0
    %v3536 = vadd.f32 0.0, %v3535
    %v3537 = vpop.f32.mrb[0].mxu0
    %3538 = vdwg.mxu0
    %3539 = vmatprep.subr.mxu0 0.0
    %3540 = vmatpush1.msra.mxu0 %v3422
    %3541 = vmatprep.subr.mxu0 0.0
    %3542 = vmatpush1.msra.mxu0 %v3423
    %3543 = vmatprep.subr.mxu0 0.0
    %3544 = vmatpush1.msra.mxu0 %v3424
    %3545 = vmatprep.subr.mxu0 0.0
    %3546 = vmatpush1.msra.mxu0 %v3425
    %3547 = vmatprep.subr.mxu0 0.0
    %3548 = vmatpush1.msra.mxu0 %v3426
    %3549 = vmatprep.subr.mxu0 0.0
    %3550 = vmatpush1.msra.mxu0 %v3427
    %3551 = vmatprep.subr.mxu0 0.0
    %3552 = vmatpush1.msra.mxu0 %v3428
    %3553 = vmatprep.subr.mxu0 0.0
    %3554 = vmatpush1.msra.mxu0 %v3429
    %3555 = vmatprep.subr.mxu0 0.0
    %3556 = vmatpush1.msra.mxu0 %v3430
    %3557 = vmatprep.subr.mxu0 0.0
    %3558 = vmatpush1.msra.mxu0 %v3431
    %3559 = vmatprep.subr.mxu0 0.0
    %3560 = vmatpush1.msra.mxu0 %v3432
    %3561 = vmatprep.subr.mxu0 0.0
    %3562 = vmatpush1.msra.mxu0 %v3433
    %3563 = vmatprep.subr.mxu0 0.0
    %3564 = vmatpush1.msra.mxu0 %v3434
    %3565 = vmatprep.subr.mxu0 0.0
    %3566 = vmatpush1.msra.mxu0 %v3435
    %3567 = vmatprep.subr.mxu0 0.0
    %3568 = vmatpush1.msra.mxu0 %v3436
    %3569 = vmatprep.subr.mxu0 0.0
    %3570 = vmatpush1.msra.mxu0 %v3437
    %3571 = vmatprep.subr.mxu0 0.0
    %3572 = vmatpush1.msra.mxu0 0.0
    %3573 = vmatprep.subr.mxu0 0.0
    %3574 = vmatpush1.msra.mxu0 0.0
    %3575 = vmatprep.subr.mxu0 0.0
    %3576 = vmatpush1.msra.mxu0 0.0
    %3577 = vmatprep.subr.mxu0 0.0
    %3578 = vmatpush1.msra.mxu0 0.0
    %3579 = vmatprep.subr.mxu0 0.0
    %3580 = vmatpush1.msra.mxu0 0.0
    %3581 = vmatprep.subr.mxu0 0.0
    %3582 = vmatpush1.msra.mxu0 0.0
    %3583 = vmatprep.subr.mxu0 0.0
    %3584 = vmatpush1.msra.mxu0 0.0
    %3585 = vmatprep.subr.mxu0 0.0
    %3586 = vmatpush1.msra.mxu0 0.0
    %3587 = vmatprep.subr.mxu0 0.0
    %3588 = vmatpush1.msra.mxu0 0.0
    %3589 = vmatprep.subr.mxu0 0.0
    %3590 = vmatpush1.msra.mxu0 0.0
    %3591 = vmatprep.subr.mxu0 0.0
    %3592 = vmatpush1.msra.mxu0 0.0
    %3593 = vmatprep.subr.mxu0 0.0
    %3594 = vmatpush1.msra.mxu0 0.0
    %3595 = vmatprep.subr.mxu0 0.0
    %3596 = vmatpush1.msra.mxu0 0.0
    %3597 = vmatprep.subr.mxu0 0.0
    %3598 = vmatpush1.msra.mxu0 0.0
    %3599 = vmatprep.subr.mxu0 0.0
    %3600 = vmatpush1.msra.mxu0 0.0
    %3601 = vmatprep.subr.mxu0 0.0
    %3602 = vmatpush1.msra.mxu0 0.0
    %3603 = vmatprep.mubr.f32.mxu0 0.0
    %3604 = vmatmul.mubr.f32.gmra.mrb[0].mxu0 %v3381
    %v3605 = vpop.f32.mrb[0].mxu0
    %v3606 = vadd.f32 %v3521, %v3605
    %v3607 = vpop.f32.mrb[0].mxu0
    %3608 = vmatprep.mubr.f32.mxu0 0.0
    %3609 = vmatmul.mubr.f32.gmra.mrb[0].mxu0 %v3382
    %v3610 = vpop.f32.mrb[0].mxu0
    %v3611 = vadd.f32 %v3526, %v3610
    %v3612 = vpop.f32.mrb[0].mxu0
    %3613 = vmatprep.mubr.f32.mxu0 0.0
    %3614 = vmatmul.mubr.f32.gmra.mrb[0].mxu0 %v3383
    %v3615 = vpop.f32.mrb[0].mxu0
    %v3616 = vadd.f32 %v3531, %v3615
    %v3617 = vpop.f32.mrb[0].mxu0
    %3618 = vmatprep.mubr.f32.mxu0 0.0
    %3619 = vmatmul.mubr.f32.gmra.mrb[0].mxu0 %v3384
    %v3620 = vpop.f32.mrb[0].mxu0
    %v3621 = vadd.f32 %v3536, %v3620
    %v3622 = vpop.f32.mrb[0].mxu0
    %3623 = vdwg.mxu0
    %s3624 = scalar_lea.vmem [#allocation13], 256
    %v3625 = vld [vmem:[%s3624] sm:$0xff]
    %v3626 = vld [vmem:[%s3624 + $0x8] sm:$0xff]
    %v3627 = vld [vmem:[%s3624 + $0x10] sm:$0xff]
    %v3628 = vld [vmem:[%s3624 + $0x18] sm:$0xff]
    %v3629 = vld [vmem:[%s3624 + $0x20] sm:$0xff]
    %v3630 = vld [vmem:[%s3624 + $0x28] sm:$0xff]
    %v3631 = vld [vmem:[%s3624 + $0x30] sm:$0xff]
    %v3632 = vld [vmem:[%s3624 + $0x38] sm:$0xff]
    %v3633 = vld [vmem:[%s3624 + $0x40] sm:$0xff]
    %v3634 = vld [vmem:[%s3624 + $0x48] sm:$0xff]
    %v3635 = vld [vmem:[%s3624 + $0x50] sm:$0xff]
    %v3636 = vld [vmem:[%s3624 + $0x58] sm:$0xff]
    %v3637 = vld [vmem:[%s3624 + $0x60] sm:$0xff]
    %v3638 = vld [vmem:[%s3624 + $0x68] sm:$0xff]
    %v3639 = vld [vmem:[%s3624 + $0x70] sm:$0xff]
    %v3640 = vld [vmem:[%s3624 + $0x78] sm:$0xff]
    %3641 = vmatprep.subr.mxu0 0.0
    %3642 = vmatpush1.msra.mxu0 %v3625
    %3643 = vmatprep.subr.mxu0 0.0
    %3644 = vmatpush1.msra.mxu0 %v3626
    %3645 = vmatprep.subr.mxu0 0.0
    %3646 = vmatpush1.msra.mxu0 %v3627
    %3647 = vmatprep.subr.mxu0 0.0
    %3648 = vmatpush1.msra.mxu0 %v3628
    %3649 = vmatprep.subr.mxu0 0.0
    %3650 = vmatpush1.msra.mxu0 %v3629
    %3651 = vmatprep.subr.mxu0 0.0
    %3652 = vmatpush1.msra.mxu0 %v3630
    %3653 = vmatprep.subr.mxu0 0.0
    %3654 = vmatpush1.msra.mxu0 %v3631
    %3655 = vmatprep.subr.mxu0 0.0
    %3656 = vmatpush1.msra.mxu0 %v3632
    %3657 = vmatprep.subr.mxu0 0.0
    %3658 = vmatpush1.msra.mxu0 %v3633
    %3659 = vmatprep.subr.mxu0 0.0
    %3660 = vmatpush1.msra.mxu0 %v3634
    %3661 = vmatprep.subr.mxu0 0.0
    %3662 = vmatpush1.msra.mxu0 %v3635
    %3663 = vmatprep.subr.mxu0 0.0
    %3664 = vmatpush1.msra.mxu0 %v3636
    %3665 = vmatprep.subr.mxu0 0.0
    %3666 = vmatpush1.msra.mxu0 %v3637
    %3667 = vmatprep.subr.mxu0 0.0
    %3668 = vmatpush1.msra.mxu0 %v3638
    %3669 = vmatprep.subr.mxu0 0.0
    %3670 = vmatpush1.msra.mxu0 %v3639
    %3671 = vmatprep.subr.mxu0 0.0
    %3672 = vmatpush1.msra.mxu0 %v3640
    %3673 = vmatprep.subr.mxu0 0.0
    %3674 = vmatpush1.msra.mxu0 0.0
    %3675 = vmatprep.subr.mxu0 0.0
    %3676 = vmatpush1.msra.mxu0 0.0
    %3677 = vmatprep.subr.mxu0 0.0
    %3678 = vmatpush1.msra.mxu0 0.0
    %3679 = vmatprep.subr.mxu0 0.0
    %3680 = vmatpush1.msra.mxu0 0.0
    %3681 = vmatprep.subr.mxu0 0.0
    %3682 = vmatpush1.msra.mxu0 0.0
    %3683 = vmatprep.subr.mxu0 0.0
    %3684 = vmatpush1.msra.mxu0 0.0
    %3685 = vmatprep.subr.mxu0 0.0
    %3686 = vmatpush1.msra.mxu0 0.0
    %3687 = vmatprep.subr.mxu0 0.0
    %3688 = vmatpush1.msra.mxu0 0.0
    %3689 = vmatprep.subr.mxu0 0.0
    %3690 = vmatpush1.msra.mxu0 0.0
    %3691 = vmatprep.subr.mxu0 0.0
    %3692 = vmatpush1.msra.mxu0 0.0
    %3693 = vmatprep.subr.mxu0 0.0
    %3694 = vmatpush1.msra.mxu0 0.0
    %3695 = vmatprep.subr.mxu0 0.0
    %3696 = vmatpush1.msra.mxu0 0.0
    %3697 = vmatprep.subr.mxu0 0.0
    %3698 = vmatpush1.msra.mxu0 0.0
    %3699 = vmatprep.subr.mxu0 0.0
    %3700 = vmatpush1.msra.mxu0 0.0
    %3701 = vmatprep.subr.mxu0 0.0
    %3702 = vmatpush1.msra.mxu0 0.0
    %3703 = vmatprep.subr.mxu0 0.0
    %3704 = vmatpush1.msra.mxu0 0.0
    %3705 = vmatprep.mubr.f32.mxu0 0.0
    %3706 = vmatmul.mubr.f32.gmra.mrb[0].mxu0 %v3417
    %v3707 = vpop.f32.mrb[0].mxu0
    %v3708 = vadd.f32 0.0, %v3707
    %v3709 = vpop.f32.mrb[0].mxu0
    %3710 = vmatprep.mubr.f32.mxu0 0.0
    %3711 = vmatmul.mubr.f32.gmra.mrb[0].mxu0 %v3418
    %v3712 = vpop.f32.mrb[0].mxu0
    %v3713 = vadd.f32 0.0, %v3712
    %v3714 = vpop.f32.mrb[0].mxu0
    %3715 = vmatprep.mubr.f32.mxu0 0.0
    %3716 = vmatmul.mubr.f32.gmra.mrb[0].mxu0 %v3419
    %v3717 = vpop.f32.mrb[0].mxu0
    %v3718 = vadd.f32 0.0, %v3717
    %v3719 = vpop.f32.mrb[0].mxu0
    %3720 = vmatprep.mubr.f32.mxu0 0.0
    %3721 = vmatmul.mubr.f32.gmra.mrb[0].mxu0 %v3420
    %v3722 = vpop.f32.mrb[0].mxu0
    %v3723 = vadd.f32 0.0, %v3722
    %v3724 = vpop.f32.mrb[0].mxu0
    %3725 = vdwg.mxu0
    %v3726 = vadd.f32 %v3606, %v3708
    %v3727 = vadd.f32 %v3611, %v3713
    %v3728 = vadd.f32 %v3616, %v3718
    %v3729 = vadd.f32 %v3621, %v3723
    %v3730 = vmax.f32 %v3726, 0.0
    %v3731 = vmax.f32 %v3727, 0.0
    %v3732 = vmax.f32 %v3728, 0.0
    %v3733 = vmax.f32 %v3729, 0.0
    %v3734 = vadd.f32 %v3730, %v3032
    %v3735 = vadd.f32 %v3731, %v3033
    %v3736 = vadd.f32 %v3732, %v3034
    %v3737 = vadd.f32 %v3733, %v3035
    %3738 = vst [vmem:[%s17] sm:$0xff] %v3734
    %3739 = vst [vmem:[%s17 + $0x8] sm:$0xff] %v3735
    %3740 = vst [vmem:[%s17 + $0x10] sm:$0xff] %v3736
    %3741 = vst [vmem:[%s17 + $0x18] sm:$0xff] %v3737
    %3742 = vst.msk [vmem:[%s18] sm:$0xff] %vm772, %v2113
    %3743 = vst.msk [vmem:[%s18 + $0x8] sm:$0xff] %vm772, %v2114
    %3744 = vst.msk [vmem:[%s19] sm:$0xff] %vm243, %v728
    // Predicated region
    $region102: #{decoder_forward.1} parent=1 // pred_check
      _
    $region103: #{decoder_forward.1} parent=1 // pred_check_branch
      %3746 = sbr.rel (0) target = $region105
    $region104: #{decoder_forward.1} parent=1 // pred_region
      _
    $region105: #{decoder_forward.1} parent=1 // pred_fallthru
      _
    // Predicated region
    $region106: #{decoder_forward.1} parent=1 // pred_check
      _
    $region107: #{decoder_forward.1} parent=1 // pred_check_branch
      %3748 = sbr.rel (0) target = $region109
    $region108: #{decoder_forward.1} parent=1 // pred_region
      _
    $region109: #{decoder_forward.1} parent=1 // pred_fallthru
      _
    // Predicated region
    $region110: #{decoder_forward.1} parent=1 // pred_check
      _
    $region111: #{decoder_forward.1} parent=1 // pred_check_branch
      %3750 = sbr.rel (0) target = $region113
    $region112: #{decoder_forward.1} parent=1 // pred_region
      _
    $region113: #{decoder_forward.1} parent=1 // pred_fallthru
      _
    // Predicated region
    $region114: #{decoder_forward.1} parent=1 // pred_check
      _
    $region115: #{decoder_forward.1} parent=1 // pred_check_branch
      %3752 = sbr.rel (0) target = $region117
    $region116: #{decoder_forward.1} parent=1 // pred_region
      _
    $region117: #{decoder_forward.1} parent=1 // pred_fallthru
      _
    // Predicated region
    $region118: #{decoder_forward.1} parent=1 // pred_check
      _
    $region119: #{decoder_forward.1} parent=1 // pred_check_branch
      %3754 = sbr.rel (0) target = $region121
    $region120: #{decoder_forward.1} parent=1 // pred_region
      _
    $region121: #{decoder_forward.1} parent=1 // pred_fallthru
      _
    // Predicated region
    $region122: #{decoder_forward.1} parent=1 // pred_check
      _
    $region123: #{decoder_forward.1} parent=1 // pred_check_branch
      %3756 = sbr.rel (0) target = $region125
    $region124: #{decoder_forward.1} parent=1 // pred_region
      _
    $region125: #{decoder_forward.1} parent=1 // pred_fallthru
      _
    %3757 = vsyncpa [#allocation3], 1
    %3758 = vsyncpa [#allocation5], 1
    %3759 = vsyncpa [#allocation8], 1
    %3760 = vsyncpa [#allocation11], 1
    %3761 = vsyncpa [#allocation14], 1

</llo_original>
